<compile_context>
chip_gen: v7x
topology: tpu7x:2x2x1
jax: 0.10.0
libtpu: 0.0.40
codegen_flags: <defaults>
</compile_context>

<pallas_src>
import functools

import jax
import jax.numpy as jnp
import numpy as np
from jax.experimental import pallas as pl
from jax.experimental.pallas import tpu as pltpu


def _round_up(a, b):
    return (a + b - 1) // b * b


def _cdiv(a, b):
    return (a + b - 1) // b


def _sublane(dtype):
    # sublane tile rows for a given dtype: 8 for 4-byte, 16 for 2-byte, ...
    return max(8, 32 // jnp.dtype(dtype).itemsize)


def _gated_tcn_kernel(x_ref, w_ref, b_ref, o_ref, *,
                      k_taps: int, dilation: int, t_out: int,
                      c_in_pad: int, c_out_pad: int):
    """One B-tile of the fused gated TCN.

    x_ref: (T*C_in_pad, TB)          un-duplicated input, row = t*C_in_pad + c
    w_ref: (K, 2*C_out_pad, C_in_pad) per-tap stacked [filter; gate] matrices
    b_ref: (2*C_out_pad, 1)           stacked [filter; gate] bias (f32)
    o_ref: (T_out*C_out_pad, TB)      row = t*C_out_pad + c
    """
    bias = b_ref[...].astype(jnp.float32)            # (2*C_out_pad, 1)
    # Tiny resident weights: hoist the per-tap loads out of the time loop.
    w_taps = [w_ref[k] for k in range(k_taps)]       # each (2*C_out_pad, C_in_pad)

    # T (the TCN history window) is small in STSGCN, so a static unroll over
    # output time steps is appropriate; every tap slice is a tile-aligned
    # sublane slice of the resident block (no VMEM relayout, no HBM re-read).
    for t in range(t_out):
        acc = bias                                    # lane-broadcast bias
        for k in range(k_taps):
            r0 = (t + k * dilation) * c_in_pad
            acc = acc + jnp.dot(w_taps[k], x_ref[r0:r0 + c_in_pad, :],
                                preferred_element_type=jnp.float32)
        filt = jnp.tanh(acc[:c_out_pad])
        # sigmoid(z) = 0.5*tanh(0.5*z) + 0.5  -> single EUP op per element.
        gate = 0.5 * jnp.tanh(0.5 * acc[c_out_pad:]) + 0.5
        o_ref[t * c_out_pad:(t + 1) * c_out_pad, :] = (filt * gate).astype(o_ref.dtype)


def gated_tcn(x, w_filter, b_filter, w_gate, b_gate, *, dilation: int,
              compute_dtype=None, vmem_budget_bytes: int = 40 * 1024 * 1024):
    """x: (N, C_in, V, T); weights: (C_out, C_in, 1, K); bias: (C_out,)."""
    N, C_in, V, T = x.shape
    C_out, _, _, K = w_filter.shape
    T_out = T - dilation * (K - 1)
    assert T_out >= 1, "temporal extent too small for kernel_size/dilation"
    B = N * V

    out_dtype = x.dtype
    cdtype = jnp.dtype(compute_dtype) if compute_dtype is not None else jnp.dtype(x.dtype)
    c_in_pad = _round_up(C_in, _sublane(cdtype))
    c_out_pad = _round_up(C_out, _sublane(out_dtype))

    # ---- VMEM-aware tile over the lane (B = N*V) axis ----
    per_col_bytes = (2 * T * c_in_pad * cdtype.itemsize            # in, dbl-buffered
                     + 2 * T_out * c_out_pad * jnp.dtype(out_dtype).itemsize  # out
                     + 4 * 2 * c_out_pad * 4)                      # f32 epilogue temps
    max_cols = max(128, min(16384, (vmem_budget_bytes // per_col_bytes) // 128 * 128))
    n_steps = _cdiv(B, max_cols)
    if n_steps == 1 and B >= 1024:
        n_steps = 2          # >=2 grid steps so "parallel" can use both TCs (v7x)
    b_tile = _round_up(_cdiv(B, n_steps), 128)
    B_pad = n_steps * b_tile
    assert b_tile % 128 == 0  # lane-dense blocks / unmasked stores

    # ---- wrapper glue: one transpose pass, NO im2col duplication ----
    # (N, C_in, V, T) -> (T, C_in, B); pad channels/columns to aligned sizes
    # (fuses with the transpose in XLA) -> flat (T*C_in_pad, B_pad).
    x_t = jnp.transpose(x, (3, 1, 0, 2)).reshape(T, C_in, B)
    if compute_dtype is not None:
        x_t = x_t.astype(cdtype)
    if c_in_pad != C_in or B_pad != B:
        x_t = jnp.pad(x_t, ((0, 0), (0, c_in_pad - C_in), (0, B_pad - B)))
    x2 = x_t.reshape(T * c_in_pad, B_pad)

    # Weights: (C_out, C_in, 1, K) -> (K, C_out_pad, C_in_pad); stack filter/gate
    # along the output-row axis so the accumulator split is sublane-tile aligned.
    def _prep(w):
        w = jnp.transpose(w[:, :, 0, :], (2, 0, 1))            # (K, C_out, C_in)
        return jnp.pad(w, ((0, 0), (0, c_out_pad - C_out), (0, c_in_pad - C_in)))

    w_all = jnp.concatenate([_prep(w_filter), _prep(w_gate)], axis=1).astype(cdtype)
    b_all = jnp.concatenate([
        jnp.pad(b_filter, (0, c_out_pad - C_out)),
        jnp.pad(b_gate, (0, c_out_pad - C_out)),
    ]).reshape(2 * c_out_pad, 1).astype(jnp.float32)

    kernel = functools.partial(
        _gated_tcn_kernel, k_taps=K, dilation=dilation, t_out=T_out,
        c_in_pad=c_in_pad, c_out_pad=c_out_pad)

    out_flat = pl.pallas_call(
        kernel,
        out_shape=jax.ShapeDtypeStruct((T_out * c_out_pad, B_pad), out_dtype),
        grid_spec=pltpu.PrefetchScalarGridSpec(
            num_scalar_prefetch=0,
            grid=(B_pad // b_tile,),
            in_specs=[
                pl.BlockSpec((T * c_in_pad, b_tile), lambda i: (0, i)),      # streamed
                pl.BlockSpec((K, 2 * c_out_pad, c_in_pad), lambda i: (0, 0, 0)),  # resident
                pl.BlockSpec((2 * c_out_pad, 1), lambda i: (0, 0)),               # resident
            ],
            out_specs=pl.BlockSpec((T_out * c_out_pad, b_tile), lambda i: (0, i)),
        ),
        compiler_params=pltpu.CompilerParams(
            dimension_semantics=("parallel",),
            vmem_limit_bytes=48 * 1024 * 1024,
        ),
    )(x2, w_all, b_all)

    # Single output transpose back to the PyTorch layout (N, C_out, V, T_out).
    # (Required by this module's NCHW output contract; a full STSGCN model would
    #  keep the lane-dense layout between blocks and transpose once at the end.)
    out = out_flat.reshape(T_out, c_out_pad, B_pad)[:, :C_out, :B]
    out = out.reshape(T_out, C_out, N, V)
    return jnp.transpose(out, (2, 1, 3, 0))


def gated_tcn_reference(x, w_filter, b_filter, w_gate, b_gate, *, dilation: int):
    """Pure-JAX reference matching PyTorch Conv2d((1,K), dilation) semantics."""
    def conv(w, b):
        out = jax.lax.conv_general_dilated(
            x.astype(jnp.float32), w.astype(jnp.float32),
            window_strides=(1, 1), padding='VALID',
            rhs_dilation=(1, dilation),
            dimension_numbers=('NCHW', 'OIHW', 'NCHW'))
        return out + b.reshape(1, -1, 1, 1)

    return jnp.tanh(conv(w_filter, b_filter)) * jax.nn.sigmoid(
        conv(w_gate, b_gate))


if __name__ == "__main__":
    # Small, module-consistent shapes.
    N, C_in, V, T = 2, 4, 16, 16
    C_out, K, dilation = 4, 2, 1

    key = jax.random.PRNGKey(0)
    kx, kwf, kbf, kwg, kbg = jax.random.split(key, 5)

    x = jax.random.normal(kx, (N, C_in, V, T), jnp.float32)
    # Deterministic parameter init (Conv2d shapes: (C_out, C_in, 1, K), (C_out,)).
    fan_in = C_in * 1 * K
    bound = 1.0 / np.sqrt(fan_in)
    w_filter = jax.random.uniform(kwf, (C_out, C_in, 1, K), jnp.float32,
                                  -bound, bound)
    b_filter = jax.random.uniform(kbf, (C_out,), jnp.float32, -bound, bound)
    w_gate = jax.random.uniform(kwg, (C_out, C_in, 1, K), jnp.float32,
                                -bound, bound)
    b_gate = jax.random.uniform(kbg, (C_out,), jnp.float32, -bound, bound)

    out = gated_tcn(x, w_filter, b_filter, w_gate, b_gate, dilation=dilation)
    out = jax.block_until_ready(out)

    ref = gated_tcn_reference(x, w_filter, b_filter, w_gate, b_gate,
                              dilation=dilation)
    np.testing.assert_allclose(np.asarray(out), np.asarray(ref),
                               rtol=1e-5, atol=1e-5)
    assert out.shape == (N, C_out, V, T - dilation * (K - 1))
    print("KERNEL_OK")
</pallas_src>

<mosaic_0001>
module attributes {stable_mosaic.version = 11 : i64} {
  func.func @_gated_tcn_kernel(%arg0: i32, %arg1: memref<128x128xf32, #tpu.memory_space<vmem>>, %arg2: memref<2x16x8xf32, #tpu.memory_space<vmem>>, %arg3: memref<16x1xf32, #tpu.memory_space<vmem>>, %arg4: memref<120x128xf32, #tpu.memory_space<vmem>>) attributes {dimension_semantics = [#tpu.dimension_semantics<parallel>], iteration_bounds = array<i64: 1>, scalar_prefetch = 0 : i64, scratch_operands = 0 : i64, tpu.core_type = #tpu.core_type<tc>, window_params = [{transform_indices = @transform_0, window_bounds = array<i64: 128, 128>}, {pipeline_mode = #tpu.pipeline_mode<synchronous>, transform_indices = @transform_1, window_bounds = array<i64: 2, 16, 8>}, {pipeline_mode = #tpu.pipeline_mode<synchronous>, transform_indices = @transform_2, window_bounds = array<i64: 16, 1>}, {transform_indices = @transform_3, window_bounds = array<i64: 120, 128>}]} {
    %c0 = arith.constant 0 : index
    %c0_0 = arith.constant 0 : index
    %0 = vector.load %arg3[%c0, %c0_0] : memref<16x1xf32, #tpu.memory_space<vmem>>, vector<16x1xf32>
    %c0_1 = arith.constant 0 : index
    %c0_2 = arith.constant 0 : index
    %c0_3 = arith.constant 0 : index
    %1 = vector.load %arg2[%c0_1, %c0_2, %c0_3] : memref<2x16x8xf32, #tpu.memory_space<vmem>>, vector<1x16x8xf32>
    %2 = vector.shape_cast %1 : vector<1x16x8xf32> to vector<16x8xf32>
    %c1 = arith.constant 1 : index
    %c0_4 = arith.constant 0 : index
    %c0_5 = arith.constant 0 : index
    %3 = vector.load %arg2[%c1, %c0_4, %c0_5] : memref<2x16x8xf32, #tpu.memory_space<vmem>>, vector<1x16x8xf32>
    %4 = vector.shape_cast %3 : vector<1x16x8xf32> to vector<16x8xf32>
    %c0_6 = arith.constant 0 : index
    %c0_7 = arith.constant 0 : index
    %5 = vector.load %arg1[%c0_6, %c0_7] : memref<128x128xf32, #tpu.memory_space<vmem>>, vector<8x128xf32>
    %cst = arith.constant dense<0.000000e+00> : vector<16x128xf32>
    %6 = tpu.matmul %2, %5, %cst {dimension_numbers = #tpu.dot_dimension_numbers<[1], [0], [0], [1], [0, 0, 1, 1], [], []>} : vector<16x8xf32>, vector<8x128xf32>, vector<16x128xf32> -> vector<16x128xf32>
    %7 = vector.broadcast %0 : vector<16x1xf32> to vector<16x128xf32>
    %8 = arith.addf %7, %6 : vector<16x128xf32>
    %c8 = arith.constant 8 : index
    %c0_8 = arith.constant 0 : index
    %9 = vector.load %arg1[%c8, %c0_8] : memref<128x128xf32, #tpu.memory_space<vmem>>, vector<8x128xf32>
    %cst_9 = arith.constant dense<0.000000e+00> : vector<16x128xf32>
    %10 = tpu.matmul %4, %9, %cst_9 {dimension_numbers = #tpu.dot_dimension_numbers<[1], [0], [0], [1], [0, 0, 1, 1], [], []>} : vector<16x8xf32>, vector<8x128xf32>, vector<16x128xf32> -> vector<16x128xf32>
    %11 = arith.addf %8, %10 : vector<16x128xf32>
    %12 = vector.extract_strided_slice %11 {offsets = [0, 0], sizes = [8, 128], strides = [1, 1]} : vector<16x128xf32> to vector<8x128xf32>
    %13 = math.tanh %12 : vector<8x128xf32>
    %14 = vector.extract_strided_slice %11 {offsets = [8, 0], sizes = [8, 128], strides = [1, 1]} : vector<16x128xf32> to vector<8x128xf32>
    %cst_10 = arith.constant 5.000000e-01 : f32
    %15 = vector.broadcast %cst_10 : f32 to vector<8x128xf32>
    %16 = arith.mulf %15, %14 : vector<8x128xf32>
    %17 = math.tanh %16 : vector<8x128xf32>
    %cst_11 = arith.constant 5.000000e-01 : f32
    %18 = vector.broadcast %cst_11 : f32 to vector<8x128xf32>
    %19 = arith.mulf %18, %17 : vector<8x128xf32>
    %cst_12 = arith.constant 5.000000e-01 : f32
    %20 = vector.broadcast %cst_12 : f32 to vector<8x128xf32>
    %21 = arith.addf %19, %20 : vector<8x128xf32>
    %22 = arith.mulf %13, %21 : vector<8x128xf32>
    %c0_13 = arith.constant 0 : index
    %c0_14 = arith.constant 0 : index
    %23 = vector.load %arg4[%c0_13, %c0_14] : memref<120x128xf32, #tpu.memory_space<vmem>>, vector<8x128xf32>
    tpu.vector_store %arg4[%c0_13, %c0_14], %22 {strides = array<i32>} : memref<120x128xf32, #tpu.memory_space<vmem>>, vector<8x128xf32>,
    %c8_15 = arith.constant 8 : index
    %c0_16 = arith.constant 0 : index
    %24 = vector.load %arg1[%c8_15, %c0_16] : memref<128x128xf32, #tpu.memory_space<vmem>>, vector<8x128xf32>
    %cst_17 = arith.constant dense<0.000000e+00> : vector<16x128xf32>
    %25 = tpu.matmul %2, %24, %cst_17 {dimension_numbers = #tpu.dot_dimension_numbers<[1], [0], [0], [1], [0, 0, 1, 1], [], []>} : vector<16x8xf32>, vector<8x128xf32>, vector<16x128xf32> -> vector<16x128xf32>
    %26 = vector.broadcast %0 : vector<16x1xf32> to vector<16x128xf32>
    %27 = arith.addf %26, %25 : vector<16x128xf32>
    %c16 = arith.constant 16 : index
    %c0_18 = arith.constant 0 : index
    %28 = vector.load %arg1[%c16, %c0_18] : memref<128x128xf32, #tpu.memory_space<vmem>>, vector<8x128xf32>
    %cst_19 = arith.constant dense<0.000000e+00> : vector<16x128xf32>
    %29 = tpu.matmul %4, %28, %cst_19 {dimension_numbers = #tpu.dot_dimension_numbers<[1], [0], [0], [1], [0, 0, 1, 1], [], []>} : vector<16x8xf32>, vector<8x128xf32>, vector<16x128xf32> -> vector<16x128xf32>
    %30 = arith.addf %27, %29 : vector<16x128xf32>
    %31 = vector.extract_strided_slice %30 {offsets = [0, 0], sizes = [8, 128], strides = [1, 1]} : vector<16x128xf32> to vector<8x128xf32>
    %32 = math.tanh %31 : vector<8x128xf32>
    %33 = vector.extract_strided_slice %30 {offsets = [8, 0], sizes = [8, 128], strides = [1, 1]} : vector<16x128xf32> to vector<8x128xf32>
    %cst_20 = arith.constant 5.000000e-01 : f32
    %34 = vector.broadcast %cst_20 : f32 to vector<8x128xf32>
    %35 = arith.mulf %34, %33 : vector<8x128xf32>
    %36 = math.tanh %35 : vector<8x128xf32>
    %cst_21 = arith.constant 5.000000e-01 : f32
    %37 = vector.broadcast %cst_21 : f32 to vector<8x128xf32>
    %38 = arith.mulf %37, %36 : vector<8x128xf32>
    %cst_22 = arith.constant 5.000000e-01 : f32
    %39 = vector.broadcast %cst_22 : f32 to vector<8x128xf32>
    %40 = arith.addf %38, %39 : vector<8x128xf32>
    %41 = arith.mulf %32, %40 : vector<8x128xf32>
    %c8_23 = arith.constant 8 : index
    %c0_24 = arith.constant 0 : index
    %42 = vector.load %arg4[%c8_23, %c0_24] : memref<120x128xf32, #tpu.memory_space<vmem>>, vector<8x128xf32>
    tpu.vector_store %arg4[%c8_23, %c0_24], %41 {strides = array<i32>} : memref<120x128xf32, #tpu.memory_space<vmem>>, vector<8x128xf32>,
    %c16_25 = arith.constant 16 : index
    %c0_26 = arith.constant 0 : index
    %43 = vector.load %arg1[%c16_25, %c0_26] : memref<128x128xf32, #tpu.memory_space<vmem>>, vector<8x128xf32>
    %cst_27 = arith.constant dense<0.000000e+00> : vector<16x128xf32>
    %44 = tpu.matmul %2, %43, %cst_27 {dimension_numbers = #tpu.dot_dimension_numbers<[1], [0], [0], [1], [0, 0, 1, 1], [], []>} : vector<16x8xf32>, vector<8x128xf32>, vector<16x128xf32> -> vector<16x128xf32>
    %45 = vector.broadcast %0 : vector<16x1xf32> to vector<16x128xf32>
    %46 = arith.addf %45, %44 : vector<16x128xf32>
    %c24 = arith.constant 24 : index
    %c0_28 = arith.constant 0 : index
    %47 = vector.load %arg1[%c24, %c0_28] : memref<128x128xf32, #tpu.memory_space<vmem>>, vector<8x128xf32>
    %cst_29 = arith.constant dense<0.000000e+00> : vector<16x128xf32>
    %48 = tpu.matmul %4, %47, %cst_29 {dimension_numbers = #tpu.dot_dimension_numbers<[1], [0], [0], [1], [0, 0, 1, 1], [], []>} : vector<16x8xf32>, vector<8x128xf32>, vector<16x128xf32> -> vector<16x128xf32>
    %49 = arith.addf %46, %48 : vector<16x128xf32>
    %50 = vector.extract_strided_slice %49 {offsets = [0, 0], sizes = [8, 128], strides = [1, 1]} : vector<16x128xf32> to vector<8x128xf32>
    %51 = math.tanh %50 : vector<8x128xf32>
    %52 = vector.extract_strided_slice %49 {offsets = [8, 0], sizes = [8, 128], strides = [1, 1]} : vector<16x128xf32> to vector<8x128xf32>
    %cst_30 = arith.constant 5.000000e-01 : f32
    %53 = vector.broadcast %cst_30 : f32 to vector<8x128xf32>
    %54 = arith.mulf %53, %52 : vector<8x128xf32>
    %55 = math.tanh %54 : vector<8x128xf32>
    %cst_31 = arith.constant 5.000000e-01 : f32
    %56 = vector.broadcast %cst_31 : f32 to vector<8x128xf32>
    %57 = arith.mulf %56, %55 : vector<8x128xf32>
    %cst_32 = arith.constant 5.000000e-01 : f32
    %58 = vector.broadcast %cst_32 : f32 to vector<8x128xf32>
    %59 = arith.addf %57, %58 : vector<8x128xf32>
    %60 = arith.mulf %51, %59 : vector<8x128xf32>
    %c16_33 = arith.constant 16 : index
    %c0_34 = arith.constant 0 : index
    %61 = vector.load %arg4[%c16_33, %c0_34] : memref<120x128xf32, #tpu.memory_space<vmem>>, vector<8x128xf32>
    tpu.vector_store %arg4[%c16_33, %c0_34], %60 {strides = array<i32>} : memref<120x128xf32, #tpu.memory_space<vmem>>, vector<8x128xf32>,
    %c24_35 = arith.constant 24 : index
    %c0_36 = arith.constant 0 : index
    %62 = vector.load %arg1[%c24_35, %c0_36] : memref<128x128xf32, #tpu.memory_space<vmem>>, vector<8x128xf32>
    %cst_37 = arith.constant dense<0.000000e+00> : vector<16x128xf32>
    %63 = tpu.matmul %2, %62, %cst_37 {dimension_numbers = #tpu.dot_dimension_numbers<[1], [0], [0], [1], [0, 0, 1, 1], [], []>} : vector<16x8xf32>, vector<8x128xf32>, vector<16x128xf32> -> vector<16x128xf32>
    %64 = vector.broadcast %0 : vector<16x1xf32> to vector<16x128xf32>
    %65 = arith.addf %64, %63 : vector<16x128xf32>
    %c32 = arith.constant 32 : index
    %c0_38 = arith.constant 0 : index
    %66 = vector.load %arg1[%c32, %c0_38] : memref<128x128xf32, #tpu.memory_space<vmem>>, vector<8x128xf32>
    %cst_39 = arith.constant dense<0.000000e+00> : vector<16x128xf32>
    %67 = tpu.matmul %4, %66, %cst_39 {dimension_numbers = #tpu.dot_dimension_numbers<[1], [0], [0], [1], [0, 0, 1, 1], [], []>} : vector<16x8xf32>, vector<8x128xf32>, vector<16x128xf32> -> vector<16x128xf32>
    %68 = arith.addf %65, %67 : vector<16x128xf32>
    %69 = vector.extract_strided_slice %68 {offsets = [0, 0], sizes = [8, 128], strides = [1, 1]} : vector<16x128xf32> to vector<8x128xf32>
    %70 = math.tanh %69 : vector<8x128xf32>
    %71 = vector.extract_strided_slice %68 {offsets = [8, 0], sizes = [8, 128], strides = [1, 1]} : vector<16x128xf32> to vector<8x128xf32>
    %cst_40 = arith.constant 5.000000e-01 : f32
    %72 = vector.broadcast %cst_40 : f32 to vector<8x128xf32>
    %73 = arith.mulf %72, %71 : vector<8x128xf32>
    %74 = math.tanh %73 : vector<8x128xf32>
    %cst_41 = arith.constant 5.000000e-01 : f32
    %75 = vector.broadcast %cst_41 : f32 to vector<8x128xf32>
    %76 = arith.mulf %75, %74 : vector<8x128xf32>
    %cst_42 = arith.constant 5.000000e-01 : f32
    %77 = vector.broadcast %cst_42 : f32 to vector<8x128xf32>
    %78 = arith.addf %76, %77 : vector<8x128xf32>
    %79 = arith.mulf %70, %78 : vector<8x128xf32>
    %c24_43 = arith.constant 24 : index
    %c0_44 = arith.constant 0 : index
    %80 = vector.load %arg4[%c24_43, %c0_44] : memref<120x128xf32, #tpu.memory_space<vmem>>, vector<8x128xf32>
    tpu.vector_store %arg4[%c24_43, %c0_44], %79 {strides = array<i32>} : memref<120x128xf32, #tpu.memory_space<vmem>>, vector<8x128xf32>,
    %c32_45 = arith.constant 32 : index
    %c0_46 = arith.constant 0 : index
    %81 = vector.load %arg1[%c32_45, %c0_46] : memref<128x128xf32, #tpu.memory_space<vmem>>, vector<8x128xf32>
    %cst_47 = arith.constant dense<0.000000e+00> : vector<16x128xf32>
    %82 = tpu.matmul %2, %81, %cst_47 {dimension_numbers = #tpu.dot_dimension_numbers<[1], [0], [0], [1], [0, 0, 1, 1], [], []>} : vector<16x8xf32>, vector<8x128xf32>, vector<16x128xf32> -> vector<16x128xf32>
    %83 = vector.broadcast %0 : vector<16x1xf32> to vector<16x128xf32>
    %84 = arith.addf %83, %82 : vector<16x128xf32>
    %c40 = arith.constant 40 : index
    %c0_48 = arith.constant 0 : index
    %85 = vector.load %arg1[%c40, %c0_48] : memref<128x128xf32, #tpu.memory_space<vmem>>, vector<8x128xf32>
    %cst_49 = arith.constant dense<0.000000e+00> : vector<16x128xf32>
    %86 = tpu.matmul %4, %85, %cst_49 {dimension_numbers = #tpu.dot_dimension_numbers<[1], [0], [0], [1], [0, 0, 1, 1], [], []>} : vector<16x8xf32>, vector<8x128xf32>, vector<16x128xf32> -> vector<16x128xf32>
    %87 = arith.addf %84, %86 : vector<16x128xf32>
    %88 = vector.extract_strided_slice %87 {offsets = [0, 0], sizes = [8, 128], strides = [1, 1]} : vector<16x128xf32> to vector<8x128xf32>
    %89 = math.tanh %88 : vector<8x128xf32>
    %90 = vector.extract_strided_slice %87 {offsets = [8, 0], sizes = [8, 128], strides = [1, 1]} : vector<16x128xf32> to vector<8x128xf32>
    %cst_50 = arith.constant 5.000000e-01 : f32
    %91 = vector.broadcast %cst_50 : f32 to vector<8x128xf32>
    %92 = arith.mulf %91, %90 : vector<8x128xf32>
    %93 = math.tanh %92 : vector<8x128xf32>
    %cst_51 = arith.constant 5.000000e-01 : f32
    %94 = vector.broadcast %cst_51 : f32 to vector<8x128xf32>
    %95 = arith.mulf %94, %93 : vector<8x128xf32>
    %cst_52 = arith.constant 5.000000e-01 : f32
    %96 = vector.broadcast %cst_52 : f32 to vector<8x128xf32>
    %97 = arith.addf %95, %96 : vector<8x128xf32>
    %98 = arith.mulf %89, %97 : vector<8x128xf32>
    %c32_53 = arith.constant 32 : index
    %c0_54 = arith.constant 0 : index
    %99 = vector.load %arg4[%c32_53, %c0_54] : memref<120x128xf32, #tpu.memory_space<vmem>>, vector<8x128xf32>
    tpu.vector_store %arg4[%c32_53, %c0_54], %98 {strides = array<i32>} : memref<120x128xf32, #tpu.memory_space<vmem>>, vector<8x128xf32>,
    %c40_55 = arith.constant 40 : index
    %c0_56 = arith.constant 0 : index
    %100 = vector.load %arg1[%c40_55, %c0_56] : memref<128x128xf32, #tpu.memory_space<vmem>>, vector<8x128xf32>
    %cst_57 = arith.constant dense<0.000000e+00> : vector<16x128xf32>
    %101 = tpu.matmul %2, %100, %cst_57 {dimension_numbers = #tpu.dot_dimension_numbers<[1], [0], [0], [1], [0, 0, 1, 1], [], []>} : vector<16x8xf32>, vector<8x128xf32>, vector<16x128xf32> -> vector<16x128xf32>
    %102 = vector.broadcast %0 : vector<16x1xf32> to vector<16x128xf32>
    %103 = arith.addf %102, %101 : vector<16x128xf32>
    %c48 = arith.constant 48 : index
    %c0_58 = arith.constant 0 : index
    %104 = vector.load %arg1[%c48, %c0_58] : memref<128x128xf32, #tpu.memory_space<vmem>>, vector<8x128xf32>
    %cst_59 = arith.constant dense<0.000000e+00> : vector<16x128xf32>
    %105 = tpu.matmul %4, %104, %cst_59 {dimension_numbers = #tpu.dot_dimension_numbers<[1], [0], [0], [1], [0, 0, 1, 1], [], []>} : vector<16x8xf32>, vector<8x128xf32>, vector<16x128xf32> -> vector<16x128xf32>
    %106 = arith.addf %103, %105 : vector<16x128xf32>
    %107 = vector.extract_strided_slice %106 {offsets = [0, 0], sizes = [8, 128], strides = [1, 1]} : vector<16x128xf32> to vector<8x128xf32>
    %108 = math.tanh %107 : vector<8x128xf32>
    %109 = vector.extract_strided_slice %106 {offsets = [8, 0], sizes = [8, 128], strides = [1, 1]} : vector<16x128xf32> to vector<8x128xf32>
    %cst_60 = arith.constant 5.000000e-01 : f32
    %110 = vector.broadcast %cst_60 : f32 to vector<8x128xf32>
    %111 = arith.mulf %110, %109 : vector<8x128xf32>
    %112 = math.tanh %111 : vector<8x128xf32>
    %cst_61 = arith.constant 5.000000e-01 : f32
    %113 = vector.broadcast %cst_61 : f32 to vector<8x128xf32>
    %114 = arith.mulf %113, %112 : vector<8x128xf32>
    %cst_62 = arith.constant 5.000000e-01 : f32
    %115 = vector.broadcast %cst_62 : f32 to vector<8x128xf32>
    %116 = arith.addf %114, %115 : vector<8x128xf32>
    %117 = arith.mulf %108, %116 : vector<8x128xf32>
    %c40_63 = arith.constant 40 : index
    %c0_64 = arith.constant 0 : index
    %118 = vector.load %arg4[%c40_63, %c0_64] : memref<120x128xf32, #tpu.memory_space<vmem>>, vector<8x128xf32>
    tpu.vector_store %arg4[%c40_63, %c0_64], %117 {strides = array<i32>} : memref<120x128xf32, #tpu.memory_space<vmem>>, vector<8x128xf32>,
    %c48_65 = arith.constant 48 : index
    %c0_66 = arith.constant 0 : index
    %119 = vector.load %arg1[%c48_65, %c0_66] : memref<128x128xf32, #tpu.memory_space<vmem>>, vector<8x128xf32>
    %cst_67 = arith.constant dense<0.000000e+00> : vector<16x128xf32>
    %120 = tpu.matmul %2, %119, %cst_67 {dimension_numbers = #tpu.dot_dimension_numbers<[1], [0], [0], [1], [0, 0, 1, 1], [], []>} : vector<16x8xf32>, vector<8x128xf32>, vector<16x128xf32> -> vector<16x128xf32>
    %121 = vector.broadcast %0 : vector<16x1xf32> to vector<16x128xf32>
    %122 = arith.addf %121, %120 : vector<16x128xf32>
    %c56 = arith.constant 56 : index
    %c0_68 = arith.constant 0 : index
    %123 = vector.load %arg1[%c56, %c0_68] : memref<128x128xf32, #tpu.memory_space<vmem>>, vector<8x128xf32>
    %cst_69 = arith.constant dense<0.000000e+00> : vector<16x128xf32>
    %124 = tpu.matmul %4, %123, %cst_69 {dimension_numbers = #tpu.dot_dimension_numbers<[1], [0], [0], [1], [0, 0, 1, 1], [], []>} : vector<16x8xf32>, vector<8x128xf32>, vector<16x128xf32> -> vector<16x128xf32>
    %125 = arith.addf %122, %124 : vector<16x128xf32>
    %126 = vector.extract_strided_slice %125 {offsets = [0, 0], sizes = [8, 128], strides = [1, 1]} : vector<16x128xf32> to vector<8x128xf32>
    %127 = math.tanh %126 : vector<8x128xf32>
    %128 = vector.extract_strided_slice %125 {offsets = [8, 0], sizes = [8, 128], strides = [1, 1]} : vector<16x128xf32> to vector<8x128xf32>
    %cst_70 = arith.constant 5.000000e-01 : f32
    %129 = vector.broadcast %cst_70 : f32 to vector<8x128xf32>
    %130 = arith.mulf %129, %128 : vector<8x128xf32>
    %131 = math.tanh %130 : vector<8x128xf32>
    %cst_71 = arith.constant 5.000000e-01 : f32
    %132 = vector.broadcast %cst_71 : f32 to vector<8x128xf32>
    %133 = arith.mulf %132, %131 : vector<8x128xf32>
    %cst_72 = arith.constant 5.000000e-01 : f32
    %134 = vector.broadcast %cst_72 : f32 to vector<8x128xf32>
    %135 = arith.addf %133, %134 : vector<8x128xf32>
    %136 = arith.mulf %127, %135 : vector<8x128xf32>
    %c48_73 = arith.constant 48 : index
    %c0_74 = arith.constant 0 : index
    %137 = vector.load %arg4[%c48_73, %c0_74] : memref<120x128xf32, #tpu.memory_space<vmem>>, vector<8x128xf32>
    tpu.vector_store %arg4[%c48_73, %c0_74], %136 {strides = array<i32>} : memref<120x128xf32, #tpu.memory_space<vmem>>, vector<8x128xf32>,
    %c56_75 = arith.constant 56 : index
    %c0_76 = arith.constant 0 : index
    %138 = vector.load %arg1[%c56_75, %c0_76] : memref<128x128xf32, #tpu.memory_space<vmem>>, vector<8x128xf32>
    %cst_77 = arith.constant dense<0.000000e+00> : vector<16x128xf32>
    %139 = tpu.matmul %2, %138, %cst_77 {dimension_numbers = #tpu.dot_dimension_numbers<[1], [0], [0], [1], [0, 0, 1, 1], [], []>} : vector<16x8xf32>, vector<8x128xf32>, vector<16x128xf32> -> vector<16x128xf32>
    %140 = vector.broadcast %0 : vector<16x1xf32> to vector<16x128xf32>
    %141 = arith.addf %140, %139 : vector<16x128xf32>
    %c64 = arith.constant 64 : index
    %c0_78 = arith.constant 0 : index
    %142 = vector.load %arg1[%c64, %c0_78] : memref<128x128xf32, #tpu.memory_space<vmem>>, vector<8x128xf32>
    %cst_79 = arith.constant dense<0.000000e+00> : vector<16x128xf32>
    %143 = tpu.matmul %4, %142, %cst_79 {dimension_numbers = #tpu.dot_dimension_numbers<[1], [0], [0], [1], [0, 0, 1, 1], [], []>} : vector<16x8xf32>, vector<8x128xf32>, vector<16x128xf32> -> vector<16x128xf32>
    %144 = arith.addf %141, %143 : vector<16x128xf32>
    %145 = vector.extract_strided_slice %144 {offsets = [0, 0], sizes = [8, 128], strides = [1, 1]} : vector<16x128xf32> to vector<8x128xf32>
    %146 = math.tanh %145 : vector<8x128xf32>
    %147 = vector.extract_strided_slice %144 {offsets = [8, 0], sizes = [8, 128], strides = [1, 1]} : vector<16x128xf32> to vector<8x128xf32>
    %cst_80 = arith.constant 5.000000e-01 : f32
    %148 = vector.broadcast %cst_80 : f32 to vector<8x128xf32>
    %149 = arith.mulf %148, %147 : vector<8x128xf32>
    %150 = math.tanh %149 : vector<8x128xf32>
    %cst_81 = arith.constant 5.000000e-01 : f32
    %151 = vector.broadcast %cst_81 : f32 to vector<8x128xf32>
    %152 = arith.mulf %151, %150 : vector<8x128xf32>
    %cst_82 = arith.constant 5.000000e-01 : f32
    %153 = vector.broadcast %cst_82 : f32 to vector<8x128xf32>
    %154 = arith.addf %152, %153 : vector<8x128xf32>
    %155 = arith.mulf %146, %154 : vector<8x128xf32>
    %c56_83 = arith.constant 56 : index
    %c0_84 = arith.constant 0 : index
    %156 = vector.load %arg4[%c56_83, %c0_84] : memref<120x128xf32, #tpu.memory_space<vmem>>, vector<8x128xf32>
    tpu.vector_store %arg4[%c56_83, %c0_84], %155 {strides = array<i32>} : memref<120x128xf32, #tpu.memory_space<vmem>>, vector<8x128xf32>,
    %c64_85 = arith.constant 64 : index
    %c0_86 = arith.constant 0 : index
    %157 = vector.load %arg1[%c64_85, %c0_86] : memref<128x128xf32, #tpu.memory_space<vmem>>, vector<8x128xf32>
    %cst_87 = arith.constant dense<0.000000e+00> : vector<16x128xf32>
    %158 = tpu.matmul %2, %157, %cst_87 {dimension_numbers = #tpu.dot_dimension_numbers<[1], [0], [0], [1], [0, 0, 1, 1], [], []>} : vector<16x8xf32>, vector<8x128xf32>, vector<16x128xf32> -> vector<16x128xf32>
    %159 = vector.broadcast %0 : vector<16x1xf32> to vector<16x128xf32>
    %160 = arith.addf %159, %158 : vector<16x128xf32>
    %c72 = arith.constant 72 : index
    %c0_88 = arith.constant 0 : index
    %161 = vector.load %arg1[%c72, %c0_88] : memref<128x128xf32, #tpu.memory_space<vmem>>, vector<8x128xf32>
    %cst_89 = arith.constant dense<0.000000e+00> : vector<16x128xf32>
    %162 = tpu.matmul %4, %161, %cst_89 {dimension_numbers = #tpu.dot_dimension_numbers<[1], [0], [0], [1], [0, 0, 1, 1], [], []>} : vector<16x8xf32>, vector<8x128xf32>, vector<16x128xf32> -> vector<16x128xf32>
    %163 = arith.addf %160, %162 : vector<16x128xf32>
    %164 = vector.extract_strided_slice %163 {offsets = [0, 0], sizes = [8, 128], strides = [1, 1]} : vector<16x128xf32> to vector<8x128xf32>
    %165 = math.tanh %164 : vector<8x128xf32>
    %166 = vector.extract_strided_slice %163 {offsets = [8, 0], sizes = [8, 128], strides = [1, 1]} : vector<16x128xf32> to vector<8x128xf32>
    %cst_90 = arith.constant 5.000000e-01 : f32
    %167 = vector.broadcast %cst_90 : f32 to vector<8x128xf32>
    %168 = arith.mulf %167, %166 : vector<8x128xf32>
    %169 = math.tanh %168 : vector<8x128xf32>
    %cst_91 = arith.constant 5.000000e-01 : f32
    %170 = vector.broadcast %cst_91 : f32 to vector<8x128xf32>
    %171 = arith.mulf %170, %169 : vector<8x128xf32>
    %cst_92 = arith.constant 5.000000e-01 : f32
    %172 = vector.broadcast %cst_92 : f32 to vector<8x128xf32>
    %173 = arith.addf %171, %172 : vector<8x128xf32>
    %174 = arith.mulf %165, %173 : vector<8x128xf32>
    %c64_93 = arith.constant 64 : index
    %c0_94 = arith.constant 0 : index
    %175 = vector.load %arg4[%c64_93, %c0_94] : memref<120x128xf32, #tpu.memory_space<vmem>>, vector<8x128xf32>
    tpu.vector_store %arg4[%c64_93, %c0_94], %174 {strides = array<i32>} : memref<120x128xf32, #tpu.memory_space<vmem>>, vector<8x128xf32>,
    %c72_95 = arith.constant 72 : index
    %c0_96 = arith.constant 0 : index
    %176 = vector.load %arg1[%c72_95, %c0_96] : memref<128x128xf32, #tpu.memory_space<vmem>>, vector<8x128xf32>
    %cst_97 = arith.constant dense<0.000000e+00> : vector<16x128xf32>
    %177 = tpu.matmul %2, %176, %cst_97 {dimension_numbers = #tpu.dot_dimension_numbers<[1], [0], [0], [1], [0, 0, 1, 1], [], []>} : vector<16x8xf32>, vector<8x128xf32>, vector<16x128xf32> -> vector<16x128xf32>
    %178 = vector.broadcast %0 : vector<16x1xf32> to vector<16x128xf32>
    %179 = arith.addf %178, %177 : vector<16x128xf32>
    %c80 = arith.constant 80 : index
    %c0_98 = arith.constant 0 : index
    %180 = vector.load %arg1[%c80, %c0_98] : memref<128x128xf32, #tpu.memory_space<vmem>>, vector<8x128xf32>
    %cst_99 = arith.constant dense<0.000000e+00> : vector<16x128xf32>
    %181 = tpu.matmul %4, %180, %cst_99 {dimension_numbers = #tpu.dot_dimension_numbers<[1], [0], [0], [1], [0, 0, 1, 1], [], []>} : vector<16x8xf32>, vector<8x128xf32>, vector<16x128xf32> -> vector<16x128xf32>
    %182 = arith.addf %179, %181 : vector<16x128xf32>
    %183 = vector.extract_strided_slice %182 {offsets = [0, 0], sizes = [8, 128], strides = [1, 1]} : vector<16x128xf32> to vector<8x128xf32>
    %184 = math.tanh %183 : vector<8x128xf32>
    %185 = vector.extract_strided_slice %182 {offsets = [8, 0], sizes = [8, 128], strides = [1, 1]} : vector<16x128xf32> to vector<8x128xf32>
    %cst_100 = arith.constant 5.000000e-01 : f32
    %186 = vector.broadcast %cst_100 : f32 to vector<8x128xf32>
    %187 = arith.mulf %186, %185 : vector<8x128xf32>
    %188 = math.tanh %187 : vector<8x128xf32>
    %cst_101 = arith.constant 5.000000e-01 : f32
    %189 = vector.broadcast %cst_101 : f32 to vector<8x128xf32>
    %190 = arith.mulf %189, %188 : vector<8x128xf32>
    %cst_102 = arith.constant 5.000000e-01 : f32
    %191 = vector.broadcast %cst_102 : f32 to vector<8x128xf32>
    %192 = arith.addf %190, %191 : vector<8x128xf32>
    %193 = arith.mulf %184, %192 : vector<8x128xf32>
    %c72_103 = arith.constant 72 : index
    %c0_104 = arith.constant 0 : index
    %194 = vector.load %arg4[%c72_103, %c0_104] : memref<120x128xf32, #tpu.memory_space<vmem>>, vector<8x128xf32>
    tpu.vector_store %arg4[%c72_103, %c0_104], %193 {strides = array<i32>} : memref<120x128xf32, #tpu.memory_space<vmem>>, vector<8x128xf32>,
    %c80_105 = arith.constant 80 : index
    %c0_106 = arith.constant 0 : index
    %195 = vector.load %arg1[%c80_105, %c0_106] : memref<128x128xf32, #tpu.memory_space<vmem>>, vector<8x128xf32>
    %cst_107 = arith.constant dense<0.000000e+00> : vector<16x128xf32>
    %196 = tpu.matmul %2, %195, %cst_107 {dimension_numbers = #tpu.dot_dimension_numbers<[1], [0], [0], [1], [0, 0, 1, 1], [], []>} : vector<16x8xf32>, vector<8x128xf32>, vector<16x128xf32> -> vector<16x128xf32>
    %197 = vector.broadcast %0 : vector<16x1xf32> to vector<16x128xf32>
    %198 = arith.addf %197, %196 : vector<16x128xf32>
    %c88 = arith.constant 88 : index
    %c0_108 = arith.constant 0 : index
    %199 = vector.load %arg1[%c88, %c0_108] : memref<128x128xf32, #tpu.memory_space<vmem>>, vector<8x128xf32>
    %cst_109 = arith.constant dense<0.000000e+00> : vector<16x128xf32>
    %200 = tpu.matmul %4, %199, %cst_109 {dimension_numbers = #tpu.dot_dimension_numbers<[1], [0], [0], [1], [0, 0, 1, 1], [], []>} : vector<16x8xf32>, vector<8x128xf32>, vector<16x128xf32> -> vector<16x128xf32>
    %201 = arith.addf %198, %200 : vector<16x128xf32>
    %202 = vector.extract_strided_slice %201 {offsets = [0, 0], sizes = [8, 128], strides = [1, 1]} : vector<16x128xf32> to vector<8x128xf32>
    %203 = math.tanh %202 : vector<8x128xf32>
    %204 = vector.extract_strided_slice %201 {offsets = [8, 0], sizes = [8, 128], strides = [1, 1]} : vector<16x128xf32> to vector<8x128xf32>
    %cst_110 = arith.constant 5.000000e-01 : f32
    %205 = vector.broadcast %cst_110 : f32 to vector<8x128xf32>
    %206 = arith.mulf %205, %204 : vector<8x128xf32>
    %207 = math.tanh %206 : vector<8x128xf32>
    %cst_111 = arith.constant 5.000000e-01 : f32
    %208 = vector.broadcast %cst_111 : f32 to vector<8x128xf32>
    %209 = arith.mulf %208, %207 : vector<8x128xf32>
    %cst_112 = arith.constant 5.000000e-01 : f32
    %210 = vector.broadcast %cst_112 : f32 to vector<8x128xf32>
    %211 = arith.addf %209, %210 : vector<8x128xf32>
    %212 = arith.mulf %203, %211 : vector<8x128xf32>
    %c80_113 = arith.constant 80 : index
    %c0_114 = arith.constant 0 : index
    %213 = vector.load %arg4[%c80_113, %c0_114] : memref<120x128xf32, #tpu.memory_space<vmem>>, vector<8x128xf32>
    tpu.vector_store %arg4[%c80_113, %c0_114], %212 {strides = array<i32>} : memref<120x128xf32, #tpu.memory_space<vmem>>, vector<8x128xf32>,
    %c88_115 = arith.constant 88 : index
    %c0_116 = arith.constant 0 : index
    %214 = vector.load %arg1[%c88_115, %c0_116] : memref<128x128xf32, #tpu.memory_space<vmem>>, vector<8x128xf32>
    %cst_117 = arith.constant dense<0.000000e+00> : vector<16x128xf32>
    %215 = tpu.matmul %2, %214, %cst_117 {dimension_numbers = #tpu.dot_dimension_numbers<[1], [0], [0], [1], [0, 0, 1, 1], [], []>} : vector<16x8xf32>, vector<8x128xf32>, vector<16x128xf32> -> vector<16x128xf32>
    %216 = vector.broadcast %0 : vector<16x1xf32> to vector<16x128xf32>
    %217 = arith.addf %216, %215 : vector<16x128xf32>
    %c96 = arith.constant 96 : index
    %c0_118 = arith.constant 0 : index
    %218 = vector.load %arg1[%c96, %c0_118] : memref<128x128xf32, #tpu.memory_space<vmem>>, vector<8x128xf32>
    %cst_119 = arith.constant dense<0.000000e+00> : vector<16x128xf32>
    %219 = tpu.matmul %4, %218, %cst_119 {dimension_numbers = #tpu.dot_dimension_numbers<[1], [0], [0], [1], [0, 0, 1, 1], [], []>} : vector<16x8xf32>, vector<8x128xf32>, vector<16x128xf32> -> vector<16x128xf32>
    %220 = arith.addf %217, %219 : vector<16x128xf32>
    %221 = vector.extract_strided_slice %220 {offsets = [0, 0], sizes = [8, 128], strides = [1, 1]} : vector<16x128xf32> to vector<8x128xf32>
    %222 = math.tanh %221 : vector<8x128xf32>
    %223 = vector.extract_strided_slice %220 {offsets = [8, 0], sizes = [8, 128], strides = [1, 1]} : vector<16x128xf32> to vector<8x128xf32>
    %cst_120 = arith.constant 5.000000e-01 : f32
    %224 = vector.broadcast %cst_120 : f32 to vector<8x128xf32>
    %225 = arith.mulf %224, %223 : vector<8x128xf32>
    %226 = math.tanh %225 : vector<8x128xf32>
    %cst_121 = arith.constant 5.000000e-01 : f32
    %227 = vector.broadcast %cst_121 : f32 to vector<8x128xf32>
    %228 = arith.mulf %227, %226 : vector<8x128xf32>
    %cst_122 = arith.constant 5.000000e-01 : f32
    %229 = vector.broadcast %cst_122 : f32 to vector<8x128xf32>
    %230 = arith.addf %228, %229 : vector<8x128xf32>
    %231 = arith.mulf %222, %230 : vector<8x128xf32>
    %c88_123 = arith.constant 88 : index
    %c0_124 = arith.constant 0 : index
    %232 = vector.load %arg4[%c88_123, %c0_124] : memref<120x128xf32, #tpu.memory_space<vmem>>, vector<8x128xf32>
    tpu.vector_store %arg4[%c88_123, %c0_124], %231 {strides = array<i32>} : memref<120x128xf32, #tpu.memory_space<vmem>>, vector<8x128xf32>,
    %c96_125 = arith.constant 96 : index
    %c0_126 = arith.constant 0 : index
    %233 = vector.load %arg1[%c96_125, %c0_126] : memref<128x128xf32, #tpu.memory_space<vmem>>, vector<8x128xf32>
    %cst_127 = arith.constant dense<0.000000e+00> : vector<16x128xf32>
    %234 = tpu.matmul %2, %233, %cst_127 {dimension_numbers = #tpu.dot_dimension_numbers<[1], [0], [0], [1], [0, 0, 1, 1], [], []>} : vector<16x8xf32>, vector<8x128xf32>, vector<16x128xf32> -> vector<16x128xf32>
    %235 = vector.broadcast %0 : vector<16x1xf32> to vector<16x128xf32>
    %236 = arith.addf %235, %234 : vector<16x128xf32>
    %c104 = arith.constant 104 : index
    %c0_128 = arith.constant 0 : index
    %237 = vector.load %arg1[%c104, %c0_128] : memref<128x128xf32, #tpu.memory_space<vmem>>, vector<8x128xf32>
    %cst_129 = arith.constant dense<0.000000e+00> : vector<16x128xf32>
    %238 = tpu.matmul %4, %237, %cst_129 {dimension_numbers = #tpu.dot_dimension_numbers<[1], [0], [0], [1], [0, 0, 1, 1], [], []>} : vector<16x8xf32>, vector<8x128xf32>, vector<16x128xf32> -> vector<16x128xf32>
    %239 = arith.addf %236, %238 : vector<16x128xf32>
    %240 = vector.extract_strided_slice %239 {offsets = [0, 0], sizes = [8, 128], strides = [1, 1]} : vector<16x128xf32> to vector<8x128xf32>
    %241 = math.tanh %240 : vector<8x128xf32>
    %242 = vector.extract_strided_slice %239 {offsets = [8, 0], sizes = [8, 128], strides = [1, 1]} : vector<16x128xf32> to vector<8x128xf32>
    %cst_130 = arith.constant 5.000000e-01 : f32
    %243 = vector.broadcast %cst_130 : f32 to vector<8x128xf32>
    %244 = arith.mulf %243, %242 : vector<8x128xf32>
    %245 = math.tanh %244 : vector<8x128xf32>
    %cst_131 = arith.constant 5.000000e-01 : f32
    %246 = vector.broadcast %cst_131 : f32 to vector<8x128xf32>
    %247 = arith.mulf %246, %245 : vector<8x128xf32>
    %cst_132 = arith.constant 5.000000e-01 : f32
    %248 = vector.broadcast %cst_132 : f32 to vector<8x128xf32>
    %249 = arith.addf %247, %248 : vector<8x128xf32>
    %250 = arith.mulf %241, %249 : vector<8x128xf32>
    %c96_133 = arith.constant 96 : index
    %c0_134 = arith.constant 0 : index
    %251 = vector.load %arg4[%c96_133, %c0_134] : memref<120x128xf32, #tpu.memory_space<vmem>>, vector<8x128xf32>
    tpu.vector_store %arg4[%c96_133, %c0_134], %250 {strides = array<i32>} : memref<120x128xf32, #tpu.memory_space<vmem>>, vector<8x128xf32>,
    %c104_135 = arith.constant 104 : index
    %c0_136 = arith.constant 0 : index
    %252 = vector.load %arg1[%c104_135, %c0_136] : memref<128x128xf32, #tpu.memory_space<vmem>>, vector<8x128xf32>
    %cst_137 = arith.constant dense<0.000000e+00> : vector<16x128xf32>
    %253 = tpu.matmul %2, %252, %cst_137 {dimension_numbers = #tpu.dot_dimension_numbers<[1], [0], [0], [1], [0, 0, 1, 1], [], []>} : vector<16x8xf32>, vector<8x128xf32>, vector<16x128xf32> -> vector<16x128xf32>
    %254 = vector.broadcast %0 : vector<16x1xf32> to vector<16x128xf32>
    %255 = arith.addf %254, %253 : vector<16x128xf32>
    %c112 = arith.constant 112 : index
    %c0_138 = arith.constant 0 : index
    %256 = vector.load %arg1[%c112, %c0_138] : memref<128x128xf32, #tpu.memory_space<vmem>>, vector<8x128xf32>
    %cst_139 = arith.constant dense<0.000000e+00> : vector<16x128xf32>
    %257 = tpu.matmul %4, %256, %cst_139 {dimension_numbers = #tpu.dot_dimension_numbers<[1], [0], [0], [1], [0, 0, 1, 1], [], []>} : vector<16x8xf32>, vector<8x128xf32>, vector<16x128xf32> -> vector<16x128xf32>
    %258 = arith.addf %255, %257 : vector<16x128xf32>
    %259 = vector.extract_strided_slice %258 {offsets = [0, 0], sizes = [8, 128], strides = [1, 1]} : vector<16x128xf32> to vector<8x128xf32>
    %260 = math.tanh %259 : vector<8x128xf32>
    %261 = vector.extract_strided_slice %258 {offsets = [8, 0], sizes = [8, 128], strides = [1, 1]} : vector<16x128xf32> to vector<8x128xf32>
    %cst_140 = arith.constant 5.000000e-01 : f32
    %262 = vector.broadcast %cst_140 : f32 to vector<8x128xf32>
    %263 = arith.mulf %262, %261 : vector<8x128xf32>
    %264 = math.tanh %263 : vector<8x128xf32>
    %cst_141 = arith.constant 5.000000e-01 : f32
    %265 = vector.broadcast %cst_141 : f32 to vector<8x128xf32>
    %266 = arith.mulf %265, %264 : vector<8x128xf32>
    %cst_142 = arith.constant 5.000000e-01 : f32
    %267 = vector.broadcast %cst_142 : f32 to vector<8x128xf32>
    %268 = arith.addf %266, %267 : vector<8x128xf32>
    %269 = arith.mulf %260, %268 : vector<8x128xf32>
    %c104_143 = arith.constant 104 : index
    %c0_144 = arith.constant 0 : index
    %270 = vector.load %arg4[%c104_143, %c0_144] : memref<120x128xf32, #tpu.memory_space<vmem>>, vector<8x128xf32>
    tpu.vector_store %arg4[%c104_143, %c0_144], %269 {strides = array<i32>} : memref<120x128xf32, #tpu.memory_space<vmem>>, vector<8x128xf32>,
    %c112_145 = arith.constant 112 : index
    %c0_146 = arith.constant 0 : index
    %271 = vector.load %arg1[%c112_145, %c0_146] : memref<128x128xf32, #tpu.memory_space<vmem>>, vector<8x128xf32>
    %cst_147 = arith.constant dense<0.000000e+00> : vector<16x128xf32>
    %272 = tpu.matmul %2, %271, %cst_147 {dimension_numbers = #tpu.dot_dimension_numbers<[1], [0], [0], [1], [0, 0, 1, 1], [], []>} : vector<16x8xf32>, vector<8x128xf32>, vector<16x128xf32> -> vector<16x128xf32>
    %273 = vector.broadcast %0 : vector<16x1xf32> to vector<16x128xf32>
    %274 = arith.addf %273, %272 : vector<16x128xf32>
    %c120 = arith.constant 120 : index
    %c0_148 = arith.constant 0 : index
    %275 = vector.load %arg1[%c120, %c0_148] : memref<128x128xf32, #tpu.memory_space<vmem>>, vector<8x128xf32>
    %cst_149 = arith.constant dense<0.000000e+00> : vector<16x128xf32>
    %276 = tpu.matmul %4, %275, %cst_149 {dimension_numbers = #tpu.dot_dimension_numbers<[1], [0], [0], [1], [0, 0, 1, 1], [], []>} : vector<16x8xf32>, vector<8x128xf32>, vector<16x128xf32> -> vector<16x128xf32>
    %277 = arith.addf %274, %276 : vector<16x128xf32>
    %278 = vector.extract_strided_slice %277 {offsets = [0, 0], sizes = [8, 128], strides = [1, 1]} : vector<16x128xf32> to vector<8x128xf32>
    %279 = math.tanh %278 : vector<8x128xf32>
    %280 = vector.extract_strided_slice %277 {offsets = [8, 0], sizes = [8, 128], strides = [1, 1]} : vector<16x128xf32> to vector<8x128xf32>
    %cst_150 = arith.constant 5.000000e-01 : f32
    %281 = vector.broadcast %cst_150 : f32 to vector<8x128xf32>
    %282 = arith.mulf %281, %280 : vector<8x128xf32>
    %283 = math.tanh %282 : vector<8x128xf32>
    %cst_151 = arith.constant 5.000000e-01 : f32
    %284 = vector.broadcast %cst_151 : f32 to vector<8x128xf32>
    %285 = arith.mulf %284, %283 : vector<8x128xf32>
    %cst_152 = arith.constant 5.000000e-01 : f32
    %286 = vector.broadcast %cst_152 : f32 to vector<8x128xf32>
    %287 = arith.addf %285, %286 : vector<8x128xf32>
    %288 = arith.mulf %279, %287 : vector<8x128xf32>
    %c112_153 = arith.constant 112 : index
    %c0_154 = arith.constant 0 : index
    %289 = vector.load %arg4[%c112_153, %c0_154] : memref<120x128xf32, #tpu.memory_space<vmem>>, vector<8x128xf32>
    tpu.vector_store %arg4[%c112_153, %c0_154], %288 {strides = array<i32>} : memref<120x128xf32, #tpu.memory_space<vmem>>, vector<8x128xf32>,
    return
  }
  func.func @transform_0(%arg0: i32) -> (i32, i32) {
    %c0_i32 = arith.constant 0 : i32
    %c0_i32_0 = arith.constant 0 : i32
    return %c0_i32, %arg0 : i32, i32
  }
  func.func @transform_1(%arg0: i32) -> (i32, i32, i32) {
    %c0_i32 = arith.constant 0 : i32
    %c0_i32_0 = arith.constant 0 : i32
    %c0_i32_1 = arith.constant 0 : i32
    %c0_i32_2 = arith.constant 0 : i32
    return %c0_i32, %c0_i32_0, %c0_i32_1 : i32, i32, i32
  }
  func.func @transform_2(%arg0: i32) -> (i32, i32) {
    %c0_i32 = arith.constant 0 : i32
    %c0_i32_0 = arith.constant 0 : i32
    %c0_i32_1 = arith.constant 0 : i32
    return %c0_i32, %c0_i32_0 : i32, i32
  }
  func.func @transform_3(%arg0: i32) -> (i32, i32) {
    %c0_i32 = arith.constant 0 : i32
    %c0_i32_0 = arith.constant 0 : i32
    return %c0_i32, %arg0 : i32, i32
  }
}

</mosaic_0001>

<llo_original>
// kernel: tpu_custom_call.1
$region0: #{tpu_custom_call.1}
  #allocation0 [shape = 'u32[]', space=smem, size = 0x4, offset = 0x4, fixed_abs, tag = 'smem constant byte address 0x4 - core index']
  #allocation1 [shape = 'u32[144,128]{1,0:T(1,128)}', space=vmem, size = 0x12000, scoped, tag = 'internal scratch']
  %s0 = inlined_call_operand.hbm [shape: f32[128,128], index: 0, kind: input, shape index: {}]
  %s1 = inlined_call_operand.vmem [shape: f32[2,16,8], index: 1, kind: input, shape index: {}]
  %s2 = inlined_call_operand.vmem [shape: f32[16,1], index: 2, kind: input, shape index: {}]
  %s3 = inlined_call_operand.hbm [shape: f32[120,128], index: 3, kind: output, shape index: {}]
  %s4 = sld [smem:[#allocation0]]
  $region26: #{tpu_custom_call.1} parent=0
    _
  %s6 = ssub.s32 1, %s4
  %s7 = scalar_select 0, %s6, %s4
  $region1: #{tpu_custom_call.1} parent=0
    #allocation2 [shape = 'u8[65536]{0}', space=vmem, size = 0x10000, scoped, tag = 'input window, operand 0, single buffered']
    #allocation3 [shape = 's32[1]{0}', space=sflag, size = 0x4, scoped, tag = 'scoped memory for tpu_custom_call.1']
    #allocation4 [shape = 's32[1]{0}', space=sflag, size = 0x4, scoped, tag = 'scoped memory for tpu_custom_call.1']
    #allocation5 [shape = 'u8[61440]{0}', space=vmem, size = 0xf000, scoped, tag = 'output window, operand 0, single buffered']
    %8 = vsyncpa [#allocation3], 0
    %9 = vsyncpa [#allocation4], 0
    // Predicated region
    $region2: #{tpu_custom_call.1} parent=1 // pred_check
      _
    $region3: #{tpu_custom_call.1} parent=1 // pred_check_branch
      %11 = sbr.rel (0) target = $region5
    $region4: #{tpu_custom_call.1} parent=1 // pred_region
      %s13 = ssub.s32 2048, 2048
      %14 = vsyncadd [#allocation3], %s13
      %s15 = sshll.u32 [#allocation2], 4
      %s16 = int_to_ptr.vmem [resolvable:$true] %s15
      %21 = dma.hbm_to_vmem [thread:$0]  %s0, 2048, %s16, [#allocation3], 128, 128, 8
    $region5: #{tpu_custom_call.1} parent=1 // pred_fallthru
      _
    // Predicated region
    $region6: #{tpu_custom_call.1} parent=1 // pred_check
      _
    $region7: #{tpu_custom_call.1} parent=1 // pred_check_branch
      %23 = sbr.rel (0) target = $region9
    $region8: #{tpu_custom_call.1} parent=1 // pred_region
      _
    $region9: #{tpu_custom_call.1} parent=1 // pred_fallthru
      _
    // Predicated region
    $region10: #{tpu_custom_call.1} parent=1 // pred_check
      _
    $region11: #{tpu_custom_call.1} parent=1 // pred_check_branch
      %25 = sbr.rel (0) target = $region13
    $region12: #{tpu_custom_call.1} parent=1 // pred_region
      _
    $region13: #{tpu_custom_call.1} parent=1 // pred_fallthru
      _
    // Predicated region
    $region14: #{tpu_custom_call.1} parent=1 // pred_check
      _
    $region15: #{tpu_custom_call.1} parent=1 // pred_check_branch
      %27 = sbr.rel (0) target = $region17
    $region16: #{tpu_custom_call.1} parent=1 // pred_region
      %28 = dma.done [#allocation3], 2048
    $region17: #{tpu_custom_call.1} parent=1 // pred_fallthru
      _
    %v29 = vld [vmem:[%s2] sm:$0xff]
    %v30 = vld [vmem:[%s2 + $0x8] sm:$0xff]
    %v31 = vld [vmem:[%s1] sm:$0xff]
    %v32 = vld [vmem:[%s1 + $0x8] sm:$0xff]
    %s33 = scalar_lea.vmem %s1, 16
    %v34 = vld [vmem:[%s33] sm:$0xff]
    %v35 = vld [vmem:[%s33 + $0x8] sm:$0xff]
    %v36 = vld [vmem:[#allocation2] sm:$0xff]
    %vm37 = vcmask 64512
    %v39 = vsel %vm37, %v31, 0
    %v42 = vsel %vm37, %v32, 0
    %44 = vmatprep.subr.mxu0 0.0
    %45 = vmatpush1.msra.mxu0 %v36
    %46 = vmatprep.subr.mxu0 0.0
    %47 = vmatpush1.msra.mxu0 0.0
    %48 = vmatprep.subr.mxu0 0.0
    %49 = vmatpush1.msra.mxu0 0.0
    %50 = vmatprep.subr.mxu0 0.0
    %51 = vmatpush1.msra.mxu0 0.0
    %52 = vmatprep.subr.mxu0 0.0
    %53 = vmatpush1.msra.mxu0 0.0
    %54 = vmatprep.subr.mxu0 0.0
    %55 = vmatpush1.msra.mxu0 0.0
    %56 = vmatprep.subr.mxu0 0.0
    %57 = vmatpush1.msra.mxu0 0.0
    %58 = vmatprep.subr.mxu0 0.0
    %59 = vmatpush1.msra.mxu0 0.0
    %60 = vmatprep.subr.mxu0 0.0
    %61 = vmatpush1.msra.mxu0 0.0
    %62 = vmatprep.subr.mxu0 0.0
    %63 = vmatpush1.msra.mxu0 0.0
    %64 = vmatprep.subr.mxu0 0.0
    %65 = vmatpush1.msra.mxu0 0.0
    %66 = vmatprep.subr.mxu0 0.0
    %67 = vmatpush1.msra.mxu0 0.0
    %68 = vmatprep.subr.mxu0 0.0
    %69 = vmatpush1.msra.mxu0 0.0
    %70 = vmatprep.subr.mxu0 0.0
    %71 = vmatpush1.msra.mxu0 0.0
    %72 = vmatprep.subr.mxu0 0.0
    %73 = vmatpush1.msra.mxu0 0.0
    %74 = vmatprep.subr.mxu0 0.0
    %75 = vmatpush1.msra.mxu0 0.0
    %76 = vmatprep.subr.mxu0 0.0
    %77 = vmatpush1.msra.mxu0 0.0
    %78 = vmatprep.subr.mxu0 0.0
    %79 = vmatpush1.msra.mxu0 0.0
    %80 = vmatprep.subr.mxu0 0.0
    %81 = vmatpush1.msra.mxu0 0.0
    %82 = vmatprep.subr.mxu0 0.0
    %83 = vmatpush1.msra.mxu0 0.0
    %84 = vmatprep.subr.mxu0 0.0
    %85 = vmatpush1.msra.mxu0 0.0
    %86 = vmatprep.subr.mxu0 0.0
    %87 = vmatpush1.msra.mxu0 0.0
    %88 = vmatprep.subr.mxu0 0.0
    %89 = vmatpush1.msra.mxu0 0.0
    %90 = vmatprep.subr.mxu0 0.0
    %91 = vmatpush1.msra.mxu0 0.0
    %92 = vmatprep.subr.mxu0 0.0
    %93 = vmatpush1.msra.mxu0 0.0
    %94 = vmatprep.subr.mxu0 0.0
    %95 = vmatpush1.msra.mxu0 0.0
    %96 = vmatprep.subr.mxu0 0.0
    %97 = vmatpush1.msra.mxu0 0.0
    %98 = vmatprep.subr.mxu0 0.0
    %99 = vmatpush1.msra.mxu0 0.0
    %100 = vmatprep.subr.mxu0 0.0
    %101 = vmatpush1.msra.mxu0 0.0
    %102 = vmatprep.subr.mxu0 0.0
    %103 = vmatpush1.msra.mxu0 0.0
    %104 = vmatprep.subr.mxu0 0.0
    %105 = vmatpush1.msra.mxu0 0.0
    %106 = vmatprep.subr.mxu0 0.0
    %107 = vmatpush1.msra.mxu0 0.0
    %108 = vmatprep.mubr.f32.mxu0 0.0
    %109 = vmatmul.mubr.f32.gmra.mrb[0].mxu0 %v39
    %v110 = vpop.f32.mrb[0].mxu0
    %v111 = vadd.f32 0.0, %v110
    %v112 = vpop.f32.mrb[0].mxu0
    %113 = vmatprep.mubr.f32.mxu0 0.0
    %114 = vmatmul.mubr.f32.gmra.mrb[0].mxu0 %v42
    %v115 = vpop.f32.mrb[0].mxu0
    %v116 = vadd.f32 0.0, %v115
    %v117 = vpop.f32.mrb[0].mxu0
    %118 = vdwg.mxu0
    %120 = vset.pattern.permute.xlu0 0
    %121 = vperm.xlu0 %120, %v29
    %v122 = vpop.permute.xlu0 %121
    %125 = vset.pattern.permute.xlu0 0
    %126 = vperm.xlu0 %125, %v30
    %v127 = vpop.permute.xlu0 %126
    %v129 = vadd.f32 %v122, %v111
    %v130 = vadd.f32 %v127, %v116
    %v131 = vld [vmem:[#allocation2 + $0x8] sm:$0xff]
    %v133 = vsel %vm37, %v34, 0
    %v136 = vsel %vm37, %v35, 0
    %138 = vmatprep.subr.mxu0 0.0
    %139 = vmatpush1.msra.mxu0 %v131
    %140 = vmatprep.subr.mxu0 0.0
    %141 = vmatpush1.msra.mxu0 0.0
    %142 = vmatprep.subr.mxu0 0.0
    %143 = vmatpush1.msra.mxu0 0.0
    %144 = vmatprep.subr.mxu0 0.0
    %145 = vmatpush1.msra.mxu0 0.0
    %146 = vmatprep.subr.mxu0 0.0
    %147 = vmatpush1.msra.mxu0 0.0
    %148 = vmatprep.subr.mxu0 0.0
    %149 = vmatpush1.msra.mxu0 0.0
    %150 = vmatprep.subr.mxu0 0.0
    %151 = vmatpush1.msra.mxu0 0.0
    %152 = vmatprep.subr.mxu0 0.0
    %153 = vmatpush1.msra.mxu0 0.0
    %154 = vmatprep.subr.mxu0 0.0
    %155 = vmatpush1.msra.mxu0 0.0
    %156 = vmatprep.subr.mxu0 0.0
    %157 = vmatpush1.msra.mxu0 0.0
    %158 = vmatprep.subr.mxu0 0.0
    %159 = vmatpush1.msra.mxu0 0.0
    %160 = vmatprep.subr.mxu0 0.0
    %161 = vmatpush1.msra.mxu0 0.0
    %162 = vmatprep.subr.mxu0 0.0
    %163 = vmatpush1.msra.mxu0 0.0
    %164 = vmatprep.subr.mxu0 0.0
    %165 = vmatpush1.msra.mxu0 0.0
    %166 = vmatprep.subr.mxu0 0.0
    %167 = vmatpush1.msra.mxu0 0.0
    %168 = vmatprep.subr.mxu0 0.0
    %169 = vmatpush1.msra.mxu0 0.0
    %170 = vmatprep.subr.mxu0 0.0
    %171 = vmatpush1.msra.mxu0 0.0
    %172 = vmatprep.subr.mxu0 0.0
    %173 = vmatpush1.msra.mxu0 0.0
    %174 = vmatprep.subr.mxu0 0.0
    %175 = vmatpush1.msra.mxu0 0.0
    %176 = vmatprep.subr.mxu0 0.0
    %177 = vmatpush1.msra.mxu0 0.0
    %178 = vmatprep.subr.mxu0 0.0
    %179 = vmatpush1.msra.mxu0 0.0
    %180 = vmatprep.subr.mxu0 0.0
    %181 = vmatpush1.msra.mxu0 0.0
    %182 = vmatprep.subr.mxu0 0.0
    %183 = vmatpush1.msra.mxu0 0.0
    %184 = vmatprep.subr.mxu0 0.0
    %185 = vmatpush1.msra.mxu0 0.0
    %186 = vmatprep.subr.mxu0 0.0
    %187 = vmatpush1.msra.mxu0 0.0
    %188 = vmatprep.subr.mxu0 0.0
    %189 = vmatpush1.msra.mxu0 0.0
    %190 = vmatprep.subr.mxu0 0.0
    %191 = vmatpush1.msra.mxu0 0.0
    %192 = vmatprep.subr.mxu0 0.0
    %193 = vmatpush1.msra.mxu0 0.0
    %194 = vmatprep.subr.mxu0 0.0
    %195 = vmatpush1.msra.mxu0 0.0
    %196 = vmatprep.subr.mxu0 0.0
    %197 = vmatpush1.msra.mxu0 0.0
    %198 = vmatprep.subr.mxu0 0.0
    %199 = vmatpush1.msra.mxu0 0.0
    %200 = vmatprep.subr.mxu0 0.0
    %201 = vmatpush1.msra.mxu0 0.0
    %202 = vmatprep.mubr.f32.mxu0 0.0
    %203 = vmatmul.mubr.f32.gmra.mrb[0].mxu0 %v133
    %v204 = vpop.f32.mrb[0].mxu0
    %v205 = vadd.f32 0.0, %v204
    %v206 = vpop.f32.mrb[0].mxu0
    %207 = vmatprep.mubr.f32.mxu0 0.0
    %208 = vmatmul.mubr.f32.gmra.mrb[0].mxu0 %v136
    %v209 = vpop.f32.mrb[0].mxu0
    %v210 = vadd.f32 0.0, %v209
    %v211 = vpop.f32.mrb[0].mxu0
    %212 = vdwg.mxu0
    %v213 = vadd.f32 %v129, %v205
    %v214 = vadd.f32 %v130, %v210
    %v215 = vtanh.pop %v213
    %v216 = vmul.f32 %v214, 0.5
    %v217 = vtanh.pop %v216
    %v218 = vmul.f32 %v217, 0.5
    %v219 = vadd.f32 %v218, 0.5
    %v220 = vmul.f32 %v215, %v219
    %221 = vst [vmem:[#allocation5] sm:$0xff] %v220
    %v222 = vld [vmem:[#allocation2 + $0x8] sm:$0xff]
    %223 = vmatprep.subr.mxu0 0.0
    %224 = vmatpush1.msra.mxu0 %v222
    %225 = vmatprep.subr.mxu0 0.0
    %226 = vmatpush1.msra.mxu0 0.0
    %227 = vmatprep.subr.mxu0 0.0
    %228 = vmatpush1.msra.mxu0 0.0
    %229 = vmatprep.subr.mxu0 0.0
    %230 = vmatpush1.msra.mxu0 0.0
    %231 = vmatprep.subr.mxu0 0.0
    %232 = vmatpush1.msra.mxu0 0.0
    %233 = vmatprep.subr.mxu0 0.0
    %234 = vmatpush1.msra.mxu0 0.0
    %235 = vmatprep.subr.mxu0 0.0
    %236 = vmatpush1.msra.mxu0 0.0
    %237 = vmatprep.subr.mxu0 0.0
    %238 = vmatpush1.msra.mxu0 0.0
    %239 = vmatprep.subr.mxu0 0.0
    %240 = vmatpush1.msra.mxu0 0.0
    %241 = vmatprep.subr.mxu0 0.0
    %242 = vmatpush1.msra.mxu0 0.0
    %243 = vmatprep.subr.mxu0 0.0
    %244 = vmatpush1.msra.mxu0 0.0
    %245 = vmatprep.subr.mxu0 0.0
    %246 = vmatpush1.msra.mxu0 0.0
    %247 = vmatprep.subr.mxu0 0.0
    %248 = vmatpush1.msra.mxu0 0.0
    %249 = vmatprep.subr.mxu0 0.0
    %250 = vmatpush1.msra.mxu0 0.0
    %251 = vmatprep.subr.mxu0 0.0
    %252 = vmatpush1.msra.mxu0 0.0
    %253 = vmatprep.subr.mxu0 0.0
    %254 = vmatpush1.msra.mxu0 0.0
    %255 = vmatprep.subr.mxu0 0.0
    %256 = vmatpush1.msra.mxu0 0.0
    %257 = vmatprep.subr.mxu0 0.0
    %258 = vmatpush1.msra.mxu0 0.0
    %259 = vmatprep.subr.mxu0 0.0
    %260 = vmatpush1.msra.mxu0 0.0
    %261 = vmatprep.subr.mxu0 0.0
    %262 = vmatpush1.msra.mxu0 0.0
    %263 = vmatprep.subr.mxu0 0.0
    %264 = vmatpush1.msra.mxu0 0.0
    %265 = vmatprep.subr.mxu0 0.0
    %266 = vmatpush1.msra.mxu0 0.0
    %267 = vmatprep.subr.mxu0 0.0
    %268 = vmatpush1.msra.mxu0 0.0
    %269 = vmatprep.subr.mxu0 0.0
    %270 = vmatpush1.msra.mxu0 0.0
    %271 = vmatprep.subr.mxu0 0.0
    %272 = vmatpush1.msra.mxu0 0.0
    %273 = vmatprep.subr.mxu0 0.0
    %274 = vmatpush1.msra.mxu0 0.0
    %275 = vmatprep.subr.mxu0 0.0
    %276 = vmatpush1.msra.mxu0 0.0
    %277 = vmatprep.subr.mxu0 0.0
    %278 = vmatpush1.msra.mxu0 0.0
    %279 = vmatprep.subr.mxu0 0.0
    %280 = vmatpush1.msra.mxu0 0.0
    %281 = vmatprep.subr.mxu0 0.0
    %282 = vmatpush1.msra.mxu0 0.0
    %283 = vmatprep.subr.mxu0 0.0
    %284 = vmatpush1.msra.mxu0 0.0
    %285 = vmatprep.subr.mxu0 0.0
    %286 = vmatpush1.msra.mxu0 0.0
    %287 = vmatprep.mubr.f32.mxu0 0.0
    %288 = vmatmul.mubr.f32.gmra.mrb[0].mxu0 %v39
    %v289 = vpop.f32.mrb[0].mxu0
    %v290 = vadd.f32 0.0, %v289
    %v291 = vpop.f32.mrb[0].mxu0
    %292 = vmatprep.mubr.f32.mxu0 0.0
    %293 = vmatmul.mubr.f32.gmra.mrb[0].mxu0 %v42
    %v294 = vpop.f32.mrb[0].mxu0
    %v295 = vadd.f32 0.0, %v294
    %v296 = vpop.f32.mrb[0].mxu0
    %297 = vdwg.mxu0
    %v298 = vadd.f32 %v122, %v290
    %v299 = vadd.f32 %v127, %v295
    %v300 = vld [vmem:[#allocation2 + $0x10] sm:$0xff]
    %301 = vmatprep.subr.mxu0 0.0
    %302 = vmatpush1.msra.mxu0 %v300
    %303 = vmatprep.subr.mxu0 0.0
    %304 = vmatpush1.msra.mxu0 0.0
    %305 = vmatprep.subr.mxu0 0.0
    %306 = vmatpush1.msra.mxu0 0.0
    %307 = vmatprep.subr.mxu0 0.0
    %308 = vmatpush1.msra.mxu0 0.0
    %309 = vmatprep.subr.mxu0 0.0
    %310 = vmatpush1.msra.mxu0 0.0
    %311 = vmatprep.subr.mxu0 0.0
    %312 = vmatpush1.msra.mxu0 0.0
    %313 = vmatprep.subr.mxu0 0.0
    %314 = vmatpush1.msra.mxu0 0.0
    %315 = vmatprep.subr.mxu0 0.0
    %316 = vmatpush1.msra.mxu0 0.0
    %317 = vmatprep.subr.mxu0 0.0
    %318 = vmatpush1.msra.mxu0 0.0
    %319 = vmatprep.subr.mxu0 0.0
    %320 = vmatpush1.msra.mxu0 0.0
    %321 = vmatprep.subr.mxu0 0.0
    %322 = vmatpush1.msra.mxu0 0.0
    %323 = vmatprep.subr.mxu0 0.0
    %324 = vmatpush1.msra.mxu0 0.0
    %325 = vmatprep.subr.mxu0 0.0
    %326 = vmatpush1.msra.mxu0 0.0
    %327 = vmatprep.subr.mxu0 0.0
    %328 = vmatpush1.msra.mxu0 0.0
    %329 = vmatprep.subr.mxu0 0.0
    %330 = vmatpush1.msra.mxu0 0.0
    %331 = vmatprep.subr.mxu0 0.0
    %332 = vmatpush1.msra.mxu0 0.0
    %333 = vmatprep.subr.mxu0 0.0
    %334 = vmatpush1.msra.mxu0 0.0
    %335 = vmatprep.subr.mxu0 0.0
    %336 = vmatpush1.msra.mxu0 0.0
    %337 = vmatprep.subr.mxu0 0.0
    %338 = vmatpush1.msra.mxu0 0.0
    %339 = vmatprep.subr.mxu0 0.0
    %340 = vmatpush1.msra.mxu0 0.0
    %341 = vmatprep.subr.mxu0 0.0
    %342 = vmatpush1.msra.mxu0 0.0
    %343 = vmatprep.subr.mxu0 0.0
    %344 = vmatpush1.msra.mxu0 0.0
    %345 = vmatprep.subr.mxu0 0.0
    %346 = vmatpush1.msra.mxu0 0.0
    %347 = vmatprep.subr.mxu0 0.0
    %348 = vmatpush1.msra.mxu0 0.0
    %349 = vmatprep.subr.mxu0 0.0
    %350 = vmatpush1.msra.mxu0 0.0
    %351 = vmatprep.subr.mxu0 0.0
    %352 = vmatpush1.msra.mxu0 0.0
    %353 = vmatprep.subr.mxu0 0.0
    %354 = vmatpush1.msra.mxu0 0.0
    %355 = vmatprep.subr.mxu0 0.0
    %356 = vmatpush1.msra.mxu0 0.0
    %357 = vmatprep.subr.mxu0 0.0
    %358 = vmatpush1.msra.mxu0 0.0
    %359 = vmatprep.subr.mxu0 0.0
    %360 = vmatpush1.msra.mxu0 0.0
    %361 = vmatprep.subr.mxu0 0.0
    %362 = vmatpush1.msra.mxu0 0.0
    %363 = vmatprep.subr.mxu0 0.0
    %364 = vmatpush1.msra.mxu0 0.0
    %365 = vmatprep.mubr.f32.mxu0 0.0
    %366 = vmatmul.mubr.f32.gmra.mrb[0].mxu0 %v133
    %v367 = vpop.f32.mrb[0].mxu0
    %v368 = vadd.f32 0.0, %v367
    %v369 = vpop.f32.mrb[0].mxu0
    %370 = vmatprep.mubr.f32.mxu0 0.0
    %371 = vmatmul.mubr.f32.gmra.mrb[0].mxu0 %v136
    %v372 = vpop.f32.mrb[0].mxu0
    %v373 = vadd.f32 0.0, %v372
    %v374 = vpop.f32.mrb[0].mxu0
    %375 = vdwg.mxu0
    %v376 = vadd.f32 %v298, %v368
    %v377 = vadd.f32 %v299, %v373
    %v378 = vtanh.pop %v376
    %v379 = vmul.f32 %v377, 0.5
    %v380 = vtanh.pop %v379
    %v381 = vmul.f32 %v380, 0.5
    %v382 = vadd.f32 %v381, 0.5
    %v383 = vmul.f32 %v378, %v382
    %384 = vst [vmem:[#allocation5 + $0x8] sm:$0xff] %v383
    %v385 = vld [vmem:[#allocation2 + $0x10] sm:$0xff]
    %386 = vmatprep.subr.mxu0 0.0
    %387 = vmatpush1.msra.mxu0 %v385
    %388 = vmatprep.subr.mxu0 0.0
    %389 = vmatpush1.msra.mxu0 0.0
    %390 = vmatprep.subr.mxu0 0.0
    %391 = vmatpush1.msra.mxu0 0.0
    %392 = vmatprep.subr.mxu0 0.0
    %393 = vmatpush1.msra.mxu0 0.0
    %394 = vmatprep.subr.mxu0 0.0
    %395 = vmatpush1.msra.mxu0 0.0
    %396 = vmatprep.subr.mxu0 0.0
    %397 = vmatpush1.msra.mxu0 0.0
    %398 = vmatprep.subr.mxu0 0.0
    %399 = vmatpush1.msra.mxu0 0.0
    %400 = vmatprep.subr.mxu0 0.0
    %401 = vmatpush1.msra.mxu0 0.0
    %402 = vmatprep.subr.mxu0 0.0
    %403 = vmatpush1.msra.mxu0 0.0
    %404 = vmatprep.subr.mxu0 0.0
    %405 = vmatpush1.msra.mxu0 0.0
    %406 = vmatprep.subr.mxu0 0.0
    %407 = vmatpush1.msra.mxu0 0.0
    %408 = vmatprep.subr.mxu0 0.0
    %409 = vmatpush1.msra.mxu0 0.0
    %410 = vmatprep.subr.mxu0 0.0
    %411 = vmatpush1.msra.mxu0 0.0
    %412 = vmatprep.subr.mxu0 0.0
    %413 = vmatpush1.msra.mxu0 0.0
    %414 = vmatprep.subr.mxu0 0.0
    %415 = vmatpush1.msra.mxu0 0.0
    %416 = vmatprep.subr.mxu0 0.0
    %417 = vmatpush1.msra.mxu0 0.0
    %418 = vmatprep.subr.mxu0 0.0
    %419 = vmatpush1.msra.mxu0 0.0
    %420 = vmatprep.subr.mxu0 0.0
    %421 = vmatpush1.msra.mxu0 0.0
    %422 = vmatprep.subr.mxu0 0.0
    %423 = vmatpush1.msra.mxu0 0.0
    %424 = vmatprep.subr.mxu0 0.0
    %425 = vmatpush1.msra.mxu0 0.0
    %426 = vmatprep.subr.mxu0 0.0
    %427 = vmatpush1.msra.mxu0 0.0
    %428 = vmatprep.subr.mxu0 0.0
    %429 = vmatpush1.msra.mxu0 0.0
    %430 = vmatprep.subr.mxu0 0.0
    %431 = vmatpush1.msra.mxu0 0.0
    %432 = vmatprep.subr.mxu0 0.0
    %433 = vmatpush1.msra.mxu0 0.0
    %434 = vmatprep.subr.mxu0 0.0
    %435 = vmatpush1.msra.mxu0 0.0
    %436 = vmatprep.subr.mxu0 0.0
    %437 = vmatpush1.msra.mxu0 0.0
    %438 = vmatprep.subr.mxu0 0.0
    %439 = vmatpush1.msra.mxu0 0.0
    %440 = vmatprep.subr.mxu0 0.0
    %441 = vmatpush1.msra.mxu0 0.0
    %442 = vmatprep.subr.mxu0 0.0
    %443 = vmatpush1.msra.mxu0 0.0
    %444 = vmatprep.subr.mxu0 0.0
    %445 = vmatpush1.msra.mxu0 0.0
    %446 = vmatprep.subr.mxu0 0.0
    %447 = vmatpush1.msra.mxu0 0.0
    %448 = vmatprep.subr.mxu0 0.0
    %449 = vmatpush1.msra.mxu0 0.0
    %450 = vmatprep.mubr.f32.mxu0 0.0
    %451 = vmatmul.mubr.f32.gmra.mrb[0].mxu0 %v39
    %v452 = vpop.f32.mrb[0].mxu0
    %v453 = vadd.f32 0.0, %v452
    %v454 = vpop.f32.mrb[0].mxu0
    %455 = vmatprep.mubr.f32.mxu0 0.0
    %456 = vmatmul.mubr.f32.gmra.mrb[0].mxu0 %v42
    %v457 = vpop.f32.mrb[0].mxu0
    %v458 = vadd.f32 0.0, %v457
    %v459 = vpop.f32.mrb[0].mxu0
    %460 = vdwg.mxu0
    %v461 = vadd.f32 %v122, %v453
    %v462 = vadd.f32 %v127, %v458
    %v463 = vld [vmem:[#allocation2 + $0x18] sm:$0xff]
    %464 = vmatprep.subr.mxu0 0.0
    %465 = vmatpush1.msra.mxu0 %v463
    %466 = vmatprep.subr.mxu0 0.0
    %467 = vmatpush1.msra.mxu0 0.0
    %468 = vmatprep.subr.mxu0 0.0
    %469 = vmatpush1.msra.mxu0 0.0
    %470 = vmatprep.subr.mxu0 0.0
    %471 = vmatpush1.msra.mxu0 0.0
    %472 = vmatprep.subr.mxu0 0.0
    %473 = vmatpush1.msra.mxu0 0.0
    %474 = vmatprep.subr.mxu0 0.0
    %475 = vmatpush1.msra.mxu0 0.0
    %476 = vmatprep.subr.mxu0 0.0
    %477 = vmatpush1.msra.mxu0 0.0
    %478 = vmatprep.subr.mxu0 0.0
    %479 = vmatpush1.msra.mxu0 0.0
    %480 = vmatprep.subr.mxu0 0.0
    %481 = vmatpush1.msra.mxu0 0.0
    %482 = vmatprep.subr.mxu0 0.0
    %483 = vmatpush1.msra.mxu0 0.0
    %484 = vmatprep.subr.mxu0 0.0
    %485 = vmatpush1.msra.mxu0 0.0
    %486 = vmatprep.subr.mxu0 0.0
    %487 = vmatpush1.msra.mxu0 0.0
    %488 = vmatprep.subr.mxu0 0.0
    %489 = vmatpush1.msra.mxu0 0.0
    %490 = vmatprep.subr.mxu0 0.0
    %491 = vmatpush1.msra.mxu0 0.0
    %492 = vmatprep.subr.mxu0 0.0
    %493 = vmatpush1.msra.mxu0 0.0
    %494 = vmatprep.subr.mxu0 0.0
    %495 = vmatpush1.msra.mxu0 0.0
    %496 = vmatprep.subr.mxu0 0.0
    %497 = vmatpush1.msra.mxu0 0.0
    %498 = vmatprep.subr.mxu0 0.0
    %499 = vmatpush1.msra.mxu0 0.0
    %500 = vmatprep.subr.mxu0 0.0
    %501 = vmatpush1.msra.mxu0 0.0
    %502 = vmatprep.subr.mxu0 0.0
    %503 = vmatpush1.msra.mxu0 0.0
    %504 = vmatprep.subr.mxu0 0.0
    %505 = vmatpush1.msra.mxu0 0.0
    %506 = vmatprep.subr.mxu0 0.0
    %507 = vmatpush1.msra.mxu0 0.0
    %508 = vmatprep.subr.mxu0 0.0
    %509 = vmatpush1.msra.mxu0 0.0
    %510 = vmatprep.subr.mxu0 0.0
    %511 = vmatpush1.msra.mxu0 0.0
    %512 = vmatprep.subr.mxu0 0.0
    %513 = vmatpush1.msra.mxu0 0.0
    %514 = vmatprep.subr.mxu0 0.0
    %515 = vmatpush1.msra.mxu0 0.0
    %516 = vmatprep.subr.mxu0 0.0
    %517 = vmatpush1.msra.mxu0 0.0
    %518 = vmatprep.subr.mxu0 0.0
    %519 = vmatpush1.msra.mxu0 0.0
    %520 = vmatprep.subr.mxu0 0.0
    %521 = vmatpush1.msra.mxu0 0.0
    %522 = vmatprep.subr.mxu0 0.0
    %523 = vmatpush1.msra.mxu0 0.0
    %524 = vmatprep.subr.mxu0 0.0
    %525 = vmatpush1.msra.mxu0 0.0
    %526 = vmatprep.subr.mxu0 0.0
    %527 = vmatpush1.msra.mxu0 0.0
    %528 = vmatprep.mubr.f32.mxu0 0.0
    %529 = vmatmul.mubr.f32.gmra.mrb[0].mxu0 %v133
    %v530 = vpop.f32.mrb[0].mxu0
    %v531 = vadd.f32 0.0, %v530
    %v532 = vpop.f32.mrb[0].mxu0
    %533 = vmatprep.mubr.f32.mxu0 0.0
    %534 = vmatmul.mubr.f32.gmra.mrb[0].mxu0 %v136
    %v535 = vpop.f32.mrb[0].mxu0
    %v536 = vadd.f32 0.0, %v535
    %v537 = vpop.f32.mrb[0].mxu0
    %538 = vdwg.mxu0
    %v539 = vadd.f32 %v461, %v531
    %v540 = vadd.f32 %v462, %v536
    %v541 = vtanh.pop %v539
    %v542 = vmul.f32 %v540, 0.5
    %v543 = vtanh.pop %v542
    %v544 = vmul.f32 %v543, 0.5
    %v545 = vadd.f32 %v544, 0.5
    %v546 = vmul.f32 %v541, %v545
    %547 = vst [vmem:[#allocation5 + $0x10] sm:$0xff] %v546
    %v548 = vld [vmem:[#allocation2 + $0x18] sm:$0xff]
    %549 = vmatprep.subr.mxu0 0.0
    %550 = vmatpush1.msra.mxu0 %v548
    %551 = vmatprep.subr.mxu0 0.0
    %552 = vmatpush1.msra.mxu0 0.0
    %553 = vmatprep.subr.mxu0 0.0
    %554 = vmatpush1.msra.mxu0 0.0
    %555 = vmatprep.subr.mxu0 0.0
    %556 = vmatpush1.msra.mxu0 0.0
    %557 = vmatprep.subr.mxu0 0.0
    %558 = vmatpush1.msra.mxu0 0.0
    %559 = vmatprep.subr.mxu0 0.0
    %560 = vmatpush1.msra.mxu0 0.0
    %561 = vmatprep.subr.mxu0 0.0
    %562 = vmatpush1.msra.mxu0 0.0
    %563 = vmatprep.subr.mxu0 0.0
    %564 = vmatpush1.msra.mxu0 0.0
    %565 = vmatprep.subr.mxu0 0.0
    %566 = vmatpush1.msra.mxu0 0.0
    %567 = vmatprep.subr.mxu0 0.0
    %568 = vmatpush1.msra.mxu0 0.0
    %569 = vmatprep.subr.mxu0 0.0
    %570 = vmatpush1.msra.mxu0 0.0
    %571 = vmatprep.subr.mxu0 0.0
    %572 = vmatpush1.msra.mxu0 0.0
    %573 = vmatprep.subr.mxu0 0.0
    %574 = vmatpush1.msra.mxu0 0.0
    %575 = vmatprep.subr.mxu0 0.0
    %576 = vmatpush1.msra.mxu0 0.0
    %577 = vmatprep.subr.mxu0 0.0
    %578 = vmatpush1.msra.mxu0 0.0
    %579 = vmatprep.subr.mxu0 0.0
    %580 = vmatpush1.msra.mxu0 0.0
    %581 = vmatprep.subr.mxu0 0.0
    %582 = vmatpush1.msra.mxu0 0.0
    %583 = vmatprep.subr.mxu0 0.0
    %584 = vmatpush1.msra.mxu0 0.0
    %585 = vmatprep.subr.mxu0 0.0
    %586 = vmatpush1.msra.mxu0 0.0
    %587 = vmatprep.subr.mxu0 0.0
    %588 = vmatpush1.msra.mxu0 0.0
    %589 = vmatprep.subr.mxu0 0.0
    %590 = vmatpush1.msra.mxu0 0.0
    %591 = vmatprep.subr.mxu0 0.0
    %592 = vmatpush1.msra.mxu0 0.0
    %593 = vmatprep.subr.mxu0 0.0
    %594 = vmatpush1.msra.mxu0 0.0
    %595 = vmatprep.subr.mxu0 0.0
    %596 = vmatpush1.msra.mxu0 0.0
    %597 = vmatprep.subr.mxu0 0.0
    %598 = vmatpush1.msra.mxu0 0.0
    %599 = vmatprep.subr.mxu0 0.0
    %600 = vmatpush1.msra.mxu0 0.0
    %601 = vmatprep.subr.mxu0 0.0
    %602 = vmatpush1.msra.mxu0 0.0
    %603 = vmatprep.subr.mxu0 0.0
    %604 = vmatpush1.msra.mxu0 0.0
    %605 = vmatprep.subr.mxu0 0.0
    %606 = vmatpush1.msra.mxu0 0.0
    %607 = vmatprep.subr.mxu0 0.0
    %608 = vmatpush1.msra.mxu0 0.0
    %609 = vmatprep.subr.mxu0 0.0
    %610 = vmatpush1.msra.mxu0 0.0
    %611 = vmatprep.subr.mxu0 0.0
    %612 = vmatpush1.msra.mxu0 0.0
    %613 = vmatprep.mubr.f32.mxu0 0.0
    %614 = vmatmul.mubr.f32.gmra.mrb[0].mxu0 %v39
    %v615 = vpop.f32.mrb[0].mxu0
    %v616 = vadd.f32 0.0, %v615
    %v617 = vpop.f32.mrb[0].mxu0
    %618 = vmatprep.mubr.f32.mxu0 0.0
    %619 = vmatmul.mubr.f32.gmra.mrb[0].mxu0 %v42
    %v620 = vpop.f32.mrb[0].mxu0
    %v621 = vadd.f32 0.0, %v620
    %v622 = vpop.f32.mrb[0].mxu0
    %623 = vdwg.mxu0
    %v624 = vadd.f32 %v122, %v616
    %v625 = vadd.f32 %v127, %v621
    %v626 = vld [vmem:[#allocation2 + $0x20] sm:$0xff]
    %627 = vmatprep.subr.mxu0 0.0
    %628 = vmatpush1.msra.mxu0 %v626
    %629 = vmatprep.subr.mxu0 0.0
    %630 = vmatpush1.msra.mxu0 0.0
    %631 = vmatprep.subr.mxu0 0.0
    %632 = vmatpush1.msra.mxu0 0.0
    %633 = vmatprep.subr.mxu0 0.0
    %634 = vmatpush1.msra.mxu0 0.0
    %635 = vmatprep.subr.mxu0 0.0
    %636 = vmatpush1.msra.mxu0 0.0
    %637 = vmatprep.subr.mxu0 0.0
    %638 = vmatpush1.msra.mxu0 0.0
    %639 = vmatprep.subr.mxu0 0.0
    %640 = vmatpush1.msra.mxu0 0.0
    %641 = vmatprep.subr.mxu0 0.0
    %642 = vmatpush1.msra.mxu0 0.0
    %643 = vmatprep.subr.mxu0 0.0
    %644 = vmatpush1.msra.mxu0 0.0
    %645 = vmatprep.subr.mxu0 0.0
    %646 = vmatpush1.msra.mxu0 0.0
    %647 = vmatprep.subr.mxu0 0.0
    %648 = vmatpush1.msra.mxu0 0.0
    %649 = vmatprep.subr.mxu0 0.0
    %650 = vmatpush1.msra.mxu0 0.0
    %651 = vmatprep.subr.mxu0 0.0
    %652 = vmatpush1.msra.mxu0 0.0
    %653 = vmatprep.subr.mxu0 0.0
    %654 = vmatpush1.msra.mxu0 0.0
    %655 = vmatprep.subr.mxu0 0.0
    %656 = vmatpush1.msra.mxu0 0.0
    %657 = vmatprep.subr.mxu0 0.0
    %658 = vmatpush1.msra.mxu0 0.0
    %659 = vmatprep.subr.mxu0 0.0
    %660 = vmatpush1.msra.mxu0 0.0
    %661 = vmatprep.subr.mxu0 0.0
    %662 = vmatpush1.msra.mxu0 0.0
    %663 = vmatprep.subr.mxu0 0.0
    %664 = vmatpush1.msra.mxu0 0.0
    %665 = vmatprep.subr.mxu0 0.0
    %666 = vmatpush1.msra.mxu0 0.0
    %667 = vmatprep.subr.mxu0 0.0
    %668 = vmatpush1.msra.mxu0 0.0
    %669 = vmatprep.subr.mxu0 0.0
    %670 = vmatpush1.msra.mxu0 0.0
    %671 = vmatprep.subr.mxu0 0.0
    %672 = vmatpush1.msra.mxu0 0.0
    %673 = vmatprep.subr.mxu0 0.0
    %674 = vmatpush1.msra.mxu0 0.0
    %675 = vmatprep.subr.mxu0 0.0
    %676 = vmatpush1.msra.mxu0 0.0
    %677 = vmatprep.subr.mxu0 0.0
    %678 = vmatpush1.msra.mxu0 0.0
    %679 = vmatprep.subr.mxu0 0.0
    %680 = vmatpush1.msra.mxu0 0.0
    %681 = vmatprep.subr.mxu0 0.0
    %682 = vmatpush1.msra.mxu0 0.0
    %683 = vmatprep.subr.mxu0 0.0
    %684 = vmatpush1.msra.mxu0 0.0
    %685 = vmatprep.subr.mxu0 0.0
    %686 = vmatpush1.msra.mxu0 0.0
    %687 = vmatprep.subr.mxu0 0.0
    %688 = vmatpush1.msra.mxu0 0.0
    %689 = vmatprep.subr.mxu0 0.0
    %690 = vmatpush1.msra.mxu0 0.0
    %691 = vmatprep.mubr.f32.mxu0 0.0
    %692 = vmatmul.mubr.f32.gmra.mrb[0].mxu0 %v133
    %v693 = vpop.f32.mrb[0].mxu0
    %v694 = vadd.f32 0.0, %v693
    %v695 = vpop.f32.mrb[0].mxu0
    %696 = vmatprep.mubr.f32.mxu0 0.0
    %697 = vmatmul.mubr.f32.gmra.mrb[0].mxu0 %v136
    %v698 = vpop.f32.mrb[0].mxu0
    %v699 = vadd.f32 0.0, %v698
    %v700 = vpop.f32.mrb[0].mxu0
    %701 = vdwg.mxu0
    %v702 = vadd.f32 %v624, %v694
    %v703 = vadd.f32 %v625, %v699
    %v704 = vtanh.pop %v702
    %v705 = vmul.f32 %v703, 0.5
    %v706 = vtanh.pop %v705
    %v707 = vmul.f32 %v706, 0.5
    %v708 = vadd.f32 %v707, 0.5
    %v709 = vmul.f32 %v704, %v708
    %710 = vst [vmem:[#allocation5 + $0x18] sm:$0xff] %v709
    %v711 = vld [vmem:[#allocation2 + $0x20] sm:$0xff]
    %712 = vmatprep.subr.mxu0 0.0
    %713 = vmatpush1.msra.mxu0 %v711
    %714 = vmatprep.subr.mxu0 0.0
    %715 = vmatpush1.msra.mxu0 0.0
    %716 = vmatprep.subr.mxu0 0.0
    %717 = vmatpush1.msra.mxu0 0.0
    %718 = vmatprep.subr.mxu0 0.0
    %719 = vmatpush1.msra.mxu0 0.0
    %720 = vmatprep.subr.mxu0 0.0
    %721 = vmatpush1.msra.mxu0 0.0
    %722 = vmatprep.subr.mxu0 0.0
    %723 = vmatpush1.msra.mxu0 0.0
    %724 = vmatprep.subr.mxu0 0.0
    %725 = vmatpush1.msra.mxu0 0.0
    %726 = vmatprep.subr.mxu0 0.0
    %727 = vmatpush1.msra.mxu0 0.0
    %728 = vmatprep.subr.mxu0 0.0
    %729 = vmatpush1.msra.mxu0 0.0
    %730 = vmatprep.subr.mxu0 0.0
    %731 = vmatpush1.msra.mxu0 0.0
    %732 = vmatprep.subr.mxu0 0.0
    %733 = vmatpush1.msra.mxu0 0.0
    %734 = vmatprep.subr.mxu0 0.0
    %735 = vmatpush1.msra.mxu0 0.0
    %736 = vmatprep.subr.mxu0 0.0
    %737 = vmatpush1.msra.mxu0 0.0
    %738 = vmatprep.subr.mxu0 0.0
    %739 = vmatpush1.msra.mxu0 0.0
    %740 = vmatprep.subr.mxu0 0.0
    %741 = vmatpush1.msra.mxu0 0.0
    %742 = vmatprep.subr.mxu0 0.0
    %743 = vmatpush1.msra.mxu0 0.0
    %744 = vmatprep.subr.mxu0 0.0
    %745 = vmatpush1.msra.mxu0 0.0
    %746 = vmatprep.subr.mxu0 0.0
    %747 = vmatpush1.msra.mxu0 0.0
    %748 = vmatprep.subr.mxu0 0.0
    %749 = vmatpush1.msra.mxu0 0.0
    %750 = vmatprep.subr.mxu0 0.0
    %751 = vmatpush1.msra.mxu0 0.0
    %752 = vmatprep.subr.mxu0 0.0
    %753 = vmatpush1.msra.mxu0 0.0
    %754 = vmatprep.subr.mxu0 0.0
    %755 = vmatpush1.msra.mxu0 0.0
    %756 = vmatprep.subr.mxu0 0.0
    %757 = vmatpush1.msra.mxu0 0.0
    %758 = vmatprep.subr.mxu0 0.0
    %759 = vmatpush1.msra.mxu0 0.0
    %760 = vmatprep.subr.mxu0 0.0
    %761 = vmatpush1.msra.mxu0 0.0
    %762 = vmatprep.subr.mxu0 0.0
    %763 = vmatpush1.msra.mxu0 0.0
    %764 = vmatprep.subr.mxu0 0.0
    %765 = vmatpush1.msra.mxu0 0.0
    %766 = vmatprep.subr.mxu0 0.0
    %767 = vmatpush1.msra.mxu0 0.0
    %768 = vmatprep.subr.mxu0 0.0
    %769 = vmatpush1.msra.mxu0 0.0
    %770 = vmatprep.subr.mxu0 0.0
    %771 = vmatpush1.msra.mxu0 0.0
    %772 = vmatprep.subr.mxu0 0.0
    %773 = vmatpush1.msra.mxu0 0.0
    %774 = vmatprep.subr.mxu0 0.0
    %775 = vmatpush1.msra.mxu0 0.0
    %776 = vmatprep.mubr.f32.mxu0 0.0
    %777 = vmatmul.mubr.f32.gmra.mrb[0].mxu0 %v39
    %v778 = vpop.f32.mrb[0].mxu0
    %v779 = vadd.f32 0.0, %v778
    %v780 = vpop.f32.mrb[0].mxu0
    %781 = vmatprep.mubr.f32.mxu0 0.0
    %782 = vmatmul.mubr.f32.gmra.mrb[0].mxu0 %v42
    %v783 = vpop.f32.mrb[0].mxu0
    %v784 = vadd.f32 0.0, %v783
    %v785 = vpop.f32.mrb[0].mxu0
    %786 = vdwg.mxu0
    %v787 = vadd.f32 %v122, %v779
    %v788 = vadd.f32 %v127, %v784
    %v789 = vld [vmem:[#allocation2 + $0x28] sm:$0xff]
    %790 = vmatprep.subr.mxu0 0.0
    %791 = vmatpush1.msra.mxu0 %v789
    %792 = vmatprep.subr.mxu0 0.0
    %793 = vmatpush1.msra.mxu0 0.0
    %794 = vmatprep.subr.mxu0 0.0
    %795 = vmatpush1.msra.mxu0 0.0
    %796 = vmatprep.subr.mxu0 0.0
    %797 = vmatpush1.msra.mxu0 0.0
    %798 = vmatprep.subr.mxu0 0.0
    %799 = vmatpush1.msra.mxu0 0.0
    %800 = vmatprep.subr.mxu0 0.0
    %801 = vmatpush1.msra.mxu0 0.0
    %802 = vmatprep.subr.mxu0 0.0
    %803 = vmatpush1.msra.mxu0 0.0
    %804 = vmatprep.subr.mxu0 0.0
    %805 = vmatpush1.msra.mxu0 0.0
    %806 = vmatprep.subr.mxu0 0.0
    %807 = vmatpush1.msra.mxu0 0.0
    %808 = vmatprep.subr.mxu0 0.0
    %809 = vmatpush1.msra.mxu0 0.0
    %810 = vmatprep.subr.mxu0 0.0
    %811 = vmatpush1.msra.mxu0 0.0
    %812 = vmatprep.subr.mxu0 0.0
    %813 = vmatpush1.msra.mxu0 0.0
    %814 = vmatprep.subr.mxu0 0.0
    %815 = vmatpush1.msra.mxu0 0.0
    %816 = vmatprep.subr.mxu0 0.0
    %817 = vmatpush1.msra.mxu0 0.0
    %818 = vmatprep.subr.mxu0 0.0
    %819 = vmatpush1.msra.mxu0 0.0
    %820 = vmatprep.subr.mxu0 0.0
    %821 = vmatpush1.msra.mxu0 0.0
    %822 = vmatprep.subr.mxu0 0.0
    %823 = vmatpush1.msra.mxu0 0.0
    %824 = vmatprep.subr.mxu0 0.0
    %825 = vmatpush1.msra.mxu0 0.0
    %826 = vmatprep.subr.mxu0 0.0
    %827 = vmatpush1.msra.mxu0 0.0
    %828 = vmatprep.subr.mxu0 0.0
    %829 = vmatpush1.msra.mxu0 0.0
    %830 = vmatprep.subr.mxu0 0.0
    %831 = vmatpush1.msra.mxu0 0.0
    %832 = vmatprep.subr.mxu0 0.0
    %833 = vmatpush1.msra.mxu0 0.0
    %834 = vmatprep.subr.mxu0 0.0
    %835 = vmatpush1.msra.mxu0 0.0
    %836 = vmatprep.subr.mxu0 0.0
    %837 = vmatpush1.msra.mxu0 0.0
    %838 = vmatprep.subr.mxu0 0.0
    %839 = vmatpush1.msra.mxu0 0.0
    %840 = vmatprep.subr.mxu0 0.0
    %841 = vmatpush1.msra.mxu0 0.0
    %842 = vmatprep.subr.mxu0 0.0
    %843 = vmatpush1.msra.mxu0 0.0
    %844 = vmatprep.subr.mxu0 0.0
    %845 = vmatpush1.msra.mxu0 0.0
    %846 = vmatprep.subr.mxu0 0.0
    %847 = vmatpush1.msra.mxu0 0.0
    %848 = vmatprep.subr.mxu0 0.0
    %849 = vmatpush1.msra.mxu0 0.0
    %850 = vmatprep.subr.mxu0 0.0
    %851 = vmatpush1.msra.mxu0 0.0
    %852 = vmatprep.subr.mxu0 0.0
    %853 = vmatpush1.msra.mxu0 0.0
    %854 = vmatprep.mubr.f32.mxu0 0.0
    %855 = vmatmul.mubr.f32.gmra.mrb[0].mxu0 %v133
    %v856 = vpop.f32.mrb[0].mxu0
    %v857 = vadd.f32 0.0, %v856
    %v858 = vpop.f32.mrb[0].mxu0
    %859 = vmatprep.mubr.f32.mxu0 0.0
    %860 = vmatmul.mubr.f32.gmra.mrb[0].mxu0 %v136
    %v861 = vpop.f32.mrb[0].mxu0
    %v862 = vadd.f32 0.0, %v861
    %v863 = vpop.f32.mrb[0].mxu0
    %864 = vdwg.mxu0
    %v865 = vadd.f32 %v787, %v857
    %v866 = vadd.f32 %v788, %v862
    %v867 = vtanh.pop %v865
    %v868 = vmul.f32 %v866, 0.5
    %v869 = vtanh.pop %v868
    %v870 = vmul.f32 %v869, 0.5
    %v871 = vadd.f32 %v870, 0.5
    %v872 = vmul.f32 %v867, %v871
    %873 = vst [vmem:[#allocation5 + $0x20] sm:$0xff] %v872
    %v874 = vld [vmem:[#allocation2 + $0x28] sm:$0xff]
    %875 = vmatprep.subr.mxu0 0.0
    %876 = vmatpush1.msra.mxu0 %v874
    %877 = vmatprep.subr.mxu0 0.0
    %878 = vmatpush1.msra.mxu0 0.0
    %879 = vmatprep.subr.mxu0 0.0
    %880 = vmatpush1.msra.mxu0 0.0
    %881 = vmatprep.subr.mxu0 0.0
    %882 = vmatpush1.msra.mxu0 0.0
    %883 = vmatprep.subr.mxu0 0.0
    %884 = vmatpush1.msra.mxu0 0.0
    %885 = vmatprep.subr.mxu0 0.0
    %886 = vmatpush1.msra.mxu0 0.0
    %887 = vmatprep.subr.mxu0 0.0
    %888 = vmatpush1.msra.mxu0 0.0
    %889 = vmatprep.subr.mxu0 0.0
    %890 = vmatpush1.msra.mxu0 0.0
    %891 = vmatprep.subr.mxu0 0.0
    %892 = vmatpush1.msra.mxu0 0.0
    %893 = vmatprep.subr.mxu0 0.0
    %894 = vmatpush1.msra.mxu0 0.0
    %895 = vmatprep.subr.mxu0 0.0
    %896 = vmatpush1.msra.mxu0 0.0
    %897 = vmatprep.subr.mxu0 0.0
    %898 = vmatpush1.msra.mxu0 0.0
    %899 = vmatprep.subr.mxu0 0.0
    %900 = vmatpush1.msra.mxu0 0.0
    %901 = vmatprep.subr.mxu0 0.0
    %902 = vmatpush1.msra.mxu0 0.0
    %903 = vmatprep.subr.mxu0 0.0
    %904 = vmatpush1.msra.mxu0 0.0
    %905 = vmatprep.subr.mxu0 0.0
    %906 = vmatpush1.msra.mxu0 0.0
    %907 = vmatprep.subr.mxu0 0.0
    %908 = vmatpush1.msra.mxu0 0.0
    %909 = vmatprep.subr.mxu0 0.0
    %910 = vmatpush1.msra.mxu0 0.0
    %911 = vmatprep.subr.mxu0 0.0
    %912 = vmatpush1.msra.mxu0 0.0
    %913 = vmatprep.subr.mxu0 0.0
    %914 = vmatpush1.msra.mxu0 0.0
    %915 = vmatprep.subr.mxu0 0.0
    %916 = vmatpush1.msra.mxu0 0.0
    %917 = vmatprep.subr.mxu0 0.0
    %918 = vmatpush1.msra.mxu0 0.0
    %919 = vmatprep.subr.mxu0 0.0
    %920 = vmatpush1.msra.mxu0 0.0
    %921 = vmatprep.subr.mxu0 0.0
    %922 = vmatpush1.msra.mxu0 0.0
    %923 = vmatprep.subr.mxu0 0.0
    %924 = vmatpush1.msra.mxu0 0.0
    %925 = vmatprep.subr.mxu0 0.0
    %926 = vmatpush1.msra.mxu0 0.0
    %927 = vmatprep.subr.mxu0 0.0
    %928 = vmatpush1.msra.mxu0 0.0
    %929 = vmatprep.subr.mxu0 0.0
    %930 = vmatpush1.msra.mxu0 0.0
    %931 = vmatprep.subr.mxu0 0.0
    %932 = vmatpush1.msra.mxu0 0.0
    %933 = vmatprep.subr.mxu0 0.0
    %934 = vmatpush1.msra.mxu0 0.0
    %935 = vmatprep.subr.mxu0 0.0
    %936 = vmatpush1.msra.mxu0 0.0
    %937 = vmatprep.subr.mxu0 0.0
    %938 = vmatpush1.msra.mxu0 0.0
    %939 = vmatprep.mubr.f32.mxu0 0.0
    %940 = vmatmul.mubr.f32.gmra.mrb[0].mxu0 %v39
    %v941 = vpop.f32.mrb[0].mxu0
    %v942 = vadd.f32 0.0, %v941
    %v943 = vpop.f32.mrb[0].mxu0
    %944 = vmatprep.mubr.f32.mxu0 0.0
    %945 = vmatmul.mubr.f32.gmra.mrb[0].mxu0 %v42
    %v946 = vpop.f32.mrb[0].mxu0
    %v947 = vadd.f32 0.0, %v946
    %v948 = vpop.f32.mrb[0].mxu0
    %949 = vdwg.mxu0
    %v950 = vadd.f32 %v122, %v942
    %v951 = vadd.f32 %v127, %v947
    %v952 = vld [vmem:[#allocation2 + $0x30] sm:$0xff]
    %953 = vmatprep.subr.mxu0 0.0
    %954 = vmatpush1.msra.mxu0 %v952
    %955 = vmatprep.subr.mxu0 0.0
    %956 = vmatpush1.msra.mxu0 0.0
    %957 = vmatprep.subr.mxu0 0.0
    %958 = vmatpush1.msra.mxu0 0.0
    %959 = vmatprep.subr.mxu0 0.0
    %960 = vmatpush1.msra.mxu0 0.0
    %961 = vmatprep.subr.mxu0 0.0
    %962 = vmatpush1.msra.mxu0 0.0
    %963 = vmatprep.subr.mxu0 0.0
    %964 = vmatpush1.msra.mxu0 0.0
    %965 = vmatprep.subr.mxu0 0.0
    %966 = vmatpush1.msra.mxu0 0.0
    %967 = vmatprep.subr.mxu0 0.0
    %968 = vmatpush1.msra.mxu0 0.0
    %969 = vmatprep.subr.mxu0 0.0
    %970 = vmatpush1.msra.mxu0 0.0
    %971 = vmatprep.subr.mxu0 0.0
    %972 = vmatpush1.msra.mxu0 0.0
    %973 = vmatprep.subr.mxu0 0.0
    %974 = vmatpush1.msra.mxu0 0.0
    %975 = vmatprep.subr.mxu0 0.0
    %976 = vmatpush1.msra.mxu0 0.0
    %977 = vmatprep.subr.mxu0 0.0
    %978 = vmatpush1.msra.mxu0 0.0
    %979 = vmatprep.subr.mxu0 0.0
    %980 = vmatpush1.msra.mxu0 0.0
    %981 = vmatprep.subr.mxu0 0.0
    %982 = vmatpush1.msra.mxu0 0.0
    %983 = vmatprep.subr.mxu0 0.0
    %984 = vmatpush1.msra.mxu0 0.0
    %985 = vmatprep.subr.mxu0 0.0
    %986 = vmatpush1.msra.mxu0 0.0
    %987 = vmatprep.subr.mxu0 0.0
    %988 = vmatpush1.msra.mxu0 0.0
    %989 = vmatprep.subr.mxu0 0.0
    %990 = vmatpush1.msra.mxu0 0.0
    %991 = vmatprep.subr.mxu0 0.0
    %992 = vmatpush1.msra.mxu0 0.0
    %993 = vmatprep.subr.mxu0 0.0
    %994 = vmatpush1.msra.mxu0 0.0
    %995 = vmatprep.subr.mxu0 0.0
    %996 = vmatpush1.msra.mxu0 0.0
    %997 = vmatprep.subr.mxu0 0.0
    %998 = vmatpush1.msra.mxu0 0.0
    %999 = vmatprep.subr.mxu0 0.0
    %1000 = vmatpush1.msra.mxu0 0.0
    %1001 = vmatprep.subr.mxu0 0.0
    %1002 = vmatpush1.msra.mxu0 0.0
    %1003 = vmatprep.subr.mxu0 0.0
    %1004 = vmatpush1.msra.mxu0 0.0
    %1005 = vmatprep.subr.mxu0 0.0
    %1006 = vmatpush1.msra.mxu0 0.0
    %1007 = vmatprep.subr.mxu0 0.0
    %1008 = vmatpush1.msra.mxu0 0.0
    %1009 = vmatprep.subr.mxu0 0.0
    %1010 = vmatpush1.msra.mxu0 0.0
    %1011 = vmatprep.subr.mxu0 0.0
    %1012 = vmatpush1.msra.mxu0 0.0
    %1013 = vmatprep.subr.mxu0 0.0
    %1014 = vmatpush1.msra.mxu0 0.0
    %1015 = vmatprep.subr.mxu0 0.0
    %1016 = vmatpush1.msra.mxu0 0.0
    %1017 = vmatprep.mubr.f32.mxu0 0.0
    %1018 = vmatmul.mubr.f32.gmra.mrb[0].mxu0 %v133
    %v1019 = vpop.f32.mrb[0].mxu0
    %v1020 = vadd.f32 0.0, %v1019
    %v1021 = vpop.f32.mrb[0].mxu0
    %1022 = vmatprep.mubr.f32.mxu0 0.0
    %1023 = vmatmul.mubr.f32.gmra.mrb[0].mxu0 %v136
    %v1024 = vpop.f32.mrb[0].mxu0
    %v1025 = vadd.f32 0.0, %v1024
    %v1026 = vpop.f32.mrb[0].mxu0
    %1027 = vdwg.mxu0
    %v1028 = vadd.f32 %v950, %v1020
    %v1029 = vadd.f32 %v951, %v1025
    %v1030 = vtanh.pop %v1028
    %v1031 = vmul.f32 %v1029, 0.5
    %v1032 = vtanh.pop %v1031
    %v1033 = vmul.f32 %v1032, 0.5
    %v1034 = vadd.f32 %v1033, 0.5
    %v1035 = vmul.f32 %v1030, %v1034
    %1036 = vst [vmem:[#allocation5 + $0x28] sm:$0xff] %v1035
    %v1037 = vld [vmem:[#allocation2 + $0x30] sm:$0xff]
    %1038 = vmatprep.subr.mxu0 0.0
    %1039 = vmatpush1.msra.mxu0 %v1037
    %1040 = vmatprep.subr.mxu0 0.0
    %1041 = vmatpush1.msra.mxu0 0.0
    %1042 = vmatprep.subr.mxu0 0.0
    %1043 = vmatpush1.msra.mxu0 0.0
    %1044 = vmatprep.subr.mxu0 0.0
    %1045 = vmatpush1.msra.mxu0 0.0
    %1046 = vmatprep.subr.mxu0 0.0
    %1047 = vmatpush1.msra.mxu0 0.0
    %1048 = vmatprep.subr.mxu0 0.0
    %1049 = vmatpush1.msra.mxu0 0.0
    %1050 = vmatprep.subr.mxu0 0.0
    %1051 = vmatpush1.msra.mxu0 0.0
    %1052 = vmatprep.subr.mxu0 0.0
    %1053 = vmatpush1.msra.mxu0 0.0
    %1054 = vmatprep.subr.mxu0 0.0
    %1055 = vmatpush1.msra.mxu0 0.0
    %1056 = vmatprep.subr.mxu0 0.0
    %1057 = vmatpush1.msra.mxu0 0.0
    %1058 = vmatprep.subr.mxu0 0.0
    %1059 = vmatpush1.msra.mxu0 0.0
    %1060 = vmatprep.subr.mxu0 0.0
    %1061 = vmatpush1.msra.mxu0 0.0
    %1062 = vmatprep.subr.mxu0 0.0
    %1063 = vmatpush1.msra.mxu0 0.0
    %1064 = vmatprep.subr.mxu0 0.0
    %1065 = vmatpush1.msra.mxu0 0.0
    %1066 = vmatprep.subr.mxu0 0.0
    %1067 = vmatpush1.msra.mxu0 0.0
    %1068 = vmatprep.subr.mxu0 0.0
    %1069 = vmatpush1.msra.mxu0 0.0
    %1070 = vmatprep.subr.mxu0 0.0
    %1071 = vmatpush1.msra.mxu0 0.0
    %1072 = vmatprep.subr.mxu0 0.0
    %1073 = vmatpush1.msra.mxu0 0.0
    %1074 = vmatprep.subr.mxu0 0.0
    %1075 = vmatpush1.msra.mxu0 0.0
    %1076 = vmatprep.subr.mxu0 0.0
    %1077 = vmatpush1.msra.mxu0 0.0
    %1078 = vmatprep.subr.mxu0 0.0
    %1079 = vmatpush1.msra.mxu0 0.0
    %1080 = vmatprep.subr.mxu0 0.0
    %1081 = vmatpush1.msra.mxu0 0.0
    %1082 = vmatprep.subr.mxu0 0.0
    %1083 = vmatpush1.msra.mxu0 0.0
    %1084 = vmatprep.subr.mxu0 0.0
    %1085 = vmatpush1.msra.mxu0 0.0
    %1086 = vmatprep.subr.mxu0 0.0
    %1087 = vmatpush1.msra.mxu0 0.0
    %1088 = vmatprep.subr.mxu0 0.0
    %1089 = vmatpush1.msra.mxu0 0.0
    %1090 = vmatprep.subr.mxu0 0.0
    %1091 = vmatpush1.msra.mxu0 0.0
    %1092 = vmatprep.subr.mxu0 0.0
    %1093 = vmatpush1.msra.mxu0 0.0
    %1094 = vmatprep.subr.mxu0 0.0
    %1095 = vmatpush1.msra.mxu0 0.0
    %1096 = vmatprep.subr.mxu0 0.0
    %1097 = vmatpush1.msra.mxu0 0.0
    %1098 = vmatprep.subr.mxu0 0.0
    %1099 = vmatpush1.msra.mxu0 0.0
    %1100 = vmatprep.subr.mxu0 0.0
    %1101 = vmatpush1.msra.mxu0 0.0
    %1102 = vmatprep.mubr.f32.mxu0 0.0
    %1103 = vmatmul.mubr.f32.gmra.mrb[0].mxu0 %v39
    %v1104 = vpop.f32.mrb[0].mxu0
    %v1105 = vadd.f32 0.0, %v1104
    %v1106 = vpop.f32.mrb[0].mxu0
    %1107 = vmatprep.mubr.f32.mxu0 0.0
    %1108 = vmatmul.mubr.f32.gmra.mrb[0].mxu0 %v42
    %v1109 = vpop.f32.mrb[0].mxu0
    %v1110 = vadd.f32 0.0, %v1109
    %v1111 = vpop.f32.mrb[0].mxu0
    %1112 = vdwg.mxu0
    %v1113 = vadd.f32 %v122, %v1105
    %v1114 = vadd.f32 %v127, %v1110
    %v1115 = vld [vmem:[#allocation2 + $0x38] sm:$0xff]
    %1116 = vmatprep.subr.mxu0 0.0
    %1117 = vmatpush1.msra.mxu0 %v1115
    %1118 = vmatprep.subr.mxu0 0.0
    %1119 = vmatpush1.msra.mxu0 0.0
    %1120 = vmatprep.subr.mxu0 0.0
    %1121 = vmatpush1.msra.mxu0 0.0
    %1122 = vmatprep.subr.mxu0 0.0
    %1123 = vmatpush1.msra.mxu0 0.0
    %1124 = vmatprep.subr.mxu0 0.0
    %1125 = vmatpush1.msra.mxu0 0.0
    %1126 = vmatprep.subr.mxu0 0.0
    %1127 = vmatpush1.msra.mxu0 0.0
    %1128 = vmatprep.subr.mxu0 0.0
    %1129 = vmatpush1.msra.mxu0 0.0
    %1130 = vmatprep.subr.mxu0 0.0
    %1131 = vmatpush1.msra.mxu0 0.0
    %1132 = vmatprep.subr.mxu0 0.0
    %1133 = vmatpush1.msra.mxu0 0.0
    %1134 = vmatprep.subr.mxu0 0.0
    %1135 = vmatpush1.msra.mxu0 0.0
    %1136 = vmatprep.subr.mxu0 0.0
    %1137 = vmatpush1.msra.mxu0 0.0
    %1138 = vmatprep.subr.mxu0 0.0
    %1139 = vmatpush1.msra.mxu0 0.0
    %1140 = vmatprep.subr.mxu0 0.0
    %1141 = vmatpush1.msra.mxu0 0.0
    %1142 = vmatprep.subr.mxu0 0.0
    %1143 = vmatpush1.msra.mxu0 0.0
    %1144 = vmatprep.subr.mxu0 0.0
    %1145 = vmatpush1.msra.mxu0 0.0
    %1146 = vmatprep.subr.mxu0 0.0
    %1147 = vmatpush1.msra.mxu0 0.0
    %1148 = vmatprep.subr.mxu0 0.0
    %1149 = vmatpush1.msra.mxu0 0.0
    %1150 = vmatprep.subr.mxu0 0.0
    %1151 = vmatpush1.msra.mxu0 0.0
    %1152 = vmatprep.subr.mxu0 0.0
    %1153 = vmatpush1.msra.mxu0 0.0
    %1154 = vmatprep.subr.mxu0 0.0
    %1155 = vmatpush1.msra.mxu0 0.0
    %1156 = vmatprep.subr.mxu0 0.0
    %1157 = vmatpush1.msra.mxu0 0.0
    %1158 = vmatprep.subr.mxu0 0.0
    %1159 = vmatpush1.msra.mxu0 0.0
    %1160 = vmatprep.subr.mxu0 0.0
    %1161 = vmatpush1.msra.mxu0 0.0
    %1162 = vmatprep.subr.mxu0 0.0
    %1163 = vmatpush1.msra.mxu0 0.0
    %1164 = vmatprep.subr.mxu0 0.0
    %1165 = vmatpush1.msra.mxu0 0.0
    %1166 = vmatprep.subr.mxu0 0.0
    %1167 = vmatpush1.msra.mxu0 0.0
    %1168 = vmatprep.subr.mxu0 0.0
    %1169 = vmatpush1.msra.mxu0 0.0
    %1170 = vmatprep.subr.mxu0 0.0
    %1171 = vmatpush1.msra.mxu0 0.0
    %1172 = vmatprep.subr.mxu0 0.0
    %1173 = vmatpush1.msra.mxu0 0.0
    %1174 = vmatprep.subr.mxu0 0.0
    %1175 = vmatpush1.msra.mxu0 0.0
    %1176 = vmatprep.subr.mxu0 0.0
    %1177 = vmatpush1.msra.mxu0 0.0
    %1178 = vmatprep.subr.mxu0 0.0
    %1179 = vmatpush1.msra.mxu0 0.0
    %1180 = vmatprep.mubr.f32.mxu0 0.0
    %1181 = vmatmul.mubr.f32.gmra.mrb[0].mxu0 %v133
    %v1182 = vpop.f32.mrb[0].mxu0
    %v1183 = vadd.f32 0.0, %v1182
    %v1184 = vpop.f32.mrb[0].mxu0
    %1185 = vmatprep.mubr.f32.mxu0 0.0
    %1186 = vmatmul.mubr.f32.gmra.mrb[0].mxu0 %v136
    %v1187 = vpop.f32.mrb[0].mxu0
    %v1188 = vadd.f32 0.0, %v1187
    %v1189 = vpop.f32.mrb[0].mxu0
    %1190 = vdwg.mxu0
    %v1191 = vadd.f32 %v1113, %v1183
    %v1192 = vadd.f32 %v1114, %v1188
    %v1193 = vtanh.pop %v1191
    %v1194 = vmul.f32 %v1192, 0.5
    %v1195 = vtanh.pop %v1194
    %v1196 = vmul.f32 %v1195, 0.5
    %v1197 = vadd.f32 %v1196, 0.5
    %v1198 = vmul.f32 %v1193, %v1197
    %1199 = vst [vmem:[#allocation5 + $0x30] sm:$0xff] %v1198
    %v1200 = vld [vmem:[#allocation2 + $0x38] sm:$0xff]
    %1201 = vmatprep.subr.mxu0 0.0
    %1202 = vmatpush1.msra.mxu0 %v1200
    %1203 = vmatprep.subr.mxu0 0.0
    %1204 = vmatpush1.msra.mxu0 0.0
    %1205 = vmatprep.subr.mxu0 0.0
    %1206 = vmatpush1.msra.mxu0 0.0
    %1207 = vmatprep.subr.mxu0 0.0
    %1208 = vmatpush1.msra.mxu0 0.0
    %1209 = vmatprep.subr.mxu0 0.0
    %1210 = vmatpush1.msra.mxu0 0.0
    %1211 = vmatprep.subr.mxu0 0.0
    %1212 = vmatpush1.msra.mxu0 0.0
    %1213 = vmatprep.subr.mxu0 0.0
    %1214 = vmatpush1.msra.mxu0 0.0
    %1215 = vmatprep.subr.mxu0 0.0
    %1216 = vmatpush1.msra.mxu0 0.0
    %1217 = vmatprep.subr.mxu0 0.0
    %1218 = vmatpush1.msra.mxu0 0.0
    %1219 = vmatprep.subr.mxu0 0.0
    %1220 = vmatpush1.msra.mxu0 0.0
    %1221 = vmatprep.subr.mxu0 0.0
    %1222 = vmatpush1.msra.mxu0 0.0
    %1223 = vmatprep.subr.mxu0 0.0
    %1224 = vmatpush1.msra.mxu0 0.0
    %1225 = vmatprep.subr.mxu0 0.0
    %1226 = vmatpush1.msra.mxu0 0.0
    %1227 = vmatprep.subr.mxu0 0.0
    %1228 = vmatpush1.msra.mxu0 0.0
    %1229 = vmatprep.subr.mxu0 0.0
    %1230 = vmatpush1.msra.mxu0 0.0
    %1231 = vmatprep.subr.mxu0 0.0
    %1232 = vmatpush1.msra.mxu0 0.0
    %1233 = vmatprep.subr.mxu0 0.0
    %1234 = vmatpush1.msra.mxu0 0.0
    %1235 = vmatprep.subr.mxu0 0.0
    %1236 = vmatpush1.msra.mxu0 0.0
    %1237 = vmatprep.subr.mxu0 0.0
    %1238 = vmatpush1.msra.mxu0 0.0
    %1239 = vmatprep.subr.mxu0 0.0
    %1240 = vmatpush1.msra.mxu0 0.0
    %1241 = vmatprep.subr.mxu0 0.0
    %1242 = vmatpush1.msra.mxu0 0.0
    %1243 = vmatprep.subr.mxu0 0.0
    %1244 = vmatpush1.msra.mxu0 0.0
    %1245 = vmatprep.subr.mxu0 0.0
    %1246 = vmatpush1.msra.mxu0 0.0
    %1247 = vmatprep.subr.mxu0 0.0
    %1248 = vmatpush1.msra.mxu0 0.0
    %1249 = vmatprep.subr.mxu0 0.0
    %1250 = vmatpush1.msra.mxu0 0.0
    %1251 = vmatprep.subr.mxu0 0.0
    %1252 = vmatpush1.msra.mxu0 0.0
    %1253 = vmatprep.subr.mxu0 0.0
    %1254 = vmatpush1.msra.mxu0 0.0
    %1255 = vmatprep.subr.mxu0 0.0
    %1256 = vmatpush1.msra.mxu0 0.0
    %1257 = vmatprep.subr.mxu0 0.0
    %1258 = vmatpush1.msra.mxu0 0.0
    %1259 = vmatprep.subr.mxu0 0.0
    %1260 = vmatpush1.msra.mxu0 0.0
    %1261 = vmatprep.subr.mxu0 0.0
    %1262 = vmatpush1.msra.mxu0 0.0
    %1263 = vmatprep.subr.mxu0 0.0
    %1264 = vmatpush1.msra.mxu0 0.0
    %1265 = vmatprep.mubr.f32.mxu0 0.0
    %1266 = vmatmul.mubr.f32.gmra.mrb[0].mxu0 %v39
    %v1267 = vpop.f32.mrb[0].mxu0
    %v1268 = vadd.f32 0.0, %v1267
    %v1269 = vpop.f32.mrb[0].mxu0
    %1270 = vmatprep.mubr.f32.mxu0 0.0
    %1271 = vmatmul.mubr.f32.gmra.mrb[0].mxu0 %v42
    %v1272 = vpop.f32.mrb[0].mxu0
    %v1273 = vadd.f32 0.0, %v1272
    %v1274 = vpop.f32.mrb[0].mxu0
    %1275 = vdwg.mxu0
    %v1276 = vadd.f32 %v122, %v1268
    %v1277 = vadd.f32 %v127, %v1273
    %v1278 = vld [vmem:[#allocation2 + $0x40] sm:$0xff]
    %1279 = vmatprep.subr.mxu0 0.0
    %1280 = vmatpush1.msra.mxu0 %v1278
    %1281 = vmatprep.subr.mxu0 0.0
    %1282 = vmatpush1.msra.mxu0 0.0
    %1283 = vmatprep.subr.mxu0 0.0
    %1284 = vmatpush1.msra.mxu0 0.0
    %1285 = vmatprep.subr.mxu0 0.0
    %1286 = vmatpush1.msra.mxu0 0.0
    %1287 = vmatprep.subr.mxu0 0.0
    %1288 = vmatpush1.msra.mxu0 0.0
    %1289 = vmatprep.subr.mxu0 0.0
    %1290 = vmatpush1.msra.mxu0 0.0
    %1291 = vmatprep.subr.mxu0 0.0
    %1292 = vmatpush1.msra.mxu0 0.0
    %1293 = vmatprep.subr.mxu0 0.0
    %1294 = vmatpush1.msra.mxu0 0.0
    %1295 = vmatprep.subr.mxu0 0.0
    %1296 = vmatpush1.msra.mxu0 0.0
    %1297 = vmatprep.subr.mxu0 0.0
    %1298 = vmatpush1.msra.mxu0 0.0
    %1299 = vmatprep.subr.mxu0 0.0
    %1300 = vmatpush1.msra.mxu0 0.0
    %1301 = vmatprep.subr.mxu0 0.0
    %1302 = vmatpush1.msra.mxu0 0.0
    %1303 = vmatprep.subr.mxu0 0.0
    %1304 = vmatpush1.msra.mxu0 0.0
    %1305 = vmatprep.subr.mxu0 0.0
    %1306 = vmatpush1.msra.mxu0 0.0
    %1307 = vmatprep.subr.mxu0 0.0
    %1308 = vmatpush1.msra.mxu0 0.0
    %1309 = vmatprep.subr.mxu0 0.0
    %1310 = vmatpush1.msra.mxu0 0.0
    %1311 = vmatprep.subr.mxu0 0.0
    %1312 = vmatpush1.msra.mxu0 0.0
    %1313 = vmatprep.subr.mxu0 0.0
    %1314 = vmatpush1.msra.mxu0 0.0
    %1315 = vmatprep.subr.mxu0 0.0
    %1316 = vmatpush1.msra.mxu0 0.0
    %1317 = vmatprep.subr.mxu0 0.0
    %1318 = vmatpush1.msra.mxu0 0.0
    %1319 = vmatprep.subr.mxu0 0.0
    %1320 = vmatpush1.msra.mxu0 0.0
    %1321 = vmatprep.subr.mxu0 0.0
    %1322 = vmatpush1.msra.mxu0 0.0
    %1323 = vmatprep.subr.mxu0 0.0
    %1324 = vmatpush1.msra.mxu0 0.0
    %1325 = vmatprep.subr.mxu0 0.0
    %1326 = vmatpush1.msra.mxu0 0.0
    %1327 = vmatprep.subr.mxu0 0.0
    %1328 = vmatpush1.msra.mxu0 0.0
    %1329 = vmatprep.subr.mxu0 0.0
    %1330 = vmatpush1.msra.mxu0 0.0
    %1331 = vmatprep.subr.mxu0 0.0
    %1332 = vmatpush1.msra.mxu0 0.0
    %1333 = vmatprep.subr.mxu0 0.0
    %1334 = vmatpush1.msra.mxu0 0.0
    %1335 = vmatprep.subr.mxu0 0.0
    %1336 = vmatpush1.msra.mxu0 0.0
    %1337 = vmatprep.subr.mxu0 0.0
    %1338 = vmatpush1.msra.mxu0 0.0
    %1339 = vmatprep.subr.mxu0 0.0
    %1340 = vmatpush1.msra.mxu0 0.0
    %1341 = vmatprep.subr.mxu0 0.0
    %1342 = vmatpush1.msra.mxu0 0.0
    %1343 = vmatprep.mubr.f32.mxu0 0.0
    %1344 = vmatmul.mubr.f32.gmra.mrb[0].mxu0 %v133
    %v1345 = vpop.f32.mrb[0].mxu0
    %v1346 = vadd.f32 0.0, %v1345
    %v1347 = vpop.f32.mrb[0].mxu0
    %1348 = vmatprep.mubr.f32.mxu0 0.0
    %1349 = vmatmul.mubr.f32.gmra.mrb[0].mxu0 %v136
    %v1350 = vpop.f32.mrb[0].mxu0
    %v1351 = vadd.f32 0.0, %v1350
    %v1352 = vpop.f32.mrb[0].mxu0
    %1353 = vdwg.mxu0
    %v1354 = vadd.f32 %v1276, %v1346
    %v1355 = vadd.f32 %v1277, %v1351
    %v1356 = vtanh.pop %v1354
    %v1357 = vmul.f32 %v1355, 0.5
    %v1358 = vtanh.pop %v1357
    %v1359 = vmul.f32 %v1358, 0.5
    %v1360 = vadd.f32 %v1359, 0.5
    %v1361 = vmul.f32 %v1356, %v1360
    %1362 = vst [vmem:[#allocation5 + $0x38] sm:$0xff] %v1361
    %v1363 = vld [vmem:[#allocation2 + $0x40] sm:$0xff]
    %1364 = vmatprep.subr.mxu0 0.0
    %1365 = vmatpush1.msra.mxu0 %v1363
    %1366 = vmatprep.subr.mxu0 0.0
    %1367 = vmatpush1.msra.mxu0 0.0
    %1368 = vmatprep.subr.mxu0 0.0
    %1369 = vmatpush1.msra.mxu0 0.0
    %1370 = vmatprep.subr.mxu0 0.0
    %1371 = vmatpush1.msra.mxu0 0.0
    %1372 = vmatprep.subr.mxu0 0.0
    %1373 = vmatpush1.msra.mxu0 0.0
    %1374 = vmatprep.subr.mxu0 0.0
    %1375 = vmatpush1.msra.mxu0 0.0
    %1376 = vmatprep.subr.mxu0 0.0
    %1377 = vmatpush1.msra.mxu0 0.0
    %1378 = vmatprep.subr.mxu0 0.0
    %1379 = vmatpush1.msra.mxu0 0.0
    %1380 = vmatprep.subr.mxu0 0.0
    %1381 = vmatpush1.msra.mxu0 0.0
    %1382 = vmatprep.subr.mxu0 0.0
    %1383 = vmatpush1.msra.mxu0 0.0
    %1384 = vmatprep.subr.mxu0 0.0
    %1385 = vmatpush1.msra.mxu0 0.0
    %1386 = vmatprep.subr.mxu0 0.0
    %1387 = vmatpush1.msra.mxu0 0.0
    %1388 = vmatprep.subr.mxu0 0.0
    %1389 = vmatpush1.msra.mxu0 0.0
    %1390 = vmatprep.subr.mxu0 0.0
    %1391 = vmatpush1.msra.mxu0 0.0
    %1392 = vmatprep.subr.mxu0 0.0
    %1393 = vmatpush1.msra.mxu0 0.0
    %1394 = vmatprep.subr.mxu0 0.0
    %1395 = vmatpush1.msra.mxu0 0.0
    %1396 = vmatprep.subr.mxu0 0.0
    %1397 = vmatpush1.msra.mxu0 0.0
    %1398 = vmatprep.subr.mxu0 0.0
    %1399 = vmatpush1.msra.mxu0 0.0
    %1400 = vmatprep.subr.mxu0 0.0
    %1401 = vmatpush1.msra.mxu0 0.0
    %1402 = vmatprep.subr.mxu0 0.0
    %1403 = vmatpush1.msra.mxu0 0.0
    %1404 = vmatprep.subr.mxu0 0.0
    %1405 = vmatpush1.msra.mxu0 0.0
    %1406 = vmatprep.subr.mxu0 0.0
    %1407 = vmatpush1.msra.mxu0 0.0
    %1408 = vmatprep.subr.mxu0 0.0
    %1409 = vmatpush1.msra.mxu0 0.0
    %1410 = vmatprep.subr.mxu0 0.0
    %1411 = vmatpush1.msra.mxu0 0.0
    %1412 = vmatprep.subr.mxu0 0.0
    %1413 = vmatpush1.msra.mxu0 0.0
    %1414 = vmatprep.subr.mxu0 0.0
    %1415 = vmatpush1.msra.mxu0 0.0
    %1416 = vmatprep.subr.mxu0 0.0
    %1417 = vmatpush1.msra.mxu0 0.0
    %1418 = vmatprep.subr.mxu0 0.0
    %1419 = vmatpush1.msra.mxu0 0.0
    %1420 = vmatprep.subr.mxu0 0.0
    %1421 = vmatpush1.msra.mxu0 0.0
    %1422 = vmatprep.subr.mxu0 0.0
    %1423 = vmatpush1.msra.mxu0 0.0
    %1424 = vmatprep.subr.mxu0 0.0
    %1425 = vmatpush1.msra.mxu0 0.0
    %1426 = vmatprep.subr.mxu0 0.0
    %1427 = vmatpush1.msra.mxu0 0.0
    %1428 = vmatprep.mubr.f32.mxu0 0.0
    %1429 = vmatmul.mubr.f32.gmra.mrb[0].mxu0 %v39
    %v1430 = vpop.f32.mrb[0].mxu0
    %v1431 = vadd.f32 0.0, %v1430
    %v1432 = vpop.f32.mrb[0].mxu0
    %1433 = vmatprep.mubr.f32.mxu0 0.0
    %1434 = vmatmul.mubr.f32.gmra.mrb[0].mxu0 %v42
    %v1435 = vpop.f32.mrb[0].mxu0
    %v1436 = vadd.f32 0.0, %v1435
    %v1437 = vpop.f32.mrb[0].mxu0
    %1438 = vdwg.mxu0
    %v1439 = vadd.f32 %v122, %v1431
    %v1440 = vadd.f32 %v127, %v1436
    %v1441 = vld [vmem:[#allocation2 + $0x48] sm:$0xff]
    %1442 = vmatprep.subr.mxu0 0.0
    %1443 = vmatpush1.msra.mxu0 %v1441
    %1444 = vmatprep.subr.mxu0 0.0
    %1445 = vmatpush1.msra.mxu0 0.0
    %1446 = vmatprep.subr.mxu0 0.0
    %1447 = vmatpush1.msra.mxu0 0.0
    %1448 = vmatprep.subr.mxu0 0.0
    %1449 = vmatpush1.msra.mxu0 0.0
    %1450 = vmatprep.subr.mxu0 0.0
    %1451 = vmatpush1.msra.mxu0 0.0
    %1452 = vmatprep.subr.mxu0 0.0
    %1453 = vmatpush1.msra.mxu0 0.0
    %1454 = vmatprep.subr.mxu0 0.0
    %1455 = vmatpush1.msra.mxu0 0.0
    %1456 = vmatprep.subr.mxu0 0.0
    %1457 = vmatpush1.msra.mxu0 0.0
    %1458 = vmatprep.subr.mxu0 0.0
    %1459 = vmatpush1.msra.mxu0 0.0
    %1460 = vmatprep.subr.mxu0 0.0
    %1461 = vmatpush1.msra.mxu0 0.0
    %1462 = vmatprep.subr.mxu0 0.0
    %1463 = vmatpush1.msra.mxu0 0.0
    %1464 = vmatprep.subr.mxu0 0.0
    %1465 = vmatpush1.msra.mxu0 0.0
    %1466 = vmatprep.subr.mxu0 0.0
    %1467 = vmatpush1.msra.mxu0 0.0
    %1468 = vmatprep.subr.mxu0 0.0
    %1469 = vmatpush1.msra.mxu0 0.0
    %1470 = vmatprep.subr.mxu0 0.0
    %1471 = vmatpush1.msra.mxu0 0.0
    %1472 = vmatprep.subr.mxu0 0.0
    %1473 = vmatpush1.msra.mxu0 0.0
    %1474 = vmatprep.subr.mxu0 0.0
    %1475 = vmatpush1.msra.mxu0 0.0
    %1476 = vmatprep.subr.mxu0 0.0
    %1477 = vmatpush1.msra.mxu0 0.0
    %1478 = vmatprep.subr.mxu0 0.0
    %1479 = vmatpush1.msra.mxu0 0.0
    %1480 = vmatprep.subr.mxu0 0.0
    %1481 = vmatpush1.msra.mxu0 0.0
    %1482 = vmatprep.subr.mxu0 0.0
    %1483 = vmatpush1.msra.mxu0 0.0
    %1484 = vmatprep.subr.mxu0 0.0
    %1485 = vmatpush1.msra.mxu0 0.0
    %1486 = vmatprep.subr.mxu0 0.0
    %1487 = vmatpush1.msra.mxu0 0.0
    %1488 = vmatprep.subr.mxu0 0.0
    %1489 = vmatpush1.msra.mxu0 0.0
    %1490 = vmatprep.subr.mxu0 0.0
    %1491 = vmatpush1.msra.mxu0 0.0
    %1492 = vmatprep.subr.mxu0 0.0
    %1493 = vmatpush1.msra.mxu0 0.0
    %1494 = vmatprep.subr.mxu0 0.0
    %1495 = vmatpush1.msra.mxu0 0.0
    %1496 = vmatprep.subr.mxu0 0.0
    %1497 = vmatpush1.msra.mxu0 0.0
    %1498 = vmatprep.subr.mxu0 0.0
    %1499 = vmatpush1.msra.mxu0 0.0
    %1500 = vmatprep.subr.mxu0 0.0
    %1501 = vmatpush1.msra.mxu0 0.0
    %1502 = vmatprep.subr.mxu0 0.0
    %1503 = vmatpush1.msra.mxu0 0.0
    %1504 = vmatprep.subr.mxu0 0.0
    %1505 = vmatpush1.msra.mxu0 0.0
    %1506 = vmatprep.mubr.f32.mxu0 0.0
    %1507 = vmatmul.mubr.f32.gmra.mrb[0].mxu0 %v133
    %v1508 = vpop.f32.mrb[0].mxu0
    %v1509 = vadd.f32 0.0, %v1508
    %v1510 = vpop.f32.mrb[0].mxu0
    %1511 = vmatprep.mubr.f32.mxu0 0.0
    %1512 = vmatmul.mubr.f32.gmra.mrb[0].mxu0 %v136
    %v1513 = vpop.f32.mrb[0].mxu0
    %v1514 = vadd.f32 0.0, %v1513
    %v1515 = vpop.f32.mrb[0].mxu0
    %1516 = vdwg.mxu0
    %v1517 = vadd.f32 %v1439, %v1509
    %v1518 = vadd.f32 %v1440, %v1514
    %v1519 = vtanh.pop %v1517
    %v1520 = vmul.f32 %v1518, 0.5
    %v1521 = vtanh.pop %v1520
    %v1522 = vmul.f32 %v1521, 0.5
    %v1523 = vadd.f32 %v1522, 0.5
    %v1524 = vmul.f32 %v1519, %v1523
    %1525 = vst [vmem:[#allocation5 + $0x40] sm:$0xff] %v1524
    %v1526 = vld [vmem:[#allocation2 + $0x48] sm:$0xff]
    %1527 = vmatprep.subr.mxu0 0.0
    %1528 = vmatpush1.msra.mxu0 %v1526
    %1529 = vmatprep.subr.mxu0 0.0
    %1530 = vmatpush1.msra.mxu0 0.0
    %1531 = vmatprep.subr.mxu0 0.0
    %1532 = vmatpush1.msra.mxu0 0.0
    %1533 = vmatprep.subr.mxu0 0.0
    %1534 = vmatpush1.msra.mxu0 0.0
    %1535 = vmatprep.subr.mxu0 0.0
    %1536 = vmatpush1.msra.mxu0 0.0
    %1537 = vmatprep.subr.mxu0 0.0
    %1538 = vmatpush1.msra.mxu0 0.0
    %1539 = vmatprep.subr.mxu0 0.0
    %1540 = vmatpush1.msra.mxu0 0.0
    %1541 = vmatprep.subr.mxu0 0.0
    %1542 = vmatpush1.msra.mxu0 0.0
    %1543 = vmatprep.subr.mxu0 0.0
    %1544 = vmatpush1.msra.mxu0 0.0
    %1545 = vmatprep.subr.mxu0 0.0
    %1546 = vmatpush1.msra.mxu0 0.0
    %1547 = vmatprep.subr.mxu0 0.0
    %1548 = vmatpush1.msra.mxu0 0.0
    %1549 = vmatprep.subr.mxu0 0.0
    %1550 = vmatpush1.msra.mxu0 0.0
    %1551 = vmatprep.subr.mxu0 0.0
    %1552 = vmatpush1.msra.mxu0 0.0
    %1553 = vmatprep.subr.mxu0 0.0
    %1554 = vmatpush1.msra.mxu0 0.0
    %1555 = vmatprep.subr.mxu0 0.0
    %1556 = vmatpush1.msra.mxu0 0.0
    %1557 = vmatprep.subr.mxu0 0.0
    %1558 = vmatpush1.msra.mxu0 0.0
    %1559 = vmatprep.subr.mxu0 0.0
    %1560 = vmatpush1.msra.mxu0 0.0
    %1561 = vmatprep.subr.mxu0 0.0
    %1562 = vmatpush1.msra.mxu0 0.0
    %1563 = vmatprep.subr.mxu0 0.0
    %1564 = vmatpush1.msra.mxu0 0.0
    %1565 = vmatprep.subr.mxu0 0.0
    %1566 = vmatpush1.msra.mxu0 0.0
    %1567 = vmatprep.subr.mxu0 0.0
    %1568 = vmatpush1.msra.mxu0 0.0
    %1569 = vmatprep.subr.mxu0 0.0
    %1570 = vmatpush1.msra.mxu0 0.0
    %1571 = vmatprep.subr.mxu0 0.0
    %1572 = vmatpush1.msra.mxu0 0.0
    %1573 = vmatprep.subr.mxu0 0.0
    %1574 = vmatpush1.msra.mxu0 0.0
    %1575 = vmatprep.subr.mxu0 0.0
    %1576 = vmatpush1.msra.mxu0 0.0
    %1577 = vmatprep.subr.mxu0 0.0
    %1578 = vmatpush1.msra.mxu0 0.0
    %1579 = vmatprep.subr.mxu0 0.0
    %1580 = vmatpush1.msra.mxu0 0.0
    %1581 = vmatprep.subr.mxu0 0.0
    %1582 = vmatpush1.msra.mxu0 0.0
    %1583 = vmatprep.subr.mxu0 0.0
    %1584 = vmatpush1.msra.mxu0 0.0
    %1585 = vmatprep.subr.mxu0 0.0
    %1586 = vmatpush1.msra.mxu0 0.0
    %1587 = vmatprep.subr.mxu0 0.0
    %1588 = vmatpush1.msra.mxu0 0.0
    %1589 = vmatprep.subr.mxu0 0.0
    %1590 = vmatpush1.msra.mxu0 0.0
    %1591 = vmatprep.mubr.f32.mxu0 0.0
    %1592 = vmatmul.mubr.f32.gmra.mrb[0].mxu0 %v39
    %v1593 = vpop.f32.mrb[0].mxu0
    %v1594 = vadd.f32 0.0, %v1593
    %v1595 = vpop.f32.mrb[0].mxu0
    %1596 = vmatprep.mubr.f32.mxu0 0.0
    %1597 = vmatmul.mubr.f32.gmra.mrb[0].mxu0 %v42
    %v1598 = vpop.f32.mrb[0].mxu0
    %v1599 = vadd.f32 0.0, %v1598
    %v1600 = vpop.f32.mrb[0].mxu0
    %1601 = vdwg.mxu0
    %v1602 = vadd.f32 %v122, %v1594
    %v1603 = vadd.f32 %v127, %v1599
    %v1604 = vld [vmem:[#allocation2 + $0x50] sm:$0xff]
    %1605 = vmatprep.subr.mxu0 0.0
    %1606 = vmatpush1.msra.mxu0 %v1604
    %1607 = vmatprep.subr.mxu0 0.0
    %1608 = vmatpush1.msra.mxu0 0.0
    %1609 = vmatprep.subr.mxu0 0.0
    %1610 = vmatpush1.msra.mxu0 0.0
    %1611 = vmatprep.subr.mxu0 0.0
    %1612 = vmatpush1.msra.mxu0 0.0
    %1613 = vmatprep.subr.mxu0 0.0
    %1614 = vmatpush1.msra.mxu0 0.0
    %1615 = vmatprep.subr.mxu0 0.0
    %1616 = vmatpush1.msra.mxu0 0.0
    %1617 = vmatprep.subr.mxu0 0.0
    %1618 = vmatpush1.msra.mxu0 0.0
    %1619 = vmatprep.subr.mxu0 0.0
    %1620 = vmatpush1.msra.mxu0 0.0
    %1621 = vmatprep.subr.mxu0 0.0
    %1622 = vmatpush1.msra.mxu0 0.0
    %1623 = vmatprep.subr.mxu0 0.0
    %1624 = vmatpush1.msra.mxu0 0.0
    %1625 = vmatprep.subr.mxu0 0.0
    %1626 = vmatpush1.msra.mxu0 0.0
    %1627 = vmatprep.subr.mxu0 0.0
    %1628 = vmatpush1.msra.mxu0 0.0
    %1629 = vmatprep.subr.mxu0 0.0
    %1630 = vmatpush1.msra.mxu0 0.0
    %1631 = vmatprep.subr.mxu0 0.0
    %1632 = vmatpush1.msra.mxu0 0.0
    %1633 = vmatprep.subr.mxu0 0.0
    %1634 = vmatpush1.msra.mxu0 0.0
    %1635 = vmatprep.subr.mxu0 0.0
    %1636 = vmatpush1.msra.mxu0 0.0
    %1637 = vmatprep.subr.mxu0 0.0
    %1638 = vmatpush1.msra.mxu0 0.0
    %1639 = vmatprep.subr.mxu0 0.0
    %1640 = vmatpush1.msra.mxu0 0.0
    %1641 = vmatprep.subr.mxu0 0.0
    %1642 = vmatpush1.msra.mxu0 0.0
    %1643 = vmatprep.subr.mxu0 0.0
    %1644 = vmatpush1.msra.mxu0 0.0
    %1645 = vmatprep.subr.mxu0 0.0
    %1646 = vmatpush1.msra.mxu0 0.0
    %1647 = vmatprep.subr.mxu0 0.0
    %1648 = vmatpush1.msra.mxu0 0.0
    %1649 = vmatprep.subr.mxu0 0.0
    %1650 = vmatpush1.msra.mxu0 0.0
    %1651 = vmatprep.subr.mxu0 0.0
    %1652 = vmatpush1.msra.mxu0 0.0
    %1653 = vmatprep.subr.mxu0 0.0
    %1654 = vmatpush1.msra.mxu0 0.0
    %1655 = vmatprep.subr.mxu0 0.0
    %1656 = vmatpush1.msra.mxu0 0.0
    %1657 = vmatprep.subr.mxu0 0.0
    %1658 = vmatpush1.msra.mxu0 0.0
    %1659 = vmatprep.subr.mxu0 0.0
    %1660 = vmatpush1.msra.mxu0 0.0
    %1661 = vmatprep.subr.mxu0 0.0
    %1662 = vmatpush1.msra.mxu0 0.0
    %1663 = vmatprep.subr.mxu0 0.0
    %1664 = vmatpush1.msra.mxu0 0.0
    %1665 = vmatprep.subr.mxu0 0.0
    %1666 = vmatpush1.msra.mxu0 0.0
    %1667 = vmatprep.subr.mxu0 0.0
    %1668 = vmatpush1.msra.mxu0 0.0
    %1669 = vmatprep.mubr.f32.mxu0 0.0
    %1670 = vmatmul.mubr.f32.gmra.mrb[0].mxu0 %v133
    %v1671 = vpop.f32.mrb[0].mxu0
    %v1672 = vadd.f32 0.0, %v1671
    %v1673 = vpop.f32.mrb[0].mxu0
    %1674 = vmatprep.mubr.f32.mxu0 0.0
    %1675 = vmatmul.mubr.f32.gmra.mrb[0].mxu0 %v136
    %v1676 = vpop.f32.mrb[0].mxu0
    %v1677 = vadd.f32 0.0, %v1676
    %v1678 = vpop.f32.mrb[0].mxu0
    %1679 = vdwg.mxu0
    %v1680 = vadd.f32 %v1602, %v1672
    %v1681 = vadd.f32 %v1603, %v1677
    %v1682 = vtanh.pop %v1680
    %v1683 = vmul.f32 %v1681, 0.5
    %v1684 = vtanh.pop %v1683
    %v1685 = vmul.f32 %v1684, 0.5
    %v1686 = vadd.f32 %v1685, 0.5
    %v1687 = vmul.f32 %v1682, %v1686
    %1688 = vst [vmem:[#allocation5 + $0x48] sm:$0xff] %v1687
    %v1689 = vld [vmem:[#allocation2 + $0x50] sm:$0xff]
    %1690 = vmatprep.subr.mxu0 0.0
    %1691 = vmatpush1.msra.mxu0 %v1689
    %1692 = vmatprep.subr.mxu0 0.0
    %1693 = vmatpush1.msra.mxu0 0.0
    %1694 = vmatprep.subr.mxu0 0.0
    %1695 = vmatpush1.msra.mxu0 0.0
    %1696 = vmatprep.subr.mxu0 0.0
    %1697 = vmatpush1.msra.mxu0 0.0
    %1698 = vmatprep.subr.mxu0 0.0
    %1699 = vmatpush1.msra.mxu0 0.0
    %1700 = vmatprep.subr.mxu0 0.0
    %1701 = vmatpush1.msra.mxu0 0.0
    %1702 = vmatprep.subr.mxu0 0.0
    %1703 = vmatpush1.msra.mxu0 0.0
    %1704 = vmatprep.subr.mxu0 0.0
    %1705 = vmatpush1.msra.mxu0 0.0
    %1706 = vmatprep.subr.mxu0 0.0
    %1707 = vmatpush1.msra.mxu0 0.0
    %1708 = vmatprep.subr.mxu0 0.0
    %1709 = vmatpush1.msra.mxu0 0.0
    %1710 = vmatprep.subr.mxu0 0.0
    %1711 = vmatpush1.msra.mxu0 0.0
    %1712 = vmatprep.subr.mxu0 0.0
    %1713 = vmatpush1.msra.mxu0 0.0
    %1714 = vmatprep.subr.mxu0 0.0
    %1715 = vmatpush1.msra.mxu0 0.0
    %1716 = vmatprep.subr.mxu0 0.0
    %1717 = vmatpush1.msra.mxu0 0.0
    %1718 = vmatprep.subr.mxu0 0.0
    %1719 = vmatpush1.msra.mxu0 0.0
    %1720 = vmatprep.subr.mxu0 0.0
    %1721 = vmatpush1.msra.mxu0 0.0
    %1722 = vmatprep.subr.mxu0 0.0
    %1723 = vmatpush1.msra.mxu0 0.0
    %1724 = vmatprep.subr.mxu0 0.0
    %1725 = vmatpush1.msra.mxu0 0.0
    %1726 = vmatprep.subr.mxu0 0.0
    %1727 = vmatpush1.msra.mxu0 0.0
    %1728 = vmatprep.subr.mxu0 0.0
    %1729 = vmatpush1.msra.mxu0 0.0
    %1730 = vmatprep.subr.mxu0 0.0
    %1731 = vmatpush1.msra.mxu0 0.0
    %1732 = vmatprep.subr.mxu0 0.0
    %1733 = vmatpush1.msra.mxu0 0.0
    %1734 = vmatprep.subr.mxu0 0.0
    %1735 = vmatpush1.msra.mxu0 0.0
    %1736 = vmatprep.subr.mxu0 0.0
    %1737 = vmatpush1.msra.mxu0 0.0
    %1738 = vmatprep.subr.mxu0 0.0
    %1739 = vmatpush1.msra.mxu0 0.0
    %1740 = vmatprep.subr.mxu0 0.0
    %1741 = vmatpush1.msra.mxu0 0.0
    %1742 = vmatprep.subr.mxu0 0.0
    %1743 = vmatpush1.msra.mxu0 0.0
    %1744 = vmatprep.subr.mxu0 0.0
    %1745 = vmatpush1.msra.mxu0 0.0
    %1746 = vmatprep.subr.mxu0 0.0
    %1747 = vmatpush1.msra.mxu0 0.0
    %1748 = vmatprep.subr.mxu0 0.0
    %1749 = vmatpush1.msra.mxu0 0.0
    %1750 = vmatprep.subr.mxu0 0.0
    %1751 = vmatpush1.msra.mxu0 0.0
    %1752 = vmatprep.subr.mxu0 0.0
    %1753 = vmatpush1.msra.mxu0 0.0
    %1754 = vmatprep.mubr.f32.mxu0 0.0
    %1755 = vmatmul.mubr.f32.gmra.mrb[0].mxu0 %v39
    %v1756 = vpop.f32.mrb[0].mxu0
    %v1757 = vadd.f32 0.0, %v1756
    %v1758 = vpop.f32.mrb[0].mxu0
    %1759 = vmatprep.mubr.f32.mxu0 0.0
    %1760 = vmatmul.mubr.f32.gmra.mrb[0].mxu0 %v42
    %v1761 = vpop.f32.mrb[0].mxu0
    %v1762 = vadd.f32 0.0, %v1761
    %v1763 = vpop.f32.mrb[0].mxu0
    %1764 = vdwg.mxu0
    %v1765 = vadd.f32 %v122, %v1757
    %v1766 = vadd.f32 %v127, %v1762
    %v1767 = vld [vmem:[#allocation2 + $0x58] sm:$0xff]
    %1768 = vmatprep.subr.mxu0 0.0
    %1769 = vmatpush1.msra.mxu0 %v1767
    %1770 = vmatprep.subr.mxu0 0.0
    %1771 = vmatpush1.msra.mxu0 0.0
    %1772 = vmatprep.subr.mxu0 0.0
    %1773 = vmatpush1.msra.mxu0 0.0
    %1774 = vmatprep.subr.mxu0 0.0
    %1775 = vmatpush1.msra.mxu0 0.0
    %1776 = vmatprep.subr.mxu0 0.0
    %1777 = vmatpush1.msra.mxu0 0.0
    %1778 = vmatprep.subr.mxu0 0.0
    %1779 = vmatpush1.msra.mxu0 0.0
    %1780 = vmatprep.subr.mxu0 0.0
    %1781 = vmatpush1.msra.mxu0 0.0
    %1782 = vmatprep.subr.mxu0 0.0
    %1783 = vmatpush1.msra.mxu0 0.0
    %1784 = vmatprep.subr.mxu0 0.0
    %1785 = vmatpush1.msra.mxu0 0.0
    %1786 = vmatprep.subr.mxu0 0.0
    %1787 = vmatpush1.msra.mxu0 0.0
    %1788 = vmatprep.subr.mxu0 0.0
    %1789 = vmatpush1.msra.mxu0 0.0
    %1790 = vmatprep.subr.mxu0 0.0
    %1791 = vmatpush1.msra.mxu0 0.0
    %1792 = vmatprep.subr.mxu0 0.0
    %1793 = vmatpush1.msra.mxu0 0.0
    %1794 = vmatprep.subr.mxu0 0.0
    %1795 = vmatpush1.msra.mxu0 0.0
    %1796 = vmatprep.subr.mxu0 0.0
    %1797 = vmatpush1.msra.mxu0 0.0
    %1798 = vmatprep.subr.mxu0 0.0
    %1799 = vmatpush1.msra.mxu0 0.0
    %1800 = vmatprep.subr.mxu0 0.0
    %1801 = vmatpush1.msra.mxu0 0.0
    %1802 = vmatprep.subr.mxu0 0.0
    %1803 = vmatpush1.msra.mxu0 0.0
    %1804 = vmatprep.subr.mxu0 0.0
    %1805 = vmatpush1.msra.mxu0 0.0
    %1806 = vmatprep.subr.mxu0 0.0
    %1807 = vmatpush1.msra.mxu0 0.0
    %1808 = vmatprep.subr.mxu0 0.0
    %1809 = vmatpush1.msra.mxu0 0.0
    %1810 = vmatprep.subr.mxu0 0.0
    %1811 = vmatpush1.msra.mxu0 0.0
    %1812 = vmatprep.subr.mxu0 0.0
    %1813 = vmatpush1.msra.mxu0 0.0
    %1814 = vmatprep.subr.mxu0 0.0
    %1815 = vmatpush1.msra.mxu0 0.0
    %1816 = vmatprep.subr.mxu0 0.0
    %1817 = vmatpush1.msra.mxu0 0.0
    %1818 = vmatprep.subr.mxu0 0.0
    %1819 = vmatpush1.msra.mxu0 0.0
    %1820 = vmatprep.subr.mxu0 0.0
    %1821 = vmatpush1.msra.mxu0 0.0
    %1822 = vmatprep.subr.mxu0 0.0
    %1823 = vmatpush1.msra.mxu0 0.0
    %1824 = vmatprep.subr.mxu0 0.0
    %1825 = vmatpush1.msra.mxu0 0.0
    %1826 = vmatprep.subr.mxu0 0.0
    %1827 = vmatpush1.msra.mxu0 0.0
    %1828 = vmatprep.subr.mxu0 0.0
    %1829 = vmatpush1.msra.mxu0 0.0
    %1830 = vmatprep.subr.mxu0 0.0
    %1831 = vmatpush1.msra.mxu0 0.0
    %1832 = vmatprep.mubr.f32.mxu0 0.0
    %1833 = vmatmul.mubr.f32.gmra.mrb[0].mxu0 %v133
    %v1834 = vpop.f32.mrb[0].mxu0
    %v1835 = vadd.f32 0.0, %v1834
    %v1836 = vpop.f32.mrb[0].mxu0
    %1837 = vmatprep.mubr.f32.mxu0 0.0
    %1838 = vmatmul.mubr.f32.gmra.mrb[0].mxu0 %v136
    %v1839 = vpop.f32.mrb[0].mxu0
    %v1840 = vadd.f32 0.0, %v1839
    %v1841 = vpop.f32.mrb[0].mxu0
    %1842 = vdwg.mxu0
    %v1843 = vadd.f32 %v1765, %v1835
    %v1844 = vadd.f32 %v1766, %v1840
    %v1845 = vtanh.pop %v1843
    %v1846 = vmul.f32 %v1844, 0.5
    %v1847 = vtanh.pop %v1846
    %v1848 = vmul.f32 %v1847, 0.5
    %v1849 = vadd.f32 %v1848, 0.5
    %v1850 = vmul.f32 %v1845, %v1849
    %1851 = vst [vmem:[#allocation5 + $0x50] sm:$0xff] %v1850
    %v1852 = vld [vmem:[#allocation2 + $0x58] sm:$0xff]
    %1853 = vmatprep.subr.mxu0 0.0
    %1854 = vmatpush1.msra.mxu0 %v1852
    %1855 = vmatprep.subr.mxu0 0.0
    %1856 = vmatpush1.msra.mxu0 0.0
    %1857 = vmatprep.subr.mxu0 0.0
    %1858 = vmatpush1.msra.mxu0 0.0
    %1859 = vmatprep.subr.mxu0 0.0
    %1860 = vmatpush1.msra.mxu0 0.0
    %1861 = vmatprep.subr.mxu0 0.0
    %1862 = vmatpush1.msra.mxu0 0.0
    %1863 = vmatprep.subr.mxu0 0.0
    %1864 = vmatpush1.msra.mxu0 0.0
    %1865 = vmatprep.subr.mxu0 0.0
    %1866 = vmatpush1.msra.mxu0 0.0
    %1867 = vmatprep.subr.mxu0 0.0
    %1868 = vmatpush1.msra.mxu0 0.0
    %1869 = vmatprep.subr.mxu0 0.0
    %1870 = vmatpush1.msra.mxu0 0.0
    %1871 = vmatprep.subr.mxu0 0.0
    %1872 = vmatpush1.msra.mxu0 0.0
    %1873 = vmatprep.subr.mxu0 0.0
    %1874 = vmatpush1.msra.mxu0 0.0
    %1875 = vmatprep.subr.mxu0 0.0
    %1876 = vmatpush1.msra.mxu0 0.0
    %1877 = vmatprep.subr.mxu0 0.0
    %1878 = vmatpush1.msra.mxu0 0.0
    %1879 = vmatprep.subr.mxu0 0.0
    %1880 = vmatpush1.msra.mxu0 0.0
    %1881 = vmatprep.subr.mxu0 0.0
    %1882 = vmatpush1.msra.mxu0 0.0
    %1883 = vmatprep.subr.mxu0 0.0
    %1884 = vmatpush1.msra.mxu0 0.0
    %1885 = vmatprep.subr.mxu0 0.0
    %1886 = vmatpush1.msra.mxu0 0.0
    %1887 = vmatprep.subr.mxu0 0.0
    %1888 = vmatpush1.msra.mxu0 0.0
    %1889 = vmatprep.subr.mxu0 0.0
    %1890 = vmatpush1.msra.mxu0 0.0
    %1891 = vmatprep.subr.mxu0 0.0
    %1892 = vmatpush1.msra.mxu0 0.0
    %1893 = vmatprep.subr.mxu0 0.0
    %1894 = vmatpush1.msra.mxu0 0.0
    %1895 = vmatprep.subr.mxu0 0.0
    %1896 = vmatpush1.msra.mxu0 0.0
    %1897 = vmatprep.subr.mxu0 0.0
    %1898 = vmatpush1.msra.mxu0 0.0
    %1899 = vmatprep.subr.mxu0 0.0
    %1900 = vmatpush1.msra.mxu0 0.0
    %1901 = vmatprep.subr.mxu0 0.0
    %1902 = vmatpush1.msra.mxu0 0.0
    %1903 = vmatprep.subr.mxu0 0.0
    %1904 = vmatpush1.msra.mxu0 0.0
    %1905 = vmatprep.subr.mxu0 0.0
    %1906 = vmatpush1.msra.mxu0 0.0
    %1907 = vmatprep.subr.mxu0 0.0
    %1908 = vmatpush1.msra.mxu0 0.0
    %1909 = vmatprep.subr.mxu0 0.0
    %1910 = vmatpush1.msra.mxu0 0.0
    %1911 = vmatprep.subr.mxu0 0.0
    %1912 = vmatpush1.msra.mxu0 0.0
    %1913 = vmatprep.subr.mxu0 0.0
    %1914 = vmatpush1.msra.mxu0 0.0
    %1915 = vmatprep.subr.mxu0 0.0
    %1916 = vmatpush1.msra.mxu0 0.0
    %1917 = vmatprep.mubr.f32.mxu0 0.0
    %1918 = vmatmul.mubr.f32.gmra.mrb[0].mxu0 %v39
    %v1919 = vpop.f32.mrb[0].mxu0
    %v1920 = vadd.f32 0.0, %v1919
    %v1921 = vpop.f32.mrb[0].mxu0
    %1922 = vmatprep.mubr.f32.mxu0 0.0
    %1923 = vmatmul.mubr.f32.gmra.mrb[0].mxu0 %v42
    %v1924 = vpop.f32.mrb[0].mxu0
    %v1925 = vadd.f32 0.0, %v1924
    %v1926 = vpop.f32.mrb[0].mxu0
    %1927 = vdwg.mxu0
    %v1928 = vadd.f32 %v122, %v1920
    %v1929 = vadd.f32 %v127, %v1925
    %v1930 = vld [vmem:[#allocation2 + $0x60] sm:$0xff]
    %1931 = vmatprep.subr.mxu0 0.0
    %1932 = vmatpush1.msra.mxu0 %v1930
    %1933 = vmatprep.subr.mxu0 0.0
    %1934 = vmatpush1.msra.mxu0 0.0
    %1935 = vmatprep.subr.mxu0 0.0
    %1936 = vmatpush1.msra.mxu0 0.0
    %1937 = vmatprep.subr.mxu0 0.0
    %1938 = vmatpush1.msra.mxu0 0.0
    %1939 = vmatprep.subr.mxu0 0.0
    %1940 = vmatpush1.msra.mxu0 0.0
    %1941 = vmatprep.subr.mxu0 0.0
    %1942 = vmatpush1.msra.mxu0 0.0
    %1943 = vmatprep.subr.mxu0 0.0
    %1944 = vmatpush1.msra.mxu0 0.0
    %1945 = vmatprep.subr.mxu0 0.0
    %1946 = vmatpush1.msra.mxu0 0.0
    %1947 = vmatprep.subr.mxu0 0.0
    %1948 = vmatpush1.msra.mxu0 0.0
    %1949 = vmatprep.subr.mxu0 0.0
    %1950 = vmatpush1.msra.mxu0 0.0
    %1951 = vmatprep.subr.mxu0 0.0
    %1952 = vmatpush1.msra.mxu0 0.0
    %1953 = vmatprep.subr.mxu0 0.0
    %1954 = vmatpush1.msra.mxu0 0.0
    %1955 = vmatprep.subr.mxu0 0.0
    %1956 = vmatpush1.msra.mxu0 0.0
    %1957 = vmatprep.subr.mxu0 0.0
    %1958 = vmatpush1.msra.mxu0 0.0
    %1959 = vmatprep.subr.mxu0 0.0
    %1960 = vmatpush1.msra.mxu0 0.0
    %1961 = vmatprep.subr.mxu0 0.0
    %1962 = vmatpush1.msra.mxu0 0.0
    %1963 = vmatprep.subr.mxu0 0.0
    %1964 = vmatpush1.msra.mxu0 0.0
    %1965 = vmatprep.subr.mxu0 0.0
    %1966 = vmatpush1.msra.mxu0 0.0
    %1967 = vmatprep.subr.mxu0 0.0
    %1968 = vmatpush1.msra.mxu0 0.0
    %1969 = vmatprep.subr.mxu0 0.0
    %1970 = vmatpush1.msra.mxu0 0.0
    %1971 = vmatprep.subr.mxu0 0.0
    %1972 = vmatpush1.msra.mxu0 0.0
    %1973 = vmatprep.subr.mxu0 0.0
    %1974 = vmatpush1.msra.mxu0 0.0
    %1975 = vmatprep.subr.mxu0 0.0
    %1976 = vmatpush1.msra.mxu0 0.0
    %1977 = vmatprep.subr.mxu0 0.0
    %1978 = vmatpush1.msra.mxu0 0.0
    %1979 = vmatprep.subr.mxu0 0.0
    %1980 = vmatpush1.msra.mxu0 0.0
    %1981 = vmatprep.subr.mxu0 0.0
    %1982 = vmatpush1.msra.mxu0 0.0
    %1983 = vmatprep.subr.mxu0 0.0
    %1984 = vmatpush1.msra.mxu0 0.0
    %1985 = vmatprep.subr.mxu0 0.0
    %1986 = vmatpush1.msra.mxu0 0.0
    %1987 = vmatprep.subr.mxu0 0.0
    %1988 = vmatpush1.msra.mxu0 0.0
    %1989 = vmatprep.subr.mxu0 0.0
    %1990 = vmatpush1.msra.mxu0 0.0
    %1991 = vmatprep.subr.mxu0 0.0
    %1992 = vmatpush1.msra.mxu0 0.0
    %1993 = vmatprep.subr.mxu0 0.0
    %1994 = vmatpush1.msra.mxu0 0.0
    %1995 = vmatprep.mubr.f32.mxu0 0.0
    %1996 = vmatmul.mubr.f32.gmra.mrb[0].mxu0 %v133
    %v1997 = vpop.f32.mrb[0].mxu0
    %v1998 = vadd.f32 0.0, %v1997
    %v1999 = vpop.f32.mrb[0].mxu0
    %2000 = vmatprep.mubr.f32.mxu0 0.0
    %2001 = vmatmul.mubr.f32.gmra.mrb[0].mxu0 %v136
    %v2002 = vpop.f32.mrb[0].mxu0
    %v2003 = vadd.f32 0.0, %v2002
    %v2004 = vpop.f32.mrb[0].mxu0
    %2005 = vdwg.mxu0
    %v2006 = vadd.f32 %v1928, %v1998
    %v2007 = vadd.f32 %v1929, %v2003
    %v2008 = vtanh.pop %v2006
    %v2009 = vmul.f32 %v2007, 0.5
    %v2010 = vtanh.pop %v2009
    %v2011 = vmul.f32 %v2010, 0.5
    %v2012 = vadd.f32 %v2011, 0.5
    %v2013 = vmul.f32 %v2008, %v2012
    %2014 = vst [vmem:[#allocation5 + $0x58] sm:$0xff] %v2013
    %v2015 = vld [vmem:[#allocation2 + $0x60] sm:$0xff]
    %2016 = vmatprep.subr.mxu0 0.0
    %2017 = vmatpush1.msra.mxu0 %v2015
    %2018 = vmatprep.subr.mxu0 0.0
    %2019 = vmatpush1.msra.mxu0 0.0
    %2020 = vmatprep.subr.mxu0 0.0
    %2021 = vmatpush1.msra.mxu0 0.0
    %2022 = vmatprep.subr.mxu0 0.0
    %2023 = vmatpush1.msra.mxu0 0.0
    %2024 = vmatprep.subr.mxu0 0.0
    %2025 = vmatpush1.msra.mxu0 0.0
    %2026 = vmatprep.subr.mxu0 0.0
    %2027 = vmatpush1.msra.mxu0 0.0
    %2028 = vmatprep.subr.mxu0 0.0
    %2029 = vmatpush1.msra.mxu0 0.0
    %2030 = vmatprep.subr.mxu0 0.0
    %2031 = vmatpush1.msra.mxu0 0.0
    %2032 = vmatprep.subr.mxu0 0.0
    %2033 = vmatpush1.msra.mxu0 0.0
    %2034 = vmatprep.subr.mxu0 0.0
    %2035 = vmatpush1.msra.mxu0 0.0
    %2036 = vmatprep.subr.mxu0 0.0
    %2037 = vmatpush1.msra.mxu0 0.0
    %2038 = vmatprep.subr.mxu0 0.0
    %2039 = vmatpush1.msra.mxu0 0.0
    %2040 = vmatprep.subr.mxu0 0.0
    %2041 = vmatpush1.msra.mxu0 0.0
    %2042 = vmatprep.subr.mxu0 0.0
    %2043 = vmatpush1.msra.mxu0 0.0
    %2044 = vmatprep.subr.mxu0 0.0
    %2045 = vmatpush1.msra.mxu0 0.0
    %2046 = vmatprep.subr.mxu0 0.0
    %2047 = vmatpush1.msra.mxu0 0.0
    %2048 = vmatprep.subr.mxu0 0.0
    %2049 = vmatpush1.msra.mxu0 0.0
    %2050 = vmatprep.subr.mxu0 0.0
    %2051 = vmatpush1.msra.mxu0 0.0
    %2052 = vmatprep.subr.mxu0 0.0
    %2053 = vmatpush1.msra.mxu0 0.0
    %2054 = vmatprep.subr.mxu0 0.0
    %2055 = vmatpush1.msra.mxu0 0.0
    %2056 = vmatprep.subr.mxu0 0.0
    %2057 = vmatpush1.msra.mxu0 0.0
    %2058 = vmatprep.subr.mxu0 0.0
    %2059 = vmatpush1.msra.mxu0 0.0
    %2060 = vmatprep.subr.mxu0 0.0
    %2061 = vmatpush1.msra.mxu0 0.0
    %2062 = vmatprep.subr.mxu0 0.0
    %2063 = vmatpush1.msra.mxu0 0.0
    %2064 = vmatprep.subr.mxu0 0.0
    %2065 = vmatpush1.msra.mxu0 0.0
    %2066 = vmatprep.subr.mxu0 0.0
    %2067 = vmatpush1.msra.mxu0 0.0
    %2068 = vmatprep.subr.mxu0 0.0
    %2069 = vmatpush1.msra.mxu0 0.0
    %2070 = vmatprep.subr.mxu0 0.0
    %2071 = vmatpush1.msra.mxu0 0.0
    %2072 = vmatprep.subr.mxu0 0.0
    %2073 = vmatpush1.msra.mxu0 0.0
    %2074 = vmatprep.subr.mxu0 0.0
    %2075 = vmatpush1.msra.mxu0 0.0
    %2076 = vmatprep.subr.mxu0 0.0
    %2077 = vmatpush1.msra.mxu0 0.0
    %2078 = vmatprep.subr.mxu0 0.0
    %2079 = vmatpush1.msra.mxu0 0.0
    %2080 = vmatprep.mubr.f32.mxu0 0.0
    %2081 = vmatmul.mubr.f32.gmra.mrb[0].mxu0 %v39
    %v2082 = vpop.f32.mrb[0].mxu0
    %v2083 = vadd.f32 0.0, %v2082
    %v2084 = vpop.f32.mrb[0].mxu0
    %2085 = vmatprep.mubr.f32.mxu0 0.0
    %2086 = vmatmul.mubr.f32.gmra.mrb[0].mxu0 %v42
    %v2087 = vpop.f32.mrb[0].mxu0
    %v2088 = vadd.f32 0.0, %v2087
    %v2089 = vpop.f32.mrb[0].mxu0
    %2090 = vdwg.mxu0
    %v2091 = vadd.f32 %v122, %v2083
    %v2092 = vadd.f32 %v127, %v2088
    %v2093 = vld [vmem:[#allocation2 + $0x68] sm:$0xff]
    %2094 = vmatprep.subr.mxu0 0.0
    %2095 = vmatpush1.msra.mxu0 %v2093
    %2096 = vmatprep.subr.mxu0 0.0
    %2097 = vmatpush1.msra.mxu0 0.0
    %2098 = vmatprep.subr.mxu0 0.0
    %2099 = vmatpush1.msra.mxu0 0.0
    %2100 = vmatprep.subr.mxu0 0.0
    %2101 = vmatpush1.msra.mxu0 0.0
    %2102 = vmatprep.subr.mxu0 0.0
    %2103 = vmatpush1.msra.mxu0 0.0
    %2104 = vmatprep.subr.mxu0 0.0
    %2105 = vmatpush1.msra.mxu0 0.0
    %2106 = vmatprep.subr.mxu0 0.0
    %2107 = vmatpush1.msra.mxu0 0.0
    %2108 = vmatprep.subr.mxu0 0.0
    %2109 = vmatpush1.msra.mxu0 0.0
    %2110 = vmatprep.subr.mxu0 0.0
    %2111 = vmatpush1.msra.mxu0 0.0
    %2112 = vmatprep.subr.mxu0 0.0
    %2113 = vmatpush1.msra.mxu0 0.0
    %2114 = vmatprep.subr.mxu0 0.0
    %2115 = vmatpush1.msra.mxu0 0.0
    %2116 = vmatprep.subr.mxu0 0.0
    %2117 = vmatpush1.msra.mxu0 0.0
    %2118 = vmatprep.subr.mxu0 0.0
    %2119 = vmatpush1.msra.mxu0 0.0
    %2120 = vmatprep.subr.mxu0 0.0
    %2121 = vmatpush1.msra.mxu0 0.0
    %2122 = vmatprep.subr.mxu0 0.0
    %2123 = vmatpush1.msra.mxu0 0.0
    %2124 = vmatprep.subr.mxu0 0.0
    %2125 = vmatpush1.msra.mxu0 0.0
    %2126 = vmatprep.subr.mxu0 0.0
    %2127 = vmatpush1.msra.mxu0 0.0
    %2128 = vmatprep.subr.mxu0 0.0
    %2129 = vmatpush1.msra.mxu0 0.0
    %2130 = vmatprep.subr.mxu0 0.0
    %2131 = vmatpush1.msra.mxu0 0.0
    %2132 = vmatprep.subr.mxu0 0.0
    %2133 = vmatpush1.msra.mxu0 0.0
    %2134 = vmatprep.subr.mxu0 0.0
    %2135 = vmatpush1.msra.mxu0 0.0
    %2136 = vmatprep.subr.mxu0 0.0
    %2137 = vmatpush1.msra.mxu0 0.0
    %2138 = vmatprep.subr.mxu0 0.0
    %2139 = vmatpush1.msra.mxu0 0.0
    %2140 = vmatprep.subr.mxu0 0.0
    %2141 = vmatpush1.msra.mxu0 0.0
    %2142 = vmatprep.subr.mxu0 0.0
    %2143 = vmatpush1.msra.mxu0 0.0
    %2144 = vmatprep.subr.mxu0 0.0
    %2145 = vmatpush1.msra.mxu0 0.0
    %2146 = vmatprep.subr.mxu0 0.0
    %2147 = vmatpush1.msra.mxu0 0.0
    %2148 = vmatprep.subr.mxu0 0.0
    %2149 = vmatpush1.msra.mxu0 0.0
    %2150 = vmatprep.subr.mxu0 0.0
    %2151 = vmatpush1.msra.mxu0 0.0
    %2152 = vmatprep.subr.mxu0 0.0
    %2153 = vmatpush1.msra.mxu0 0.0
    %2154 = vmatprep.subr.mxu0 0.0
    %2155 = vmatpush1.msra.mxu0 0.0
    %2156 = vmatprep.subr.mxu0 0.0
    %2157 = vmatpush1.msra.mxu0 0.0
    %2158 = vmatprep.mubr.f32.mxu0 0.0
    %2159 = vmatmul.mubr.f32.gmra.mrb[0].mxu0 %v133
    %v2160 = vpop.f32.mrb[0].mxu0
    %v2161 = vadd.f32 0.0, %v2160
    %v2162 = vpop.f32.mrb[0].mxu0
    %2163 = vmatprep.mubr.f32.mxu0 0.0
    %2164 = vmatmul.mubr.f32.gmra.mrb[0].mxu0 %v136
    %v2165 = vpop.f32.mrb[0].mxu0
    %v2166 = vadd.f32 0.0, %v2165
    %v2167 = vpop.f32.mrb[0].mxu0
    %2168 = vdwg.mxu0
    %v2169 = vadd.f32 %v2091, %v2161
    %v2170 = vadd.f32 %v2092, %v2166
    %v2171 = vtanh.pop %v2169
    %v2172 = vmul.f32 %v2170, 0.5
    %v2173 = vtanh.pop %v2172
    %v2174 = vmul.f32 %v2173, 0.5
    %v2175 = vadd.f32 %v2174, 0.5
    %v2176 = vmul.f32 %v2171, %v2175
    %2177 = vst [vmem:[#allocation5 + $0x60] sm:$0xff] %v2176
    %v2178 = vld [vmem:[#allocation2 + $0x68] sm:$0xff]
    %2179 = vmatprep.subr.mxu0 0.0
    %2180 = vmatpush1.msra.mxu0 %v2178
    %2181 = vmatprep.subr.mxu0 0.0
    %2182 = vmatpush1.msra.mxu0 0.0
    %2183 = vmatprep.subr.mxu0 0.0
    %2184 = vmatpush1.msra.mxu0 0.0
    %2185 = vmatprep.subr.mxu0 0.0
    %2186 = vmatpush1.msra.mxu0 0.0
    %2187 = vmatprep.subr.mxu0 0.0
    %2188 = vmatpush1.msra.mxu0 0.0
    %2189 = vmatprep.subr.mxu0 0.0
    %2190 = vmatpush1.msra.mxu0 0.0
    %2191 = vmatprep.subr.mxu0 0.0
    %2192 = vmatpush1.msra.mxu0 0.0
    %2193 = vmatprep.subr.mxu0 0.0
    %2194 = vmatpush1.msra.mxu0 0.0
    %2195 = vmatprep.subr.mxu0 0.0
    %2196 = vmatpush1.msra.mxu0 0.0
    %2197 = vmatprep.subr.mxu0 0.0
    %2198 = vmatpush1.msra.mxu0 0.0
    %2199 = vmatprep.subr.mxu0 0.0
    %2200 = vmatpush1.msra.mxu0 0.0
    %2201 = vmatprep.subr.mxu0 0.0
    %2202 = vmatpush1.msra.mxu0 0.0
    %2203 = vmatprep.subr.mxu0 0.0
    %2204 = vmatpush1.msra.mxu0 0.0
    %2205 = vmatprep.subr.mxu0 0.0
    %2206 = vmatpush1.msra.mxu0 0.0
    %2207 = vmatprep.subr.mxu0 0.0
    %2208 = vmatpush1.msra.mxu0 0.0
    %2209 = vmatprep.subr.mxu0 0.0
    %2210 = vmatpush1.msra.mxu0 0.0
    %2211 = vmatprep.subr.mxu0 0.0
    %2212 = vmatpush1.msra.mxu0 0.0
    %2213 = vmatprep.subr.mxu0 0.0
    %2214 = vmatpush1.msra.mxu0 0.0
    %2215 = vmatprep.subr.mxu0 0.0
    %2216 = vmatpush1.msra.mxu0 0.0
    %2217 = vmatprep.subr.mxu0 0.0
    %2218 = vmatpush1.msra.mxu0 0.0
    %2219 = vmatprep.subr.mxu0 0.0
    %2220 = vmatpush1.msra.mxu0 0.0
    %2221 = vmatprep.subr.mxu0 0.0
    %2222 = vmatpush1.msra.mxu0 0.0
    %2223 = vmatprep.subr.mxu0 0.0
    %2224 = vmatpush1.msra.mxu0 0.0
    %2225 = vmatprep.subr.mxu0 0.0
    %2226 = vmatpush1.msra.mxu0 0.0
    %2227 = vmatprep.subr.mxu0 0.0
    %2228 = vmatpush1.msra.mxu0 0.0
    %2229 = vmatprep.subr.mxu0 0.0
    %2230 = vmatpush1.msra.mxu0 0.0
    %2231 = vmatprep.subr.mxu0 0.0
    %2232 = vmatpush1.msra.mxu0 0.0
    %2233 = vmatprep.subr.mxu0 0.0
    %2234 = vmatpush1.msra.mxu0 0.0
    %2235 = vmatprep.subr.mxu0 0.0
    %2236 = vmatpush1.msra.mxu0 0.0
    %2237 = vmatprep.subr.mxu0 0.0
    %2238 = vmatpush1.msra.mxu0 0.0
    %2239 = vmatprep.subr.mxu0 0.0
    %2240 = vmatpush1.msra.mxu0 0.0
    %2241 = vmatprep.subr.mxu0 0.0
    %2242 = vmatpush1.msra.mxu0 0.0
    %2243 = vmatprep.mubr.f32.mxu0 0.0
    %2244 = vmatmul.mubr.f32.gmra.mrb[0].mxu0 %v39
    %v2245 = vpop.f32.mrb[0].mxu0
    %v2246 = vadd.f32 0.0, %v2245
    %v2247 = vpop.f32.mrb[0].mxu0
    %2248 = vmatprep.mubr.f32.mxu0 0.0
    %2249 = vmatmul.mubr.f32.gmra.mrb[0].mxu0 %v42
    %v2250 = vpop.f32.mrb[0].mxu0
    %v2251 = vadd.f32 0.0, %v2250
    %v2252 = vpop.f32.mrb[0].mxu0
    %2253 = vdwg.mxu0
    %v2254 = vadd.f32 %v122, %v2246
    %v2255 = vadd.f32 %v127, %v2251
    %v2256 = vld [vmem:[#allocation2 + $0x70] sm:$0xff]
    %2257 = vmatprep.subr.mxu0 0.0
    %2258 = vmatpush1.msra.mxu0 %v2256
    %2259 = vmatprep.subr.mxu0 0.0
    %2260 = vmatpush1.msra.mxu0 0.0
    %2261 = vmatprep.subr.mxu0 0.0
    %2262 = vmatpush1.msra.mxu0 0.0
    %2263 = vmatprep.subr.mxu0 0.0
    %2264 = vmatpush1.msra.mxu0 0.0
    %2265 = vmatprep.subr.mxu0 0.0
    %2266 = vmatpush1.msra.mxu0 0.0
    %2267 = vmatprep.subr.mxu0 0.0
    %2268 = vmatpush1.msra.mxu0 0.0
    %2269 = vmatprep.subr.mxu0 0.0
    %2270 = vmatpush1.msra.mxu0 0.0
    %2271 = vmatprep.subr.mxu0 0.0
    %2272 = vmatpush1.msra.mxu0 0.0
    %2273 = vmatprep.subr.mxu0 0.0
    %2274 = vmatpush1.msra.mxu0 0.0
    %2275 = vmatprep.subr.mxu0 0.0
    %2276 = vmatpush1.msra.mxu0 0.0
    %2277 = vmatprep.subr.mxu0 0.0
    %2278 = vmatpush1.msra.mxu0 0.0
    %2279 = vmatprep.subr.mxu0 0.0
    %2280 = vmatpush1.msra.mxu0 0.0
    %2281 = vmatprep.subr.mxu0 0.0
    %2282 = vmatpush1.msra.mxu0 0.0
    %2283 = vmatprep.subr.mxu0 0.0
    %2284 = vmatpush1.msra.mxu0 0.0
    %2285 = vmatprep.subr.mxu0 0.0
    %2286 = vmatpush1.msra.mxu0 0.0
    %2287 = vmatprep.subr.mxu0 0.0
    %2288 = vmatpush1.msra.mxu0 0.0
    %2289 = vmatprep.subr.mxu0 0.0
    %2290 = vmatpush1.msra.mxu0 0.0
    %2291 = vmatprep.subr.mxu0 0.0
    %2292 = vmatpush1.msra.mxu0 0.0
    %2293 = vmatprep.subr.mxu0 0.0
    %2294 = vmatpush1.msra.mxu0 0.0
    %2295 = vmatprep.subr.mxu0 0.0
    %2296 = vmatpush1.msra.mxu0 0.0
    %2297 = vmatprep.subr.mxu0 0.0
    %2298 = vmatpush1.msra.mxu0 0.0
    %2299 = vmatprep.subr.mxu0 0.0
    %2300 = vmatpush1.msra.mxu0 0.0
    %2301 = vmatprep.subr.mxu0 0.0
    %2302 = vmatpush1.msra.mxu0 0.0
    %2303 = vmatprep.subr.mxu0 0.0
    %2304 = vmatpush1.msra.mxu0 0.0
    %2305 = vmatprep.subr.mxu0 0.0
    %2306 = vmatpush1.msra.mxu0 0.0
    %2307 = vmatprep.subr.mxu0 0.0
    %2308 = vmatpush1.msra.mxu0 0.0
    %2309 = vmatprep.subr.mxu0 0.0
    %2310 = vmatpush1.msra.mxu0 0.0
    %2311 = vmatprep.subr.mxu0 0.0
    %2312 = vmatpush1.msra.mxu0 0.0
    %2313 = vmatprep.subr.mxu0 0.0
    %2314 = vmatpush1.msra.mxu0 0.0
    %2315 = vmatprep.subr.mxu0 0.0
    %2316 = vmatpush1.msra.mxu0 0.0
    %2317 = vmatprep.subr.mxu0 0.0
    %2318 = vmatpush1.msra.mxu0 0.0
    %2319 = vmatprep.subr.mxu0 0.0
    %2320 = vmatpush1.msra.mxu0 0.0
    %2321 = vmatprep.mubr.f32.mxu0 0.0
    %2322 = vmatmul.mubr.f32.gmra.mrb[0].mxu0 %v133
    %v2323 = vpop.f32.mrb[0].mxu0
    %v2324 = vadd.f32 0.0, %v2323
    %v2325 = vpop.f32.mrb[0].mxu0
    %2326 = vmatprep.mubr.f32.mxu0 0.0
    %2327 = vmatmul.mubr.f32.gmra.mrb[0].mxu0 %v136
    %v2328 = vpop.f32.mrb[0].mxu0
    %v2329 = vadd.f32 0.0, %v2328
    %v2330 = vpop.f32.mrb[0].mxu0
    %2331 = vdwg.mxu0
    %v2332 = vadd.f32 %v2254, %v2324
    %v2333 = vadd.f32 %v2255, %v2329
    %v2334 = vtanh.pop %v2332
    %v2335 = vmul.f32 %v2333, 0.5
    %v2336 = vtanh.pop %v2335
    %v2337 = vmul.f32 %v2336, 0.5
    %v2338 = vadd.f32 %v2337, 0.5
    %v2339 = vmul.f32 %v2334, %v2338
    %2340 = vst [vmem:[#allocation5 + $0x68] sm:$0xff] %v2339
    %v2341 = vld [vmem:[#allocation2 + $0x70] sm:$0xff]
    %2342 = vmatprep.subr.mxu0 0.0
    %2343 = vmatpush1.msra.mxu0 %v2341
    %2344 = vmatprep.subr.mxu0 0.0
    %2345 = vmatpush1.msra.mxu0 0.0
    %2346 = vmatprep.subr.mxu0 0.0
    %2347 = vmatpush1.msra.mxu0 0.0
    %2348 = vmatprep.subr.mxu0 0.0
    %2349 = vmatpush1.msra.mxu0 0.0
    %2350 = vmatprep.subr.mxu0 0.0
    %2351 = vmatpush1.msra.mxu0 0.0
    %2352 = vmatprep.subr.mxu0 0.0
    %2353 = vmatpush1.msra.mxu0 0.0
    %2354 = vmatprep.subr.mxu0 0.0
    %2355 = vmatpush1.msra.mxu0 0.0
    %2356 = vmatprep.subr.mxu0 0.0
    %2357 = vmatpush1.msra.mxu0 0.0
    %2358 = vmatprep.subr.mxu0 0.0
    %2359 = vmatpush1.msra.mxu0 0.0
    %2360 = vmatprep.subr.mxu0 0.0
    %2361 = vmatpush1.msra.mxu0 0.0
    %2362 = vmatprep.subr.mxu0 0.0
    %2363 = vmatpush1.msra.mxu0 0.0
    %2364 = vmatprep.subr.mxu0 0.0
    %2365 = vmatpush1.msra.mxu0 0.0
    %2366 = vmatprep.subr.mxu0 0.0
    %2367 = vmatpush1.msra.mxu0 0.0
    %2368 = vmatprep.subr.mxu0 0.0
    %2369 = vmatpush1.msra.mxu0 0.0
    %2370 = vmatprep.subr.mxu0 0.0
    %2371 = vmatpush1.msra.mxu0 0.0
    %2372 = vmatprep.subr.mxu0 0.0
    %2373 = vmatpush1.msra.mxu0 0.0
    %2374 = vmatprep.subr.mxu0 0.0
    %2375 = vmatpush1.msra.mxu0 0.0
    %2376 = vmatprep.subr.mxu0 0.0
    %2377 = vmatpush1.msra.mxu0 0.0
    %2378 = vmatprep.subr.mxu0 0.0
    %2379 = vmatpush1.msra.mxu0 0.0
    %2380 = vmatprep.subr.mxu0 0.0
    %2381 = vmatpush1.msra.mxu0 0.0
    %2382 = vmatprep.subr.mxu0 0.0
    %2383 = vmatpush1.msra.mxu0 0.0
    %2384 = vmatprep.subr.mxu0 0.0
    %2385 = vmatpush1.msra.mxu0 0.0
    %2386 = vmatprep.subr.mxu0 0.0
    %2387 = vmatpush1.msra.mxu0 0.0
    %2388 = vmatprep.subr.mxu0 0.0
    %2389 = vmatpush1.msra.mxu0 0.0
    %2390 = vmatprep.subr.mxu0 0.0
    %2391 = vmatpush1.msra.mxu0 0.0
    %2392 = vmatprep.subr.mxu0 0.0
    %2393 = vmatpush1.msra.mxu0 0.0
    %2394 = vmatprep.subr.mxu0 0.0
    %2395 = vmatpush1.msra.mxu0 0.0
    %2396 = vmatprep.subr.mxu0 0.0
    %2397 = vmatpush1.msra.mxu0 0.0
    %2398 = vmatprep.subr.mxu0 0.0
    %2399 = vmatpush1.msra.mxu0 0.0
    %2400 = vmatprep.subr.mxu0 0.0
    %2401 = vmatpush1.msra.mxu0 0.0
    %2402 = vmatprep.subr.mxu0 0.0
    %2403 = vmatpush1.msra.mxu0 0.0
    %2404 = vmatprep.subr.mxu0 0.0
    %2405 = vmatpush1.msra.mxu0 0.0
    %2406 = vmatprep.mubr.f32.mxu0 0.0
    %2407 = vmatmul.mubr.f32.gmra.mrb[0].mxu0 %v39
    %v2408 = vpop.f32.mrb[0].mxu0
    %v2409 = vadd.f32 0.0, %v2408
    %v2410 = vpop.f32.mrb[0].mxu0
    %2411 = vmatprep.mubr.f32.mxu0 0.0
    %2412 = vmatmul.mubr.f32.gmra.mrb[0].mxu0 %v42
    %v2413 = vpop.f32.mrb[0].mxu0
    %v2414 = vadd.f32 0.0, %v2413
    %v2415 = vpop.f32.mrb[0].mxu0
    %2416 = vdwg.mxu0
    %v2417 = vadd.f32 %v122, %v2409
    %v2418 = vadd.f32 %v127, %v2414
    %v2419 = vld [vmem:[#allocation2 + $0x78] sm:$0xff]
    %2420 = vmatprep.subr.mxu0 0.0
    %2421 = vmatpush1.msra.mxu0 %v2419
    %2422 = vmatprep.subr.mxu0 0.0
    %2423 = vmatpush1.msra.mxu0 0.0
    %2424 = vmatprep.subr.mxu0 0.0
    %2425 = vmatpush1.msra.mxu0 0.0
    %2426 = vmatprep.subr.mxu0 0.0
    %2427 = vmatpush1.msra.mxu0 0.0
    %2428 = vmatprep.subr.mxu0 0.0
    %2429 = vmatpush1.msra.mxu0 0.0
    %2430 = vmatprep.subr.mxu0 0.0
    %2431 = vmatpush1.msra.mxu0 0.0
    %2432 = vmatprep.subr.mxu0 0.0
    %2433 = vmatpush1.msra.mxu0 0.0
    %2434 = vmatprep.subr.mxu0 0.0
    %2435 = vmatpush1.msra.mxu0 0.0
    %2436 = vmatprep.subr.mxu0 0.0
    %2437 = vmatpush1.msra.mxu0 0.0
    %2438 = vmatprep.subr.mxu0 0.0
    %2439 = vmatpush1.msra.mxu0 0.0
    %2440 = vmatprep.subr.mxu0 0.0
    %2441 = vmatpush1.msra.mxu0 0.0
    %2442 = vmatprep.subr.mxu0 0.0
    %2443 = vmatpush1.msra.mxu0 0.0
    %2444 = vmatprep.subr.mxu0 0.0
    %2445 = vmatpush1.msra.mxu0 0.0
    %2446 = vmatprep.subr.mxu0 0.0
    %2447 = vmatpush1.msra.mxu0 0.0
    %2448 = vmatprep.subr.mxu0 0.0
    %2449 = vmatpush1.msra.mxu0 0.0
    %2450 = vmatprep.subr.mxu0 0.0
    %2451 = vmatpush1.msra.mxu0 0.0
    %2452 = vmatprep.subr.mxu0 0.0
    %2453 = vmatpush1.msra.mxu0 0.0
    %2454 = vmatprep.subr.mxu0 0.0
    %2455 = vmatpush1.msra.mxu0 0.0
    %2456 = vmatprep.subr.mxu0 0.0
    %2457 = vmatpush1.msra.mxu0 0.0
    %2458 = vmatprep.subr.mxu0 0.0
    %2459 = vmatpush1.msra.mxu0 0.0
    %2460 = vmatprep.subr.mxu0 0.0
    %2461 = vmatpush1.msra.mxu0 0.0
    %2462 = vmatprep.subr.mxu0 0.0
    %2463 = vmatpush1.msra.mxu0 0.0
    %2464 = vmatprep.subr.mxu0 0.0
    %2465 = vmatpush1.msra.mxu0 0.0
    %2466 = vmatprep.subr.mxu0 0.0
    %2467 = vmatpush1.msra.mxu0 0.0
    %2468 = vmatprep.subr.mxu0 0.0
    %2469 = vmatpush1.msra.mxu0 0.0
    %2470 = vmatprep.subr.mxu0 0.0
    %2471 = vmatpush1.msra.mxu0 0.0
    %2472 = vmatprep.subr.mxu0 0.0
    %2473 = vmatpush1.msra.mxu0 0.0
    %2474 = vmatprep.subr.mxu0 0.0
    %2475 = vmatpush1.msra.mxu0 0.0
    %2476 = vmatprep.subr.mxu0 0.0
    %2477 = vmatpush1.msra.mxu0 0.0
    %2478 = vmatprep.subr.mxu0 0.0
    %2479 = vmatpush1.msra.mxu0 0.0
    %2480 = vmatprep.subr.mxu0 0.0
    %2481 = vmatpush1.msra.mxu0 0.0
    %2482 = vmatprep.subr.mxu0 0.0
    %2483 = vmatpush1.msra.mxu0 0.0
    %2484 = vmatprep.mubr.f32.mxu0 0.0
    %2485 = vmatmul.mubr.f32.gmra.mrb[0].mxu0 %v133
    %v2486 = vpop.f32.mrb[0].mxu0
    %v2487 = vadd.f32 0.0, %v2486
    %v2488 = vpop.f32.mrb[0].mxu0
    %2489 = vmatprep.mubr.f32.mxu0 0.0
    %2490 = vmatmul.mubr.f32.gmra.mrb[0].mxu0 %v136
    %v2491 = vpop.f32.mrb[0].mxu0
    %v2492 = vadd.f32 0.0, %v2491
    %v2493 = vpop.f32.mrb[0].mxu0
    %2494 = vdwg.mxu0
    %v2495 = vadd.f32 %v2417, %v2487
    %v2496 = vadd.f32 %v2418, %v2492
    %v2497 = vtanh.pop %v2495
    %v2498 = vmul.f32 %v2496, 0.5
    %v2499 = vtanh.pop %v2498
    %v2500 = vmul.f32 %v2499, 0.5
    %v2501 = vadd.f32 %v2500, 0.5
    %v2502 = vmul.f32 %v2497, %v2501
    %2503 = vst [vmem:[#allocation5 + $0x70] sm:$0xff] %v2502
    // Predicated region
    $region18: #{tpu_custom_call.1} parent=1 // pred_check
      _
    $region19: #{tpu_custom_call.1} parent=1 // pred_check_branch
      %2505 = sbr.rel (0) target = $region21
    $region20: #{tpu_custom_call.1} parent=1 // pred_region
      %s2507 = ssub.s32 1920, 1920
      %2508 = vsyncadd [#allocation4], %s2507
      %s2509 = sshll.u32 [#allocation5], 4
      %s2510 = int_to_ptr.vmem [resolvable:$true] %s2509
      %2515 = dma.vmem_to_hbm [thread:$0]  %s2510, 1920, %s3, [#allocation4], 128, 128, 8
    $region21: #{tpu_custom_call.1} parent=1 // pred_fallthru
      _
    // Predicated region
    $region22: #{tpu_custom_call.1} parent=1 // pred_check
      _
    $region23: #{tpu_custom_call.1} parent=1 // pred_check_branch
      %2517 = sbr.rel (0) target = $region25
    $region24: #{tpu_custom_call.1} parent=1 // pred_region
      %2518 = dma.done [#allocation4], 1920
    $region25: #{tpu_custom_call.1} parent=1 // pred_fallthru
      _
    %2519 = vsyncpa [#allocation3], 1
    %2520 = vsyncpa [#allocation4], 1

</llo_original>
